<compile_context>
chip_gen: v7x
topology: tpu7x:2x2x1
jax: 0.10.0
libtpu: 0.0.40
codegen_flags: <defaults>
</compile_context>

<pallas_src>
import numpy as np
import jax
import jax.numpy as jnp
from jax.experimental import pallas as pl
from jax.experimental.pallas import tpu as pltpu


_LANE_PAD = 128     # zero columns either side of the staged activation (>= pad*(w+1))
_OUT_PAD = 128      # classifier output padded to a full lane width


# ----------------------------- host-side constants ---------------------------

def _make_tap_masks(batch, h, w, k):
    """(k*k, batch*h*w) f32 0/1 masks: tap t valid at flat output position m."""
    pad = k // 2
    m = batch * h * w
    idx = np.arange(m)
    yy = (idx // w) % h
    xx = idx % w
    rows = []
    for oy in range(-pad, pad + 1):
        for ox in range(-pad, pad + 1):
            valid = (yy + oy >= 0) & (yy + oy < h) & (xx + ox >= 0) & (xx + ox < w)
            rows.append(valid.astype(np.float32))
    return jnp.asarray(np.stack(rows, axis=0))


def _make_subsample_sel(batch, h, w, stride):
    """Exact 0/1 selection matrix (m_in, m_out) picking the stride-s grid."""
    ho = (h - 1) // stride + 1
    wo = (w - 1) // stride + 1
    m1 = batch * h * w
    m2 = batch * ho * wo
    sel = np.zeros((m1, m2), np.float32)
    for b in range(batch):
        for yo in range(ho):
            for xo in range(wo):
                src = (b * h + yo * stride) * w + xo * stride
                dst = (b * ho + yo) * wo + xo
                sel[src, dst] = 1.0
    return jnp.asarray(sel, dtype=jnp.bfloat16), ho, wo


def _make_pool(batch, hw):
    """(batch, batch*hw) f32 global-average-pool matrix."""
    pool = np.zeros((batch, batch * hw), np.float32)
    for b in range(batch):
        pool[b, b * hw:(b + 1) * hw] = 1.0 / hw
    return jnp.asarray(pool)


# ----------------------------- fused kernel ---------------------------------

def _make_fused_kernel(layer_cfg, head_idx, n_args, k, c_stride, m_max, pad_cols):
    kpad = k // 2

    def kernel(*refs):
        ins = refs[:n_args]
        o_ref = refs[n_args]
        pbuf = refs[n_args + 1]       # (c_rows, pad + m_max + pad) f32 staging
        tapbuf = refs[n_args + 2]     # (k*k*c_stride, m_max) bf16 tap block

        # --- one-time scratch hygiene: only regions never overwritten -------
        c_rows = pbuf.shape[0]
        pbuf[:, 0:pad_cols] = jnp.zeros((c_rows, pad_cols), jnp.float32)
        tail = pbuf.shape[1] - pad_cols - m_max
        pbuf[:, pad_cols + m_max:] = jnp.zeros((c_rows, tail), jnp.float32)
        # Rows beyond a layer's cin multiply zero weight columns but must be
        # finite (NaN * 0 = NaN), so zero the tap scratch once.
        tapbuf[...] = jnp.zeros_like(tapbuf)

        a = ins[0][...]                                   # (cin0, m0) f32, lane-dense
        for cfg in layer_cfg:
            cin, cout = cfg["cin"], cfg["cout"]
            w, m, stride = cfg["w"], cfg["m"], cfg["stride"]
            wt_ref = ins[cfg["iw"]]
            b_ref = ins[cfg["ib"]]
            mask_ref = ins[cfg["imask"]]

            # Stage so every tap is a static lane-offset slice.
            pbuf[0:cin, pad_cols:pad_cols + m] = a

            # Build the (k*k*c_stride, m) bf16 tap block: one store per tap,
            # sublane offsets are multiples of 16 (bf16 packing aligned).
            t = 0
            for oy in range(-kpad, kpad + 1):
                for ox in range(-kpad, kpad + 1):
                    d = oy * w + ox
                    tap = (pbuf[0:cin, pad_cols + d:pad_cols + d + m]
                           * mask_ref[t:t + 1, :])
                    tapbuf[t * c_stride:t * c_stride + cin, 0:m] = (
                        tap.astype(jnp.bfloat16))
                    t += 1

            # ONE fused MXU dot per conv layer: K = k*k*c_stride.
            z = jnp.dot(wt_ref[...], tapbuf[:, 0:m],
                        preferred_element_type=jnp.float32)        # (cout, m)
            a = jnp.maximum(z + b_ref[...], 0.0)

            if stride != 1:
                # Exact stride-s subsampling as a constant 0/1 selection matmul.
                sel_ref = ins[cfg["isel"]]
                a = jnp.dot(a.astype(jnp.bfloat16), sel_ref[...],
                            preferred_element_type=jnp.float32)    # (cout, m_out)

        # --- classifier head: GAP (constant pool matrix) + Linear/ReLU/Linear
        pool_ref = ins[head_idx[0]]
        w0_ref = ins[head_idx[1]]
        b0_ref = ins[head_idx[2]]
        w1_ref = ins[head_idx[3]]   # (hid, _OUT_PAD), zero-padded past dim_out
        b1_ref = ins[head_idx[4]]   # (1, _OUT_PAD)

        # gap[b, c] = sum_m pool[b, m] * a[c, m]  (contract lane dims of both)
        gap = jax.lax.dot_general(pool_ref[...], a,
                                  dimension_numbers=(((1,), (1,)), ((), ())),
                                  preferred_element_type=jnp.float32)  # (batch, C)
        hid = jnp.maximum(
            jnp.dot(gap, w0_ref[...], preferred_element_type=jnp.float32)
            + b0_ref[...], 0.0)
        # Unmasked, lane-dense (batch, 128) writeback.
        o_ref[...] = (jnp.dot(hid, w1_ref[...], preferred_element_type=jnp.float32)
                      + b1_ref[...])

    return kernel


# ----------------------------- forward (single pallas_call) ------------------

def neuralnet_forward(x_nchw, params, center, *, training=False, centering=False,
                      temperature=1.0):
    conv_ps = [p for p in params if p["kind"] == "conv"]
    clf = params[-1]
    n, c0, h0, w0 = x_nchw.shape
    k = conv_ps[0]["w"].shape[0]
    assert k % 2 == 1, "same-padding conv requires odd kernel size"
    assert (k // 2) * (w0 + 1) <= _LANE_PAD   # width never grows in this net

    cin_list = [p["w"].shape[2] for p in conv_ps]
    c_max = ((max(cin_list) + 7) // 8) * 8
    c_stride = ((max(cin_list) + 15) // 16) * 16   # bf16 sublane-pack aligned blocks
    m_max = n * h0 * w0

    # NCHW -> lane-dense (C, M) with m = (b*h + y)*w + x
    x_cm = jnp.transpose(x_nchw.astype(jnp.float32), (1, 0, 2, 3)).reshape(c0, m_max)

    args = [x_cm]

    def add(arr):
        args.append(arr)
        return len(args) - 1

    layer_cfg = []
    mask_cache = {}
    flops = 0
    h, w = h0, w0
    for p in conv_ps:
        kh, kw, cin, cout = p["w"].shape
        stride = p["stride"]
        m = n * h * w

        key = (h, w)                       # masks are shared across same-res convs
        if key not in mask_cache:
            mask_cache[key] = add(_make_tap_masks(n, h, w, k))
        imask = mask_cache[key]

        # weights -> (Cout, k*k*c_stride) bf16, tap row = t*c_stride + ci
        w_t = jnp.transpose(p["w"].reshape(kh * kw, cin, cout), (2, 0, 1))
        w_pad = jnp.zeros((cout, kh * kw, c_stride), jnp.float32)
        w_pad = w_pad.at[:, :, :cin].set(w_t.astype(jnp.float32))
        iw = add(w_pad.reshape(cout, kh * kw * c_stride).astype(jnp.bfloat16))
        ib = add(p["b"].reshape(cout, 1).astype(jnp.float32))
        flops += 2 * cout * (kh * kw * c_stride) * m

        isel = -1
        ho, wo = h, w
        if stride != 1:
            sel, ho, wo = _make_subsample_sel(n, h, w, stride)
            isel = add(sel)
            flops += 2 * cout * m * (n * ho * wo)

        layer_cfg.append(dict(cin=cin, cout=cout, h=h, w=w, stride=stride, m=m,
                              iw=iw, ib=ib, imask=imask, isel=isel))
        h, w = ho, wo

    c_last = conv_ps[-1]["w"].shape[3]
    hid = clf["w0"].shape[1]
    dim_out = clf["w1"].shape[1]
    assert dim_out <= _OUT_PAD
    m_fin = n * h * w

    w1_pad = jnp.zeros((hid, _OUT_PAD), jnp.float32).at[:, :dim_out].set(
        clf["w1"].astype(jnp.float32))
    b1_pad = jnp.zeros((1, _OUT_PAD), jnp.float32).at[:, :dim_out].set(
        clf["b1"].reshape(1, -1).astype(jnp.float32))

    head_idx = (add(_make_pool(n, h * w)),
                add(clf["w0"].astype(jnp.float32)),
                add(clf["b0"].reshape(1, -1).astype(jnp.float32)),
                add(w1_pad),
                add(b1_pad))
    flops += 2 * n * (m_fin * c_last + c_last * hid + hid * _OUT_PAD)

    bytes_accessed = sum(int(np.prod(a.shape)) * a.dtype.itemsize for a in args)
    bytes_accessed += n * _OUT_PAD * 4

    kernel = _make_fused_kernel(layer_cfg, head_idx, len(args), k, c_stride,
                                m_max, _LANE_PAD)

    out_padded = pl.pallas_call(
        kernel,
        out_shape=jax.ShapeDtypeStruct((n, _OUT_PAD), jnp.float32),
        in_specs=[pl.BlockSpec(memory_space=pltpu.MemorySpace.VMEM)] * len(args),
        out_specs=pl.BlockSpec(memory_space=pltpu.MemorySpace.VMEM),
        scratch_shapes=[
            pltpu.VMEM((c_max, _LANE_PAD + m_max + _LANE_PAD), jnp.float32),
            pltpu.VMEM((k * k * c_stride, m_max), jnp.bfloat16),
        ],
        cost_estimate=pl.CostEstimate(flops=int(flops), transcendentals=0,
                                      bytes_accessed=int(bytes_accessed)),
    )(*args)

    x_out = out_padded[:, :dim_out]

    # DINO training epilogue (plain JAX; trivially small, not the hot path)
    if training:
        if centering:
            x_out = x_out - center
        y_hat = jax.nn.softmax(x_out / temperature, axis=1)
    else:
        y_hat = x_out
    return {"y_hat": y_hat}


# ----------------------------- parameter init --------------------------------

def init_params(key, dim_c, filters, k_size, dim_out):
    def conv_layer(kk, cin, cout, stride):
        kw_, kb_ = jax.random.split(kk)
        return dict(
            kind="conv",
            stride=stride,
            w=(jax.random.normal(kw_, (k_size, k_size, cin, cout), jnp.float32) * 0.1),
            b=(jax.random.normal(kb_, (cout,), jnp.float32) * 0.05),
        )

    n_conv = 1 + 2 * len(filters[:-1])
    keys = jax.random.split(key, n_conv + 1)
    params = []
    ki = 0
    # WarmupConv
    params.append(conv_layer(keys[ki], dim_c, filters[0], stride=1)); ki += 1
    # ConvBlocks
    for f in filters[:-1]:
        params.append(conv_layer(keys[ki], f, f * 2, stride=1)); ki += 1
        params.append(conv_layer(keys[ki], f * 2, f * 2, stride=2)); ki += 1
    # Classifier
    c = filters[-1]
    hid = int(c * 1.5)
    k0, k1, k2, k3 = jax.random.split(keys[ki], 4)
    params.append(dict(
        kind="clf",
        w0=jax.random.normal(k0, (c, hid), jnp.float32) * 0.1,
        b0=jax.random.normal(k1, (hid,), jnp.float32) * 0.05,
        w1=jax.random.normal(k2, (hid, dim_out), jnp.float32) * 0.1,
        b1=jax.random.normal(k3, (dim_out,), jnp.float32) * 0.05,
    ))
    return params


# ----------------------------- pure-JAX reference -----------------------------

def reference_forward(x_nchw, params):
    x = jnp.transpose(x_nchw, (0, 2, 3, 1)).astype(jnp.float32)
    for p in params:
        if p["kind"] == "conv":
            kh = p["w"].shape[0]
            out = jax.lax.conv_general_dilated(
                x, p["w"], (p["stride"], p["stride"]),
                padding=((kh // 2, kh // 2), (kh // 2, kh // 2)),
                dimension_numbers=("NHWC", "HWIO", "NHWC"))
            x = jax.nn.relu(out + p["b"])
        else:
            gap = jnp.mean(x, axis=(1, 2))
            h = jax.nn.relu(gap @ p["w0"] + p["b0"])
            x = h @ p["w1"] + p["b1"]
    return x


# ----------------------------- main -------------------------------------------

if __name__ == "__main__":
    # Small config consistent with the module's __init__
    dim_h, dim_w, dim_c = 16, 16, 3
    dim_out = 10
    k_size = 3
    filters = [8, 16]          # module requires filters[-1] == 2 * filters[-2]
    batch = 2

    key = jax.random.PRNGKey(0)
    k_params, k_x = jax.random.split(key)
    params = init_params(k_params, dim_c, filters, k_size, dim_out)
    center = jnp.zeros((1, dim_out), jnp.float32)   # registered buffer (unused in eval)

    x = jax.random.normal(k_x, (batch, dim_c, dim_h, dim_w), jnp.float32)  # NCHW

    fwd = jax.jit(lambda xx: neuralnet_forward(xx, params, center, training=False))
    out = fwd(x)
    y_hat = jax.block_until_ready(out["y_hat"])
    assert y_hat.shape == (batch, dim_out), y_hat.shape

    ref = jax.block_until_ready(reference_forward(x, params))
    # conv/subsample operands are bf16 on the MXU (f32 accumulation) -> loose tol
    max_err = float(jnp.max(jnp.abs(y_hat - ref)))
    assert jnp.allclose(y_hat, ref, atol=2e-2, rtol=2e-2), ("mismatch vs reference",
                                                            max_err)

    print("KERNEL_OK")
</pallas_src>

<mosaic_0001>
module attributes {stable_mosaic.version = 11 : i64} {
  func.func @kernel(%arg0: memref<3x512xf32, #tpu.memory_space<vmem>>, %arg1: memref<9x512xf32, #tpu.memory_space<vmem>>, %arg2: memref<8x144xbf16, #tpu.memory_space<vmem>>, %arg3: memref<8x1xf32, #tpu.memory_space<vmem>>, %arg4: memref<16x144xbf16, #tpu.memory_space<vmem>>, %arg5: memref<16x1xf32, #tpu.memory_space<vmem>>, %arg6: memref<16x144xbf16, #tpu.memory_space<vmem>>, %arg7: memref<16x1xf32, #tpu.memory_space<vmem>>, %arg8: memref<512x128xbf16, #tpu.memory_space<vmem>>, %arg9: memref<2x128xf32, #tpu.memory_space<vmem>>, %arg10: memref<16x24xf32, #tpu.memory_space<vmem>>, %arg11: memref<1x24xf32, #tpu.memory_space<vmem>>, %arg12: memref<24x128xf32, #tpu.memory_space<vmem>>, %arg13: memref<1x128xf32, #tpu.memory_space<vmem>>, %arg14: memref<2x128xf32, #tpu.memory_space<vmem>>, %arg15: memref<16x768xf32, #tpu.memory_space<vmem>>, %arg16: memref<144x512xbf16, #tpu.memory_space<vmem>>) attributes {dimension_semantics = [], scalar_prefetch = 0 : i64, scratch_operands = 2 : i64, tpu.core_type = #tpu.core_type<tc>} {
    %cst = arith.constant 0.000000e+00 : f32
    %0 = vector.broadcast %cst : f32 to vector<16x128xf32>
    %c0 = arith.constant 0 : index
    %c0_0 = arith.constant 0 : index
    %1 = vector.load %arg15[%c0, %c0_0] : memref<16x768xf32, #tpu.memory_space<vmem>>, vector<16x128xf32>
    tpu.vector_store %arg15[%c0, %c0_0], %0 {strides = array<i32>} : memref<16x768xf32, #tpu.memory_space<vmem>>, vector<16x128xf32>,
    %cst_1 = arith.constant 0.000000e+00 : f32
    %2 = vector.broadcast %cst_1 : f32 to vector<16x128xf32>
    %c0_2 = arith.constant 0 : index
    %c640 = arith.constant 640 : index
    %3 = vector.load %arg15[%c0_2, %c640] : memref<16x768xf32, #tpu.memory_space<vmem>>, vector<16x128xf32>
    tpu.vector_store %arg15[%c0_2, %c640], %2 {strides = array<i32>} : memref<16x768xf32, #tpu.memory_space<vmem>>, vector<16x128xf32>,
    %cst_3 = arith.constant 0.000000e+00 : bf16
    %4 = vector.broadcast %cst_3 : bf16 to vector<144x512xbf16>
    %c0_4 = arith.constant 0 : index
    %c0_5 = arith.constant 0 : index
    %5 = vector.load %arg16[%c0_4, %c0_5] : memref<144x512xbf16, #tpu.memory_space<vmem>>, vector<144x512xbf16>
    tpu.vector_store %arg16[%c0_4, %c0_5], %4 {strides = array<i32>} : memref<144x512xbf16, #tpu.memory_space<vmem>>, vector<144x512xbf16>,
    %c0_6 = arith.constant 0 : index
    %c0_7 = arith.constant 0 : index
    %6 = vector.load %arg0[%c0_6, %c0_7] : memref<3x512xf32, #tpu.memory_space<vmem>>, vector<3x512xf32>
    %c0_8 = arith.constant 0 : index
    %c128 = arith.constant 128 : index
    %7 = vector.load %arg15[%c0_8, %c128] : memref<16x768xf32, #tpu.memory_space<vmem>>, vector<3x512xf32>
    tpu.vector_store %arg15[%c0_8, %c128], %6 {strides = array<i32>} : memref<16x768xf32, #tpu.memory_space<vmem>>, vector<3x512xf32>,
    %c0_9 = arith.constant 0 : index
    %c111 = arith.constant 111 : index
    %8 = vector.load %arg15[%c0_9, %c111] : memref<16x768xf32, #tpu.memory_space<vmem>>, vector<3x512xf32>
    %c0_10 = arith.constant 0 : index
    %c0_11 = arith.constant 0 : index
    %9 = vector.load %arg1[%c0_10, %c0_11] : memref<9x512xf32, #tpu.memory_space<vmem>>, vector<1x512xf32>
    %10 = vector.broadcast %9 : vector<1x512xf32> to vector<3x512xf32>
    %11 = arith.mulf %8, %10 : vector<3x512xf32>
    %12 = arith.truncf %11 : vector<3x512xf32> to vector<3x512xbf16>
    %c0_12 = arith.constant 0 : index
    %c0_13 = arith.constant 0 : index
    %13 = vector.load %arg16[%c0_12, %c0_13] : memref<144x512xbf16, #tpu.memory_space<vmem>>, vector<3x512xbf16>
    tpu.vector_store %arg16[%c0_12, %c0_13], %12 {strides = array<i32>} : memref<144x512xbf16, #tpu.memory_space<vmem>>, vector<3x512xbf16>,
    %c0_14 = arith.constant 0 : index
    %c112 = arith.constant 112 : index
    %14 = vector.load %arg15[%c0_14, %c112] : memref<16x768xf32, #tpu.memory_space<vmem>>, vector<3x512xf32>
    %c1 = arith.constant 1 : index
    %c0_15 = arith.constant 0 : index
    %15 = vector.load %arg1[%c1, %c0_15] : memref<9x512xf32, #tpu.memory_space<vmem>>, vector<1x512xf32>
    %16 = vector.broadcast %15 : vector<1x512xf32> to vector<3x512xf32>
    %17 = arith.mulf %14, %16 : vector<3x512xf32>
    %18 = arith.truncf %17 : vector<3x512xf32> to vector<3x512xbf16>
    %c16 = arith.constant 16 : index
    %c0_16 = arith.constant 0 : index
    %19 = vector.load %arg16[%c16, %c0_16] : memref<144x512xbf16, #tpu.memory_space<vmem>>, vector<3x512xbf16>
    tpu.vector_store %arg16[%c16, %c0_16], %18 {strides = array<i32>} : memref<144x512xbf16, #tpu.memory_space<vmem>>, vector<3x512xbf16>,
    %c0_17 = arith.constant 0 : index
    %c113 = arith.constant 113 : index
    %20 = vector.load %arg15[%c0_17, %c113] : memref<16x768xf32, #tpu.memory_space<vmem>>, vector<3x512xf32>
    %c2 = arith.constant 2 : index
    %c0_18 = arith.constant 0 : index
    %21 = vector.load %arg1[%c2, %c0_18] : memref<9x512xf32, #tpu.memory_space<vmem>>, vector<1x512xf32>
    %22 = vector.broadcast %21 : vector<1x512xf32> to vector<3x512xf32>
    %23 = arith.mulf %20, %22 : vector<3x512xf32>
    %24 = arith.truncf %23 : vector<3x512xf32> to vector<3x512xbf16>
    %c32 = arith.constant 32 : index
    %c0_19 = arith.constant 0 : index
    %25 = vector.load %arg16[%c32, %c0_19] : memref<144x512xbf16, #tpu.memory_space<vmem>>, vector<3x512xbf16>
    tpu.vector_store %arg16[%c32, %c0_19], %24 {strides = array<i32>} : memref<144x512xbf16, #tpu.memory_space<vmem>>, vector<3x512xbf16>,
    %c0_20 = arith.constant 0 : index
    %c127 = arith.constant 127 : index
    %26 = vector.load %arg15[%c0_20, %c127] : memref<16x768xf32, #tpu.memory_space<vmem>>, vector<3x512xf32>
    %c3 = arith.constant 3 : index
    %c0_21 = arith.constant 0 : index
    %27 = vector.load %arg1[%c3, %c0_21] : memref<9x512xf32, #tpu.memory_space<vmem>>, vector<1x512xf32>
    %28 = vector.broadcast %27 : vector<1x512xf32> to vector<3x512xf32>
    %29 = arith.mulf %26, %28 : vector<3x512xf32>
    %30 = arith.truncf %29 : vector<3x512xf32> to vector<3x512xbf16>
    %c48 = arith.constant 48 : index
    %c0_22 = arith.constant 0 : index
    %31 = vector.load %arg16[%c48, %c0_22] : memref<144x512xbf16, #tpu.memory_space<vmem>>, vector<3x512xbf16>
    tpu.vector_store %arg16[%c48, %c0_22], %30 {strides = array<i32>} : memref<144x512xbf16, #tpu.memory_space<vmem>>, vector<3x512xbf16>,
    %c0_23 = arith.constant 0 : index
    %c128_24 = arith.constant 128 : index
    %32 = vector.load %arg15[%c0_23, %c128_24] : memref<16x768xf32, #tpu.memory_space<vmem>>, vector<3x512xf32>
    %c4 = arith.constant 4 : index
    %c0_25 = arith.constant 0 : index
    %33 = vector.load %arg1[%c4, %c0_25] : memref<9x512xf32, #tpu.memory_space<vmem>>, vector<1x512xf32>
    %34 = vector.broadcast %33 : vector<1x512xf32> to vector<3x512xf32>
    %35 = arith.mulf %32, %34 : vector<3x512xf32>
    %36 = arith.truncf %35 : vector<3x512xf32> to vector<3x512xbf16>
    %c64 = arith.constant 64 : index
    %c0_26 = arith.constant 0 : index
    %37 = vector.load %arg16[%c64, %c0_26] : memref<144x512xbf16, #tpu.memory_space<vmem>>, vector<3x512xbf16>
    tpu.vector_store %arg16[%c64, %c0_26], %36 {strides = array<i32>} : memref<144x512xbf16, #tpu.memory_space<vmem>>, vector<3x512xbf16>,
    %c0_27 = arith.constant 0 : index
    %c129 = arith.constant 129 : index
    %38 = vector.load %arg15[%c0_27, %c129] : memref<16x768xf32, #tpu.memory_space<vmem>>, vector<3x512xf32>
    %c5 = arith.constant 5 : index
    %c0_28 = arith.constant 0 : index
    %39 = vector.load %arg1[%c5, %c0_28] : memref<9x512xf32, #tpu.memory_space<vmem>>, vector<1x512xf32>
    %40 = vector.broadcast %39 : vector<1x512xf32> to vector<3x512xf32>
    %41 = arith.mulf %38, %40 : vector<3x512xf32>
    %42 = arith.truncf %41 : vector<3x512xf32> to vector<3x512xbf16>
    %c80 = arith.constant 80 : index
    %c0_29 = arith.constant 0 : index
    %43 = vector.load %arg16[%c80, %c0_29] : memref<144x512xbf16, #tpu.memory_space<vmem>>, vector<3x512xbf16>
    tpu.vector_store %arg16[%c80, %c0_29], %42 {strides = array<i32>} : memref<144x512xbf16, #tpu.memory_space<vmem>>, vector<3x512xbf16>,
    %c0_30 = arith.constant 0 : index
    %c143 = arith.constant 143 : index
    %44 = vector.load %arg15[%c0_30, %c143] : memref<16x768xf32, #tpu.memory_space<vmem>>, vector<3x512xf32>
    %c6 = arith.constant 6 : index
    %c0_31 = arith.constant 0 : index
    %45 = vector.load %arg1[%c6, %c0_31] : memref<9x512xf32, #tpu.memory_space<vmem>>, vector<1x512xf32>
    %46 = vector.broadcast %45 : vector<1x512xf32> to vector<3x512xf32>
    %47 = arith.mulf %44, %46 : vector<3x512xf32>
    %48 = arith.truncf %47 : vector<3x512xf32> to vector<3x512xbf16>
    %c96 = arith.constant 96 : index
    %c0_32 = arith.constant 0 : index
    %49 = vector.load %arg16[%c96, %c0_32] : memref<144x512xbf16, #tpu.memory_space<vmem>>, vector<3x512xbf16>
    tpu.vector_store %arg16[%c96, %c0_32], %48 {strides = array<i32>} : memref<144x512xbf16, #tpu.memory_space<vmem>>, vector<3x512xbf16>,
    %c0_33 = arith.constant 0 : index
    %c144 = arith.constant 144 : index
    %50 = vector.load %arg15[%c0_33, %c144] : memref<16x768xf32, #tpu.memory_space<vmem>>, vector<3x512xf32>
    %c7 = arith.constant 7 : index
    %c0_34 = arith.constant 0 : index
    %51 = vector.load %arg1[%c7, %c0_34] : memref<9x512xf32, #tpu.memory_space<vmem>>, vector<1x512xf32>
    %52 = vector.broadcast %51 : vector<1x512xf32> to vector<3x512xf32>
    %53 = arith.mulf %50, %52 : vector<3x512xf32>
    %54 = arith.truncf %53 : vector<3x512xf32> to vector<3x512xbf16>
    %c112_35 = arith.constant 112 : index
    %c0_36 = arith.constant 0 : index
    %55 = vector.load %arg16[%c112_35, %c0_36] : memref<144x512xbf16, #tpu.memory_space<vmem>>, vector<3x512xbf16>
    tpu.vector_store %arg16[%c112_35, %c0_36], %54 {strides = array<i32>} : memref<144x512xbf16, #tpu.memory_space<vmem>>, vector<3x512xbf16>,
    %c0_37 = arith.constant 0 : index
    %c145 = arith.constant 145 : index
    %56 = vector.load %arg15[%c0_37, %c145] : memref<16x768xf32, #tpu.memory_space<vmem>>, vector<3x512xf32>
    %c8 = arith.constant 8 : index
    %c0_38 = arith.constant 0 : index
    %57 = vector.load %arg1[%c8, %c0_38] : memref<9x512xf32, #tpu.memory_space<vmem>>, vector<1x512xf32>
    %58 = vector.broadcast %57 : vector<1x512xf32> to vector<3x512xf32>
    %59 = arith.mulf %56, %58 : vector<3x512xf32>
    %60 = arith.truncf %59 : vector<3x512xf32> to vector<3x512xbf16>
    %c128_39 = arith.constant 128 : index
    %c0_40 = arith.constant 0 : index
    %61 = vector.load %arg16[%c128_39, %c0_40] : memref<144x512xbf16, #tpu.memory_space<vmem>>, vector<3x512xbf16>
    tpu.vector_store %arg16[%c128_39, %c0_40], %60 {strides = array<i32>} : memref<144x512xbf16, #tpu.memory_space<vmem>>, vector<3x512xbf16>,
    %c0_41 = arith.constant 0 : index
    %c0_42 = arith.constant 0 : index
    %62 = vector.load %arg2[%c0_41, %c0_42] : memref<8x144xbf16, #tpu.memory_space<vmem>>, vector<8x144xbf16>
    %c0_43 = arith.constant 0 : index
    %c0_44 = arith.constant 0 : index
    %63 = vector.load %arg16[%c0_43, %c0_44] : memref<144x512xbf16, #tpu.memory_space<vmem>>, vector<144x512xbf16>
    %cst_45 = arith.constant dense<0.000000e+00> : vector<8x512xf32>
    %64 = tpu.matmul %62, %63, %cst_45 {dimension_numbers = #tpu.dot_dimension_numbers<[1], [0], [0], [1], [0, 0, 1, 1], [], []>} : vector<8x144xbf16>, vector<144x512xbf16>, vector<8x512xf32> -> vector<8x512xf32>
    %c0_46 = arith.constant 0 : index
    %c0_47 = arith.constant 0 : index
    %65 = vector.load %arg3[%c0_46, %c0_47] : memref<8x1xf32, #tpu.memory_space<vmem>>, vector<8x1xf32>
    %66 = vector.broadcast %65 : vector<8x1xf32> to vector<8x512xf32>
    %67 = arith.addf %64, %66 : vector<8x512xf32>
    %cst_48 = arith.constant 0.000000e+00 : f32
    %68 = vector.broadcast %cst_48 : f32 to vector<8x512xf32>
    %69 = arith.maximumf %67, %68 : vector<8x512xf32>
    %c0_49 = arith.constant 0 : index
    %c128_50 = arith.constant 128 : index
    %70 = vector.load %arg15[%c0_49, %c128_50] : memref<16x768xf32, #tpu.memory_space<vmem>>, vector<8x512xf32>
    tpu.vector_store %arg15[%c0_49, %c128_50], %69 {strides = array<i32>} : memref<16x768xf32, #tpu.memory_space<vmem>>, vector<8x512xf32>,
    %c0_51 = arith.constant 0 : index
    %c111_52 = arith.constant 111 : index
    %71 = vector.load %arg15[%c0_51, %c111_52] : memref<16x768xf32, #tpu.memory_space<vmem>>, vector<8x512xf32>
    %c0_53 = arith.constant 0 : index
    %c0_54 = arith.constant 0 : index
    %72 = vector.load %arg1[%c0_53, %c0_54] : memref<9x512xf32, #tpu.memory_space<vmem>>, vector<1x512xf32>
    %73 = vector.broadcast %72 : vector<1x512xf32> to vector<8x512xf32>
    %74 = arith.mulf %71, %73 : vector<8x512xf32>
    %75 = arith.truncf %74 : vector<8x512xf32> to vector<8x512xbf16>
    %c0_55 = arith.constant 0 : index
    %c0_56 = arith.constant 0 : index
    %76 = vector.load %arg16[%c0_55, %c0_56] : memref<144x512xbf16, #tpu.memory_space<vmem>>, vector<8x512xbf16>
    tpu.vector_store %arg16[%c0_55, %c0_56], %75 {strides = array<i32>} : memref<144x512xbf16, #tpu.memory_space<vmem>>, vector<8x512xbf16>,
    %c0_57 = arith.constant 0 : index
    %c112_58 = arith.constant 112 : index
    %77 = vector.load %arg15[%c0_57, %c112_58] : memref<16x768xf32, #tpu.memory_space<vmem>>, vector<8x512xf32>
    %c1_59 = arith.constant 1 : index
    %c0_60 = arith.constant 0 : index
    %78 = vector.load %arg1[%c1_59, %c0_60] : memref<9x512xf32, #tpu.memory_space<vmem>>, vector<1x512xf32>
    %79 = vector.broadcast %78 : vector<1x512xf32> to vector<8x512xf32>
    %80 = arith.mulf %77, %79 : vector<8x512xf32>
    %81 = arith.truncf %80 : vector<8x512xf32> to vector<8x512xbf16>
    %c16_61 = arith.constant 16 : index
    %c0_62 = arith.constant 0 : index
    %82 = vector.load %arg16[%c16_61, %c0_62] : memref<144x512xbf16, #tpu.memory_space<vmem>>, vector<8x512xbf16>
    tpu.vector_store %arg16[%c16_61, %c0_62], %81 {strides = array<i32>} : memref<144x512xbf16, #tpu.memory_space<vmem>>, vector<8x512xbf16>,
    %c0_63 = arith.constant 0 : index
    %c113_64 = arith.constant 113 : index
    %83 = vector.load %arg15[%c0_63, %c113_64] : memref<16x768xf32, #tpu.memory_space<vmem>>, vector<8x512xf32>
    %c2_65 = arith.constant 2 : index
    %c0_66 = arith.constant 0 : index
    %84 = vector.load %arg1[%c2_65, %c0_66] : memref<9x512xf32, #tpu.memory_space<vmem>>, vector<1x512xf32>
    %85 = vector.broadcast %84 : vector<1x512xf32> to vector<8x512xf32>
    %86 = arith.mulf %83, %85 : vector<8x512xf32>
    %87 = arith.truncf %86 : vector<8x512xf32> to vector<8x512xbf16>
    %c32_67 = arith.constant 32 : index
    %c0_68 = arith.constant 0 : index
    %88 = vector.load %arg16[%c32_67, %c0_68] : memref<144x512xbf16, #tpu.memory_space<vmem>>, vector<8x512xbf16>
    tpu.vector_store %arg16[%c32_67, %c0_68], %87 {strides = array<i32>} : memref<144x512xbf16, #tpu.memory_space<vmem>>, vector<8x512xbf16>,
    %c0_69 = arith.constant 0 : index
    %c127_70 = arith.constant 127 : index
    %89 = vector.load %arg15[%c0_69, %c127_70] : memref<16x768xf32, #tpu.memory_space<vmem>>, vector<8x512xf32>
    %c3_71 = arith.constant 3 : index
    %c0_72 = arith.constant 0 : index
    %90 = vector.load %arg1[%c3_71, %c0_72] : memref<9x512xf32, #tpu.memory_space<vmem>>, vector<1x512xf32>
    %91 = vector.broadcast %90 : vector<1x512xf32> to vector<8x512xf32>
    %92 = arith.mulf %89, %91 : vector<8x512xf32>
    %93 = arith.truncf %92 : vector<8x512xf32> to vector<8x512xbf16>
    %c48_73 = arith.constant 48 : index
    %c0_74 = arith.constant 0 : index
    %94 = vector.load %arg16[%c48_73, %c0_74] : memref<144x512xbf16, #tpu.memory_space<vmem>>, vector<8x512xbf16>
    tpu.vector_store %arg16[%c48_73, %c0_74], %93 {strides = array<i32>} : memref<144x512xbf16, #tpu.memory_space<vmem>>, vector<8x512xbf16>,
    %c0_75 = arith.constant 0 : index
    %c128_76 = arith.constant 128 : index
    %95 = vector.load %arg15[%c0_75, %c128_76] : memref<16x768xf32, #tpu.memory_space<vmem>>, vector<8x512xf32>
    %c4_77 = arith.constant 4 : index
    %c0_78 = arith.constant 0 : index
    %96 = vector.load %arg1[%c4_77, %c0_78] : memref<9x512xf32, #tpu.memory_space<vmem>>, vector<1x512xf32>
    %97 = vector.broadcast %96 : vector<1x512xf32> to vector<8x512xf32>
    %98 = arith.mulf %95, %97 : vector<8x512xf32>
    %99 = arith.truncf %98 : vector<8x512xf32> to vector<8x512xbf16>
    %c64_79 = arith.constant 64 : index
    %c0_80 = arith.constant 0 : index
    %100 = vector.load %arg16[%c64_79, %c0_80] : memref<144x512xbf16, #tpu.memory_space<vmem>>, vector<8x512xbf16>
    tpu.vector_store %arg16[%c64_79, %c0_80], %99 {strides = array<i32>} : memref<144x512xbf16, #tpu.memory_space<vmem>>, vector<8x512xbf16>,
    %c0_81 = arith.constant 0 : index
    %c129_82 = arith.constant 129 : index
    %101 = vector.load %arg15[%c0_81, %c129_82] : memref<16x768xf32, #tpu.memory_space<vmem>>, vector<8x512xf32>
    %c5_83 = arith.constant 5 : index
    %c0_84 = arith.constant 0 : index
    %102 = vector.load %arg1[%c5_83, %c0_84] : memref<9x512xf32, #tpu.memory_space<vmem>>, vector<1x512xf32>
    %103 = vector.broadcast %102 : vector<1x512xf32> to vector<8x512xf32>
    %104 = arith.mulf %101, %103 : vector<8x512xf32>
    %105 = arith.truncf %104 : vector<8x512xf32> to vector<8x512xbf16>
    %c80_85 = arith.constant 80 : index
    %c0_86 = arith.constant 0 : index
    %106 = vector.load %arg16[%c80_85, %c0_86] : memref<144x512xbf16, #tpu.memory_space<vmem>>, vector<8x512xbf16>
    tpu.vector_store %arg16[%c80_85, %c0_86], %105 {strides = array<i32>} : memref<144x512xbf16, #tpu.memory_space<vmem>>, vector<8x512xbf16>,
    %c0_87 = arith.constant 0 : index
    %c143_88 = arith.constant 143 : index
    %107 = vector.load %arg15[%c0_87, %c143_88] : memref<16x768xf32, #tpu.memory_space<vmem>>, vector<8x512xf32>
    %c6_89 = arith.constant 6 : index
    %c0_90 = arith.constant 0 : index
    %108 = vector.load %arg1[%c6_89, %c0_90] : memref<9x512xf32, #tpu.memory_space<vmem>>, vector<1x512xf32>
    %109 = vector.broadcast %108 : vector<1x512xf32> to vector<8x512xf32>
    %110 = arith.mulf %107, %109 : vector<8x512xf32>
    %111 = arith.truncf %110 : vector<8x512xf32> to vector<8x512xbf16>
    %c96_91 = arith.constant 96 : index
    %c0_92 = arith.constant 0 : index
    %112 = vector.load %arg16[%c96_91, %c0_92] : memref<144x512xbf16, #tpu.memory_space<vmem>>, vector<8x512xbf16>
    tpu.vector_store %arg16[%c96_91, %c0_92], %111 {strides = array<i32>} : memref<144x512xbf16, #tpu.memory_space<vmem>>, vector<8x512xbf16>,
    %c0_93 = arith.constant 0 : index
    %c144_94 = arith.constant 144 : index
    %113 = vector.load %arg15[%c0_93, %c144_94] : memref<16x768xf32, #tpu.memory_space<vmem>>, vector<8x512xf32>
    %c7_95 = arith.constant 7 : index
    %c0_96 = arith.constant 0 : index
    %114 = vector.load %arg1[%c7_95, %c0_96] : memref<9x512xf32, #tpu.memory_space<vmem>>, vector<1x512xf32>
    %115 = vector.broadcast %114 : vector<1x512xf32> to vector<8x512xf32>
    %116 = arith.mulf %113, %115 : vector<8x512xf32>
    %117 = arith.truncf %116 : vector<8x512xf32> to vector<8x512xbf16>
    %c112_97 = arith.constant 112 : index
    %c0_98 = arith.constant 0 : index
    %118 = vector.load %arg16[%c112_97, %c0_98] : memref<144x512xbf16, #tpu.memory_space<vmem>>, vector<8x512xbf16>
    tpu.vector_store %arg16[%c112_97, %c0_98], %117 {strides = array<i32>} : memref<144x512xbf16, #tpu.memory_space<vmem>>, vector<8x512xbf16>,
    %c0_99 = arith.constant 0 : index
    %c145_100 = arith.constant 145 : index
    %119 = vector.load %arg15[%c0_99, %c145_100] : memref<16x768xf32, #tpu.memory_space<vmem>>, vector<8x512xf32>
    %c8_101 = arith.constant 8 : index
    %c0_102 = arith.constant 0 : index
    %120 = vector.load %arg1[%c8_101, %c0_102] : memref<9x512xf32, #tpu.memory_space<vmem>>, vector<1x512xf32>
    %121 = vector.broadcast %120 : vector<1x512xf32> to vector<8x512xf32>
    %122 = arith.mulf %119, %121 : vector<8x512xf32>
    %123 = arith.truncf %122 : vector<8x512xf32> to vector<8x512xbf16>
    %c128_103 = arith.constant 128 : index
    %c0_104 = arith.constant 0 : index
    %124 = vector.load %arg16[%c128_103, %c0_104] : memref<144x512xbf16, #tpu.memory_space<vmem>>, vector<8x512xbf16>
    tpu.vector_store %arg16[%c128_103, %c0_104], %123 {strides = array<i32>} : memref<144x512xbf16, #tpu.memory_space<vmem>>, vector<8x512xbf16>,
    %c0_105 = arith.constant 0 : index
    %c0_106 = arith.constant 0 : index
    %125 = vector.load %arg4[%c0_105, %c0_106] : memref<16x144xbf16, #tpu.memory_space<vmem>>, vector<16x144xbf16>
    %c0_107 = arith.constant 0 : index
    %c0_108 = arith.constant 0 : index
    %126 = vector.load %arg16[%c0_107, %c0_108] : memref<144x512xbf16, #tpu.memory_space<vmem>>, vector<144x512xbf16>
    %cst_109 = arith.constant dense<0.000000e+00> : vector<16x512xf32>
    %127 = tpu.matmul %125, %126, %cst_109 {dimension_numbers = #tpu.dot_dimension_numbers<[1], [0], [0], [1], [0, 0, 1, 1], [], []>} : vector<16x144xbf16>, vector<144x512xbf16>, vector<16x512xf32> -> vector<16x512xf32>
    %c0_110 = arith.constant 0 : index
    %c0_111 = arith.constant 0 : index
    %128 = vector.load %arg5[%c0_110, %c0_111] : memref<16x1xf32, #tpu.memory_space<vmem>>, vector<16x1xf32>
    %129 = vector.broadcast %128 : vector<16x1xf32> to vector<16x512xf32>
    %130 = arith.addf %127, %129 : vector<16x512xf32>
    %cst_112 = arith.constant 0.000000e+00 : f32
    %131 = vector.broadcast %cst_112 : f32 to vector<16x512xf32>
    %132 = arith.maximumf %130, %131 : vector<16x512xf32>
    %c0_113 = arith.constant 0 : index
    %c128_114 = arith.constant 128 : index
    %133 = vector.load %arg15[%c0_113, %c128_114] : memref<16x768xf32, #tpu.memory_space<vmem>>, vector<16x512xf32>
    tpu.vector_store %arg15[%c0_113, %c128_114], %132 {strides = array<i32>} : memref<16x768xf32, #tpu.memory_space<vmem>>, vector<16x512xf32>,
    %c0_115 = arith.constant 0 : index
    %c111_116 = arith.constant 111 : index
    %134 = vector.load %arg15[%c0_115, %c111_116] : memref<16x768xf32, #tpu.memory_space<vmem>>, vector<16x512xf32>
    %c0_117 = arith.constant 0 : index
    %c0_118 = arith.constant 0 : index
    %135 = vector.load %arg1[%c0_117, %c0_118] : memref<9x512xf32, #tpu.memory_space<vmem>>, vector<1x512xf32>
    %136 = vector.broadcast %135 : vector<1x512xf32> to vector<16x512xf32>
    %137 = arith.mulf %134, %136 : vector<16x512xf32>
    %138 = arith.truncf %137 : vector<16x512xf32> to vector<16x512xbf16>
    %c0_119 = arith.constant 0 : index
    %c0_120 = arith.constant 0 : index
    %139 = vector.load %arg16[%c0_119, %c0_120] : memref<144x512xbf16, #tpu.memory_space<vmem>>, vector<16x512xbf16>
    tpu.vector_store %arg16[%c0_119, %c0_120], %138 {strides = array<i32>} : memref<144x512xbf16, #tpu.memory_space<vmem>>, vector<16x512xbf16>,
    %c0_121 = arith.constant 0 : index
    %c112_122 = arith.constant 112 : index
    %140 = vector.load %arg15[%c0_121, %c112_122] : memref<16x768xf32, #tpu.memory_space<vmem>>, vector<16x512xf32>
    %c1_123 = arith.constant 1 : index
    %c0_124 = arith.constant 0 : index
    %141 = vector.load %arg1[%c1_123, %c0_124] : memref<9x512xf32, #tpu.memory_space<vmem>>, vector<1x512xf32>
    %142 = vector.broadcast %141 : vector<1x512xf32> to vector<16x512xf32>
    %143 = arith.mulf %140, %142 : vector<16x512xf32>
    %144 = arith.truncf %143 : vector<16x512xf32> to vector<16x512xbf16>
    %c16_125 = arith.constant 16 : index
    %c0_126 = arith.constant 0 : index
    %145 = vector.load %arg16[%c16_125, %c0_126] : memref<144x512xbf16, #tpu.memory_space<vmem>>, vector<16x512xbf16>
    tpu.vector_store %arg16[%c16_125, %c0_126], %144 {strides = array<i32>} : memref<144x512xbf16, #tpu.memory_space<vmem>>, vector<16x512xbf16>,
    %c0_127 = arith.constant 0 : index
    %c113_128 = arith.constant 113 : index
    %146 = vector.load %arg15[%c0_127, %c113_128] : memref<16x768xf32, #tpu.memory_space<vmem>>, vector<16x512xf32>
    %c2_129 = arith.constant 2 : index
    %c0_130 = arith.constant 0 : index
    %147 = vector.load %arg1[%c2_129, %c0_130] : memref<9x512xf32, #tpu.memory_space<vmem>>, vector<1x512xf32>
    %148 = vector.broadcast %147 : vector<1x512xf32> to vector<16x512xf32>
    %149 = arith.mulf %146, %148 : vector<16x512xf32>
    %150 = arith.truncf %149 : vector<16x512xf32> to vector<16x512xbf16>
    %c32_131 = arith.constant 32 : index
    %c0_132 = arith.constant 0 : index
    %151 = vector.load %arg16[%c32_131, %c0_132] : memref<144x512xbf16, #tpu.memory_space<vmem>>, vector<16x512xbf16>
    tpu.vector_store %arg16[%c32_131, %c0_132], %150 {strides = array<i32>} : memref<144x512xbf16, #tpu.memory_space<vmem>>, vector<16x512xbf16>,
    %c0_133 = arith.constant 0 : index
    %c127_134 = arith.constant 127 : index
    %152 = vector.load %arg15[%c0_133, %c127_134] : memref<16x768xf32, #tpu.memory_space<vmem>>, vector<16x512xf32>
    %c3_135 = arith.constant 3 : index
    %c0_136 = arith.constant 0 : index
    %153 = vector.load %arg1[%c3_135, %c0_136] : memref<9x512xf32, #tpu.memory_space<vmem>>, vector<1x512xf32>
    %154 = vector.broadcast %153 : vector<1x512xf32> to vector<16x512xf32>
    %155 = arith.mulf %152, %154 : vector<16x512xf32>
    %156 = arith.truncf %155 : vector<16x512xf32> to vector<16x512xbf16>
    %c48_137 = arith.constant 48 : index
    %c0_138 = arith.constant 0 : index
    %157 = vector.load %arg16[%c48_137, %c0_138] : memref<144x512xbf16, #tpu.memory_space<vmem>>, vector<16x512xbf16>
    tpu.vector_store %arg16[%c48_137, %c0_138], %156 {strides = array<i32>} : memref<144x512xbf16, #tpu.memory_space<vmem>>, vector<16x512xbf16>,
    %c0_139 = arith.constant 0 : index
    %c128_140 = arith.constant 128 : index
    %158 = vector.load %arg15[%c0_139, %c128_140] : memref<16x768xf32, #tpu.memory_space<vmem>>, vector<16x512xf32>
    %c4_141 = arith.constant 4 : index
    %c0_142 = arith.constant 0 : index
    %159 = vector.load %arg1[%c4_141, %c0_142] : memref<9x512xf32, #tpu.memory_space<vmem>>, vector<1x512xf32>
    %160 = vector.broadcast %159 : vector<1x512xf32> to vector<16x512xf32>
    %161 = arith.mulf %158, %160 : vector<16x512xf32>
    %162 = arith.truncf %161 : vector<16x512xf32> to vector<16x512xbf16>
    %c64_143 = arith.constant 64 : index
    %c0_144 = arith.constant 0 : index
    %163 = vector.load %arg16[%c64_143, %c0_144] : memref<144x512xbf16, #tpu.memory_space<vmem>>, vector<16x512xbf16>
    tpu.vector_store %arg16[%c64_143, %c0_144], %162 {strides = array<i32>} : memref<144x512xbf16, #tpu.memory_space<vmem>>, vector<16x512xbf16>,
    %c0_145 = arith.constant 0 : index
    %c129_146 = arith.constant 129 : index
    %164 = vector.load %arg15[%c0_145, %c129_146] : memref<16x768xf32, #tpu.memory_space<vmem>>, vector<16x512xf32>
    %c5_147 = arith.constant 5 : index
    %c0_148 = arith.constant 0 : index
    %165 = vector.load %arg1[%c5_147, %c0_148] : memref<9x512xf32, #tpu.memory_space<vmem>>, vector<1x512xf32>
    %166 = vector.broadcast %165 : vector<1x512xf32> to vector<16x512xf32>
    %167 = arith.mulf %164, %166 : vector<16x512xf32>
    %168 = arith.truncf %167 : vector<16x512xf32> to vector<16x512xbf16>
    %c80_149 = arith.constant 80 : index
    %c0_150 = arith.constant 0 : index
    %169 = vector.load %arg16[%c80_149, %c0_150] : memref<144x512xbf16, #tpu.memory_space<vmem>>, vector<16x512xbf16>
    tpu.vector_store %arg16[%c80_149, %c0_150], %168 {strides = array<i32>} : memref<144x512xbf16, #tpu.memory_space<vmem>>, vector<16x512xbf16>,
    %c0_151 = arith.constant 0 : index
    %c143_152 = arith.constant 143 : index
    %170 = vector.load %arg15[%c0_151, %c143_152] : memref<16x768xf32, #tpu.memory_space<vmem>>, vector<16x512xf32>
    %c6_153 = arith.constant 6 : index
    %c0_154 = arith.constant 0 : index
    %171 = vector.load %arg1[%c6_153, %c0_154] : memref<9x512xf32, #tpu.memory_space<vmem>>, vector<1x512xf32>
    %172 = vector.broadcast %171 : vector<1x512xf32> to vector<16x512xf32>
    %173 = arith.mulf %170, %172 : vector<16x512xf32>
    %174 = arith.truncf %173 : vector<16x512xf32> to vector<16x512xbf16>
    %c96_155 = arith.constant 96 : index
    %c0_156 = arith.constant 0 : index
    %175 = vector.load %arg16[%c96_155, %c0_156] : memref<144x512xbf16, #tpu.memory_space<vmem>>, vector<16x512xbf16>
    tpu.vector_store %arg16[%c96_155, %c0_156], %174 {strides = array<i32>} : memref<144x512xbf16, #tpu.memory_space<vmem>>, vector<16x512xbf16>,
    %c0_157 = arith.constant 0 : index
    %c144_158 = arith.constant 144 : index
    %176 = vector.load %arg15[%c0_157, %c144_158] : memref<16x768xf32, #tpu.memory_space<vmem>>, vector<16x512xf32>
    %c7_159 = arith.constant 7 : index
    %c0_160 = arith.constant 0 : index
    %177 = vector.load %arg1[%c7_159, %c0_160] : memref<9x512xf32, #tpu.memory_space<vmem>>, vector<1x512xf32>
    %178 = vector.broadcast %177 : vector<1x512xf32> to vector<16x512xf32>
    %179 = arith.mulf %176, %178 : vector<16x512xf32>
    %180 = arith.truncf %179 : vector<16x512xf32> to vector<16x512xbf16>
    %c112_161 = arith.constant 112 : index
    %c0_162 = arith.constant 0 : index
    %181 = vector.load %arg16[%c112_161, %c0_162] : memref<144x512xbf16, #tpu.memory_space<vmem>>, vector<16x512xbf16>
    tpu.vector_store %arg16[%c112_161, %c0_162], %180 {strides = array<i32>} : memref<144x512xbf16, #tpu.memory_space<vmem>>, vector<16x512xbf16>,
    %c0_163 = arith.constant 0 : index
    %c145_164 = arith.constant 145 : index
    %182 = vector.load %arg15[%c0_163, %c145_164] : memref<16x768xf32, #tpu.memory_space<vmem>>, vector<16x512xf32>
    %c8_165 = arith.constant 8 : index
    %c0_166 = arith.constant 0 : index
    %183 = vector.load %arg1[%c8_165, %c0_166] : memref<9x512xf32, #tpu.memory_space<vmem>>, vector<1x512xf32>
    %184 = vector.broadcast %183 : vector<1x512xf32> to vector<16x512xf32>
    %185 = arith.mulf %182, %184 : vector<16x512xf32>
    %186 = arith.truncf %185 : vector<16x512xf32> to vector<16x512xbf16>
    %c128_167 = arith.constant 128 : index
    %c0_168 = arith.constant 0 : index
    %187 = vector.load %arg16[%c128_167, %c0_168] : memref<144x512xbf16, #tpu.memory_space<vmem>>, vector<16x512xbf16>
    tpu.vector_store %arg16[%c128_167, %c0_168], %186 {strides = array<i32>} : memref<144x512xbf16, #tpu.memory_space<vmem>>, vector<16x512xbf16>,
    %c0_169 = arith.constant 0 : index
    %c0_170 = arith.constant 0 : index
    %188 = vector.load %arg6[%c0_169, %c0_170] : memref<16x144xbf16, #tpu.memory_space<vmem>>, vector<16x144xbf16>
    %c0_171 = arith.constant 0 : index
    %c0_172 = arith.constant 0 : index
    %189 = vector.load %arg16[%c0_171, %c0_172] : memref<144x512xbf16, #tpu.memory_space<vmem>>, vector<144x512xbf16>
    %cst_173 = arith.constant dense<0.000000e+00> : vector<16x512xf32>
    %190 = tpu.matmul %188, %189, %cst_173 {dimension_numbers = #tpu.dot_dimension_numbers<[1], [0], [0], [1], [0, 0, 1, 1], [], []>} : vector<16x144xbf16>, vector<144x512xbf16>, vector<16x512xf32> -> vector<16x512xf32>
    %c0_174 = arith.constant 0 : index
    %c0_175 = arith.constant 0 : index
    %191 = vector.load %arg7[%c0_174, %c0_175] : memref<16x1xf32, #tpu.memory_space<vmem>>, vector<16x1xf32>
    %192 = vector.broadcast %191 : vector<16x1xf32> to vector<16x512xf32>
    %193 = arith.addf %190, %192 : vector<16x512xf32>
    %cst_176 = arith.constant 0.000000e+00 : f32
    %194 = vector.broadcast %cst_176 : f32 to vector<16x512xf32>
    %195 = arith.maximumf %193, %194 : vector<16x512xf32>
    %196 = arith.truncf %195 : vector<16x512xf32> to vector<16x512xbf16>
    %c0_177 = arith.constant 0 : index
    %c0_178 = arith.constant 0 : index
    %197 = vector.load %arg8[%c0_177, %c0_178] : memref<512x128xbf16, #tpu.memory_space<vmem>>, vector<512x128xbf16>
    %cst_179 = arith.constant dense<0.000000e+00> : vector<16x128xf32>
    %198 = tpu.matmul %196, %197, %cst_179 {dimension_numbers = #tpu.dot_dimension_numbers<[1], [0], [0], [1], [0, 0, 1, 1], [], []>} : vector<16x512xbf16>, vector<512x128xbf16>, vector<16x128xf32> -> vector<16x128xf32>
    %c0_180 = arith.constant 0 : index
    %c0_181 = arith.constant 0 : index
    %199 = vector.load %arg9[%c0_180, %c0_181] : memref<2x128xf32, #tpu.memory_space<vmem>>, vector<2x128xf32>
    %cst_182 = arith.constant dense<0.000000e+00> : vector<2x16xf32>
    %200 = tpu.matmul %199, %198, %cst_182 {dimension_numbers = #tpu.dot_dimension_numbers<[1], [1], [0], [0], [0, 0, 1, 0], [], []>} : vector<2x128xf32>, vector<16x128xf32>, vector<2x16xf32> -> vector<2x16xf32>
    %c0_183 = arith.constant 0 : index
    %c0_184 = arith.constant 0 : index
    %201 = vector.load %arg10[%c0_183, %c0_184] : memref<16x24xf32, #tpu.memory_space<vmem>>, vector<16x24xf32>
    %cst_185 = arith.constant dense<0.000000e+00> : vector<2x24xf32>
    %202 = tpu.matmul %200, %201, %cst_185 {dimension_numbers = #tpu.dot_dimension_numbers<[1], [0], [0], [1], [0, 0, 1, 1], [], []>} : vector<2x16xf32>, vector<16x24xf32>, vector<2x24xf32> -> vector<2x24xf32>
    %c0_186 = arith.constant 0 : index
    %c0_187 = arith.constant 0 : index
    %203 = vector.load %arg11[%c0_186, %c0_187] : memref<1x24xf32, #tpu.memory_space<vmem>>, vector<1x24xf32>
    %204 = vector.broadcast %203 : vector<1x24xf32> to vector<2x24xf32>
    %205 = arith.addf %202, %204 : vector<2x24xf32>
    %cst_188 = arith.constant 0.000000e+00 : f32
    %206 = vector.broadcast %cst_188 : f32 to vector<2x24xf32>
    %207 = arith.maximumf %205, %206 : vector<2x24xf32>
    %c0_189 = arith.constant 0 : index
    %c0_190 = arith.constant 0 : index
    %208 = vector.load %arg12[%c0_189, %c0_190] : memref<24x128xf32, #tpu.memory_space<vmem>>, vector<24x128xf32>
    %cst_191 = arith.constant dense<0.000000e+00> : vector<2x128xf32>
    %209 = tpu.matmul %207, %208, %cst_191 {dimension_numbers = #tpu.dot_dimension_numbers<[1], [0], [0], [1], [0, 0, 1, 1], [], []>} : vector<2x24xf32>, vector<24x128xf32>, vector<2x128xf32> -> vector<2x128xf32>
    %c0_192 = arith.constant 0 : index
    %c0_193 = arith.constant 0 : index
    %210 = vector.load %arg13[%c0_192, %c0_193] : memref<1x128xf32, #tpu.memory_space<vmem>>, vector<1x128xf32>
    %211 = vector.broadcast %210 : vector<1x128xf32> to vector<2x128xf32>
    %212 = arith.addf %209, %211 : vector<2x128xf32>
    %c0_194 = arith.constant 0 : index
    %c0_195 = arith.constant 0 : index
    %213 = vector.load %arg14[%c0_194, %c0_195] : memref<2x128xf32, #tpu.memory_space<vmem>>, vector<2x128xf32>
    tpu.vector_store %arg14[%c0_194, %c0_195], %212 {strides = array<i32>} : memref<2x128xf32, #tpu.memory_space<vmem>>, vector<2x128xf32>,
    return
  }
}

</mosaic_0001>

<llo_original>
// kernel: _lambda_.1
$region0: #{_lambda_.1}
  #allocation0 [shape = 'u32[]', space=smem, size = 0x4, offset = 0x4, fixed_abs, tag = 'smem constant byte address 0x4 - core index']
  #allocation1 [shape = 'u32[144,128]{1,0:T(1,128)}', space=vmem, size = 0x12000, scoped, tag = 'internal scratch']
  #allocation2 [shape = 'f32[16,768]{1,0:T(8,128)}', space=vmem, size = 0xc000, scoped, tag = 'scratch operand']
  #allocation3 [shape = 'bf16[144,512]{1,0:T(16,128)(2,1)}', space=vmem, size = 0x24000, scoped, tag = 'scratch operand']
  %s0 = inlined_call_operand.vmem [shape: f32[3,512], index: 0, kind: input, shape index: {}]
  %s1 = inlined_call_operand.vmem [shape: f32[9,512], index: 1, kind: input, shape index: {}]
  %s2 = inlined_call_operand.vmem [shape: bf16[8,144], index: 2, kind: input, shape index: {}]
  %s3 = inlined_call_operand.vmem [shape: f32[8,1], index: 3, kind: input, shape index: {}]
  %s4 = inlined_call_operand.vmem [shape: bf16[16,144], index: 4, kind: input, shape index: {}]
  %s5 = inlined_call_operand.vmem [shape: f32[16,1], index: 5, kind: input, shape index: {}]
  %s6 = inlined_call_operand.vmem [shape: bf16[16,144], index: 6, kind: input, shape index: {}]
  %s7 = inlined_call_operand.vmem [shape: f32[16,1], index: 7, kind: input, shape index: {}]
  %s8 = inlined_call_operand.vmem [shape: bf16[512,128], index: 8, kind: input, shape index: {}]
  %s9 = inlined_call_operand.vmem [shape: f32[2,128], index: 9, kind: input, shape index: {}]
  %s10 = inlined_call_operand.vmem [shape: f32[16,24], index: 10, kind: input, shape index: {}]
  %s11 = inlined_call_operand.vmem [shape: f32[1,24], index: 11, kind: input, shape index: {}]
  %s12 = inlined_call_operand.vmem [shape: f32[24,128], index: 12, kind: input, shape index: {}]
  %s13 = inlined_call_operand.vmem [shape: f32[1,128], index: 13, kind: input, shape index: {}]
  %s14 = inlined_call_operand.hbm [shape: f32[2,128], index: 14, kind: output, shape index: {}]
  %s15 = sld [smem:[#allocation0]]
  $region66: #{_lambda_.1} parent=0
    _
  %s17 = ssub.s32 1, %s15
  %s18 = scalar_select 0, %s17, %s15
  $region1: #{_lambda_.1} parent=0
    #allocation4 [shape = 'u8[1024]{0}', space=vmem, size = 0x400, scoped, tag = 'output window, operand 0, single buffered']
    #allocation5 [shape = 's32[1]{0}', space=sflag, size = 0x4, scoped, tag = 'scoped memory for _lambda_.1']
    %19 = vsyncpa [#allocation5], 0
    // Predicated region
    $region2: #{_lambda_.1} parent=1 // pred_check
      _
    $region3: #{_lambda_.1} parent=1 // pred_check_branch
      %21 = sbr.rel (0) target = $region5
    $region4: #{_lambda_.1} parent=1 // pred_region
      _
    $region5: #{_lambda_.1} parent=1 // pred_fallthru
      _
    // Predicated region
    $region6: #{_lambda_.1} parent=1 // pred_check
      _
    $region7: #{_lambda_.1} parent=1 // pred_check_branch
      %23 = sbr.rel (0) target = $region9
    $region8: #{_lambda_.1} parent=1 // pred_region
      _
    $region9: #{_lambda_.1} parent=1 // pred_fallthru
      _
    // Predicated region
    $region10: #{_lambda_.1} parent=1 // pred_check
      _
    $region11: #{_lambda_.1} parent=1 // pred_check_branch
      %25 = sbr.rel (0) target = $region13
    $region12: #{_lambda_.1} parent=1 // pred_region
      _
    $region13: #{_lambda_.1} parent=1 // pred_fallthru
      _
    // Predicated region
    $region14: #{_lambda_.1} parent=1 // pred_check
      _
    $region15: #{_lambda_.1} parent=1 // pred_check_branch
      %27 = sbr.rel (0) target = $region17
    $region16: #{_lambda_.1} parent=1 // pred_region
      _
    $region17: #{_lambda_.1} parent=1 // pred_fallthru
      _
    // Predicated region
    $region18: #{_lambda_.1} parent=1 // pred_check
      _
    $region19: #{_lambda_.1} parent=1 // pred_check_branch
      %29 = sbr.rel (0) target = $region21
    $region20: #{_lambda_.1} parent=1 // pred_region
      _
    $region21: #{_lambda_.1} parent=1 // pred_fallthru
      _
    // Predicated region
    $region22: #{_lambda_.1} parent=1 // pred_check
      _
    $region23: #{_lambda_.1} parent=1 // pred_check_branch
      %31 = sbr.rel (0) target = $region25
    $region24: #{_lambda_.1} parent=1 // pred_region
      _
    $region25: #{_lambda_.1} parent=1 // pred_fallthru
      _
    // Predicated region
    $region26: #{_lambda_.1} parent=1 // pred_check
      _
    $region27: #{_lambda_.1} parent=1 // pred_check_branch
      %33 = sbr.rel (0) target = $region29
    $region28: #{_lambda_.1} parent=1 // pred_region
      _
    $region29: #{_lambda_.1} parent=1 // pred_fallthru
      _
    // Predicated region
    $region30: #{_lambda_.1} parent=1 // pred_check
      _
    $region31: #{_lambda_.1} parent=1 // pred_check_branch
      %35 = sbr.rel (0) target = $region33
    $region32: #{_lambda_.1} parent=1 // pred_region
      _
    $region33: #{_lambda_.1} parent=1 // pred_fallthru
      _
    // Predicated region
    $region34: #{_lambda_.1} parent=1 // pred_check
      _
    $region35: #{_lambda_.1} parent=1 // pred_check_branch
      %37 = sbr.rel (0) target = $region37
    $region36: #{_lambda_.1} parent=1 // pred_region
      _
    $region37: #{_lambda_.1} parent=1 // pred_fallthru
      _
    // Predicated region
    $region38: #{_lambda_.1} parent=1 // pred_check
      _
    $region39: #{_lambda_.1} parent=1 // pred_check_branch
      %39 = sbr.rel (0) target = $region41
    $region40: #{_lambda_.1} parent=1 // pred_region
      _
    $region41: #{_lambda_.1} parent=1 // pred_fallthru
      _
    // Predicated region
    $region42: #{_lambda_.1} parent=1 // pred_check
      _
    $region43: #{_lambda_.1} parent=1 // pred_check_branch
      %41 = sbr.rel (0) target = $region45
    $region44: #{_lambda_.1} parent=1 // pred_region
      _
    $region45: #{_lambda_.1} parent=1 // pred_fallthru
      _
    // Predicated region
    $region46: #{_lambda_.1} parent=1 // pred_check
      _
    $region47: #{_lambda_.1} parent=1 // pred_check_branch
      %43 = sbr.rel (0) target = $region49
    $region48: #{_lambda_.1} parent=1 // pred_region
      _
    $region49: #{_lambda_.1} parent=1 // pred_fallthru
      _
    // Predicated region
    $region50: #{_lambda_.1} parent=1 // pred_check
      _
    $region51: #{_lambda_.1} parent=1 // pred_check_branch
      %45 = sbr.rel (0) target = $region53
    $region52: #{_lambda_.1} parent=1 // pred_region
      _
    $region53: #{_lambda_.1} parent=1 // pred_fallthru
      _
    // Predicated region
    $region54: #{_lambda_.1} parent=1 // pred_check
      _
    $region55: #{_lambda_.1} parent=1 // pred_check_branch
      %47 = sbr.rel (0) target = $region57
    $region56: #{_lambda_.1} parent=1 // pred_region
      _
    $region57: #{_lambda_.1} parent=1 // pred_fallthru
      _
    %49 = vst [vmem:[#allocation2] sm:$0xff] 0.0
    %50 = vst [vmem:[#allocation2 + $0x30] sm:$0xff] 0.0
    %51 = vst [vmem:[#allocation2 + $0x28] sm:$0xff] 0.0
    %52 = vst [vmem:[#allocation2 + $0x58] sm:$0xff] 0.0
    %53 = vst [vmem:[#allocation3] sm:$0xff] 0
    %54 = vst [vmem:[#allocation3 + $0x8] sm:$0xff] 0
    %55 = vst [vmem:[#allocation3 + $0x10] sm:$0xff] 0
    %56 = vst [vmem:[#allocation3 + $0x18] sm:$0xff] 0
    %57 = vst [vmem:[#allocation3 + $0x20] sm:$0xff] 0
    %58 = vst [vmem:[#allocation3 + $0x28] sm:$0xff] 0
    %59 = vst [vmem:[#allocation3 + $0x30] sm:$0xff] 0
    %60 = vst [vmem:[#allocation3 + $0x38] sm:$0xff] 0
    %61 = vst [vmem:[#allocation3 + $0x40] sm:$0xff] 0
    %62 = vst [vmem:[#allocation3 + $0x48] sm:$0xff] 0
    %63 = vst [vmem:[#allocation3 + $0x50] sm:$0xff] 0
    %64 = vst [vmem:[#allocation3 + $0x58] sm:$0xff] 0
    %65 = vst [vmem:[#allocation3 + $0x60] sm:$0xff] 0
    %66 = vst [vmem:[#allocation3 + $0x68] sm:$0xff] 0
    %67 = vst [vmem:[#allocation3 + $0x70] sm:$0xff] 0
    %68 = vst [vmem:[#allocation3 + $0x78] sm:$0xff] 0
    %69 = vst [vmem:[#allocation3 + $0x80] sm:$0xff] 0
    %70 = vst [vmem:[#allocation3 + $0x88] sm:$0xff] 0
    %71 = vst [vmem:[#allocation3 + $0x90] sm:$0xff] 0
    %72 = vst [vmem:[#allocation3 + $0x98] sm:$0xff] 0
    %73 = vst [vmem:[#allocation3 + $0xa0] sm:$0xff] 0
    %74 = vst [vmem:[#allocation3 + $0xa8] sm:$0xff] 0
    %75 = vst [vmem:[#allocation3 + $0xb0] sm:$0xff] 0
    %76 = vst [vmem:[#allocation3 + $0xb8] sm:$0xff] 0
    %77 = vst [vmem:[#allocation3 + $0xc0] sm:$0xff] 0
    %78 = vst [vmem:[#allocation3 + $0xc8] sm:$0xff] 0
    %79 = vst [vmem:[#allocation3 + $0xd0] sm:$0xff] 0
    %80 = vst [vmem:[#allocation3 + $0xd8] sm:$0xff] 0
    %81 = vst [vmem:[#allocation3 + $0xe0] sm:$0xff] 0
    %82 = vst [vmem:[#allocation3 + $0xe8] sm:$0xff] 0
    %83 = vst [vmem:[#allocation3 + $0xf0] sm:$0xff] 0
    %84 = vst [vmem:[#allocation3 + $0xf8] sm:$0xff] 0
    %85 = vst [vmem:[#allocation3 + $0x100] sm:$0xff] 0
    %86 = vst [vmem:[#allocation3 + $0x108] sm:$0xff] 0
    %87 = vst [vmem:[#allocation3 + $0x110] sm:$0xff] 0
    %88 = vst [vmem:[#allocation3 + $0x118] sm:$0xff] 0
    %v89 = vld [vmem:[%s0] sm:$0x77]
    %v90 = vld [vmem:[%s0 + $0x8] sm:$0x77]
    %v93 = vcombine.high %v89, %v89
    %v94 = vcombine.high %v90, %v90
    %97 = vst [vmem:[#allocation2 + $0x8] sm:$0x7] %v89
    %98 = vst [vmem:[#allocation2 + $0x10] sm:$0x7] %v93
    %99 = vst [vmem:[#allocation2 + $0x18] sm:$0x7] %v90
    %100 = vst [vmem:[#allocation2 + $0x20] sm:$0x7] %v94
    %v101 = vld [vmem:[#allocation2] sm:$0x7]
    %v102 = vld [vmem:[#allocation2 + $0x8] sm:$0x7]
    %v103 = vld [vmem:[#allocation2 + $0x10] sm:$0x7]
    %v104 = vld [vmem:[#allocation2 + $0x18] sm:$0x7]
    %v105 = vld [vmem:[#allocation2 + $0x20] sm:$0x7]
    %v106 = vld [vmem:[%s1] ss:$8 sm:$0xf]
    %v108 = vlaneseq
    %v109 = vshrl.u32 %v108, 7
    %v110 = vsub.s32 0, %v109
    %v111 = vrot.slane %v106, %v110
    %v112 = vlaneseq
    %v113 = vshrl.u32 %v112, 7
    %v114 = vsub.s32 1, %v113
    %v115 = vrot.slane %v106, %v114
    %v116 = vlaneseq
    %v117 = vshrl.u32 %v116, 7
    %v118 = vsub.s32 2, %v117
    %v119 = vrot.slane %v106, %v118
    %v120 = vlaneseq
    %v121 = vshrl.u32 %v120, 7
    %v122 = vsub.s32 3, %v121
    %v123 = vrot.slane %v106, %v122
    %124 = vrot.lane.b32.xlu0 %v111, 111
    %v125 = vpop.permute.xlu0 %124
    %126 = vrot.lane.b32.xlu0 %v115, 111
    %v127 = vpop.permute.xlu0 %126
    %128 = vrot.lane.b32.xlu0 %v119, 111
    %v129 = vpop.permute.xlu0 %128
    %130 = vrot.lane.b32.xlu0 %v123, 111
    %v131 = vpop.permute.xlu0 %130
    %vm132 = vcmask 908288
    %v133 = vsel %vm132, %v125, %v127
    %v134 = vsel %vm132, %v127, %v129
    %v135 = vsel %vm132, %v129, %v131
    %v141 = vmul.f32 %v101, %v125
    %v142 = vmul.f32 %v102, %v133
    %v143 = vmul.f32 %v103, %v134
    %v144 = vmul.f32 %v104, %v135
    %v145 = vmul.f32 %v105, %v131
    %v146 = vpack.c.bf16 %v141, %v141
    %v147 = vpack.c.bf16 %v142, %v142
    %v148 = vpack.c.bf16 %v143, %v143
    %v149 = vpack.c.bf16 %v144, %v144
    %v150 = vpack.c.bf16 %v145, %v145
    %156 = vrot.lane.b32.xlu0 %v146, 17
    %v157 = vpop.permute.xlu0 %156
    %158 = vrot.lane.b32.xlu0 %v147, 17
    %v159 = vpop.permute.xlu0 %158
    %160 = vrot.lane.b32.xlu0 %v148, 17
    %v161 = vpop.permute.xlu0 %160
    %162 = vrot.lane.b32.xlu0 %v149, 17
    %v163 = vpop.permute.xlu0 %162
    %164 = vrot.lane.b32.xlu0 %v150, 17
    %v165 = vpop.permute.xlu0 %164
    %vm166 = vcmask 138240
    %v167 = vsel %vm166, %v157, %v159
    %v168 = vsel %vm166, %v159, %v161
    %v169 = vsel %vm166, %v161, %v163
    %v170 = vsel %vm166, %v163, %v165
    %vm175 = vcmask 1041408
    %vm176 = vsmask.f32 1280
    %vm177 = vmand %vm175, %vm176
    %v178 = vld [vmem:[#allocation3] sm:$0x3]
    %v179 = vsel %vm177, %v167, %v178
    %180 = vst [vmem:[#allocation3] sm:$0x3] %v179
    %v181 = vld [vmem:[#allocation3 + $0x8] sm:$0x3]
    %v182 = vsel %vm177, %v168, %v181
    %183 = vst [vmem:[#allocation3 + $0x8] sm:$0x3] %v182
    %v184 = vld [vmem:[#allocation3 + $0x10] sm:$0x3]
    %v185 = vsel %vm177, %v169, %v184
    %186 = vst [vmem:[#allocation3 + $0x10] sm:$0x3] %v185
    %v187 = vld [vmem:[#allocation3 + $0x18] sm:$0x3]
    %v188 = vsel %vm177, %v170, %v187
    %189 = vst [vmem:[#allocation3 + $0x18] sm:$0x3] %v188
    %v190 = vld [vmem:[#allocation2] sm:$0x7]
    %v191 = vld [vmem:[#allocation2 + $0x8] sm:$0x7]
    %v192 = vld [vmem:[#allocation2 + $0x10] sm:$0x7]
    %v193 = vld [vmem:[#allocation2 + $0x18] sm:$0x7]
    %v194 = vld [vmem:[#allocation2 + $0x20] sm:$0x7]
    %s195 = scalar_lea.vmem %s1, 1
    %v196 = vld [vmem:[%s195] ss:$8 sm:$0xf]
    %v198 = vlaneseq
    %v199 = vshrl.u32 %v198, 7
    %v200 = vsub.s32 0, %v199
    %v201 = vrot.slane %v196, %v200
    %v202 = vlaneseq
    %v203 = vshrl.u32 %v202, 7
    %v204 = vsub.s32 1, %v203
    %v205 = vrot.slane %v196, %v204
    %v206 = vlaneseq
    %v207 = vshrl.u32 %v206, 7
    %v208 = vsub.s32 2, %v207
    %v209 = vrot.slane %v196, %v208
    %v210 = vlaneseq
    %v211 = vshrl.u32 %v210, 7
    %v212 = vsub.s32 3, %v211
    %v213 = vrot.slane %v196, %v212
    %214 = vrot.lane.b32.xlu0 %v201, 112
    %v215 = vpop.permute.xlu0 %214
    %216 = vrot.lane.b32.xlu0 %v205, 112
    %v217 = vpop.permute.xlu0 %216
    %218 = vrot.lane.b32.xlu0 %v209, 112
    %v219 = vpop.permute.xlu0 %218
    %220 = vrot.lane.b32.xlu0 %v213, 112
    %v221 = vpop.permute.xlu0 %220
    %vm222 = vcmask 916480
    %v223 = vsel %vm222, %v215, %v217
    %v224 = vsel %vm222, %v217, %v219
    %v225 = vsel %vm222, %v219, %v221
    %v231 = vmul.f32 %v190, %v215
    %v232 = vmul.f32 %v191, %v223
    %v233 = vmul.f32 %v192, %v224
    %v234 = vmul.f32 %v193, %v225
    %v235 = vmul.f32 %v194, %v221
    %v236 = vpack.c.bf16 %v231, %v231
    %v237 = vpack.c.bf16 %v232, %v232
    %v238 = vpack.c.bf16 %v233, %v233
    %v239 = vpack.c.bf16 %v234, %v234
    %v240 = vpack.c.bf16 %v235, %v235
    %246 = vrot.lane.b32.xlu0 %v236, 16
    %v247 = vpop.permute.xlu0 %246
    %248 = vrot.lane.b32.xlu0 %v237, 16
    %v249 = vpop.permute.xlu0 %248
    %250 = vrot.lane.b32.xlu0 %v238, 16
    %v251 = vpop.permute.xlu0 %250
    %252 = vrot.lane.b32.xlu0 %v239, 16
    %v253 = vpop.permute.xlu0 %252
    %254 = vrot.lane.b32.xlu0 %v240, 16
    %v255 = vpop.permute.xlu0 %254
    %vm256 = vcmask 130048
    %v257 = vsel %vm256, %v247, %v249
    %v258 = vsel %vm256, %v249, %v251
    %v259 = vsel %vm256, %v251, %v253
    %v260 = vsel %vm256, %v253, %v255
    %v265 = vld [vmem:[#allocation3 + $0x20] sm:$0x3]
    %v266 = vsel %vm177, %v257, %v265
    %267 = vst [vmem:[#allocation3 + $0x20] sm:$0x3] %v266
    %v268 = vld [vmem:[#allocation3 + $0x28] sm:$0x3]
    %v269 = vsel %vm177, %v258, %v268
    %270 = vst [vmem:[#allocation3 + $0x28] sm:$0x3] %v269
    %v271 = vld [vmem:[#allocation3 + $0x30] sm:$0x3]
    %v272 = vsel %vm177, %v259, %v271
    %273 = vst [vmem:[#allocation3 + $0x30] sm:$0x3] %v272
    %v274 = vld [vmem:[#allocation3 + $0x38] sm:$0x3]
    %v275 = vsel %vm177, %v260, %v274
    %276 = vst [vmem:[#allocation3 + $0x38] sm:$0x3] %v275
    %v277 = vld [vmem:[#allocation2] sm:$0x7]
    %v278 = vld [vmem:[#allocation2 + $0x8] sm:$0x7]
    %v279 = vld [vmem:[#allocation2 + $0x10] sm:$0x7]
    %v280 = vld [vmem:[#allocation2 + $0x18] sm:$0x7]
    %v281 = vld [vmem:[#allocation2 + $0x20] sm:$0x7]
    %s282 = scalar_lea.vmem %s1, 2
    %v283 = vld [vmem:[%s282] ss:$8 sm:$0xf]
    %v285 = vlaneseq
    %v286 = vshrl.u32 %v285, 7
    %v287 = vsub.s32 0, %v286
    %v288 = vrot.slane %v283, %v287
    %v289 = vlaneseq
    %v290 = vshrl.u32 %v289, 7
    %v291 = vsub.s32 1, %v290
    %v292 = vrot.slane %v283, %v291
    %v293 = vlaneseq
    %v294 = vshrl.u32 %v293, 7
    %v295 = vsub.s32 2, %v294
    %v296 = vrot.slane %v283, %v295
    %v297 = vlaneseq
    %v298 = vshrl.u32 %v297, 7
    %v299 = vsub.s32 3, %v298
    %v300 = vrot.slane %v283, %v299
    %301 = vrot.lane.b32.xlu0 %v288, 113
    %v302 = vpop.permute.xlu0 %301
    %303 = vrot.lane.b32.xlu0 %v292, 113
    %v304 = vpop.permute.xlu0 %303
    %305 = vrot.lane.b32.xlu0 %v296, 113
    %v306 = vpop.permute.xlu0 %305
    %307 = vrot.lane.b32.xlu0 %v300, 113
    %v308 = vpop.permute.xlu0 %307
    %vm309 = vcmask 924672
    %v310 = vsel %vm309, %v302, %v304
    %v311 = vsel %vm309, %v304, %v306
    %v312 = vsel %vm309, %v306, %v308
    %v318 = vmul.f32 %v277, %v302
    %v319 = vmul.f32 %v278, %v310
    %v320 = vmul.f32 %v279, %v311
    %v321 = vmul.f32 %v280, %v312
    %v322 = vmul.f32 %v281, %v308
    %v323 = vpack.c.bf16 %v318, %v318
    %v324 = vpack.c.bf16 %v319, %v319
    %v325 = vpack.c.bf16 %v320, %v320
    %v326 = vpack.c.bf16 %v321, %v321
    %v327 = vpack.c.bf16 %v322, %v322
    %333 = vrot.lane.b32.xlu0 %v323, 15
    %v334 = vpop.permute.xlu0 %333
    %335 = vrot.lane.b32.xlu0 %v324, 15
    %v336 = vpop.permute.xlu0 %335
    %337 = vrot.lane.b32.xlu0 %v325, 15
    %v338 = vpop.permute.xlu0 %337
    %339 = vrot.lane.b32.xlu0 %v326, 15
    %v340 = vpop.permute.xlu0 %339
    %341 = vrot.lane.b32.xlu0 %v327, 15
    %v342 = vpop.permute.xlu0 %341
    %vm343 = vcmask 121856
    %v344 = vsel %vm343, %v334, %v336
    %v345 = vsel %vm343, %v336, %v338
    %v346 = vsel %vm343, %v338, %v340
    %v347 = vsel %vm343, %v340, %v342
    %v352 = vld [vmem:[#allocation3 + $0x40] sm:$0x3]
    %v353 = vsel %vm177, %v344, %v352
    %354 = vst [vmem:[#allocation3 + $0x40] sm:$0x3] %v353
    %v355 = vld [vmem:[#allocation3 + $0x48] sm:$0x3]
    %v356 = vsel %vm177, %v345, %v355
    %357 = vst [vmem:[#allocation3 + $0x48] sm:$0x3] %v356
    %v358 = vld [vmem:[#allocation3 + $0x50] sm:$0x3]
    %v359 = vsel %vm177, %v346, %v358
    %360 = vst [vmem:[#allocation3 + $0x50] sm:$0x3] %v359
    %v361 = vld [vmem:[#allocation3 + $0x58] sm:$0x3]
    %v362 = vsel %vm177, %v347, %v361
    %363 = vst [vmem:[#allocation3 + $0x58] sm:$0x3] %v362
    %v364 = vld [vmem:[#allocation2] sm:$0x7]
    %v365 = vld [vmem:[#allocation2 + $0x8] sm:$0x7]
    %v366 = vld [vmem:[#allocation2 + $0x10] sm:$0x7]
    %v367 = vld [vmem:[#allocation2 + $0x18] sm:$0x7]
    %v368 = vld [vmem:[#allocation2 + $0x20] sm:$0x7]
    %s369 = scalar_lea.vmem %s1, 3
    %v370 = vld [vmem:[%s369] ss:$8 sm:$0xf]
    %v372 = vlaneseq
    %v373 = vshrl.u32 %v372, 7
    %v374 = vsub.s32 0, %v373
    %v375 = vrot.slane %v370, %v374
    %v376 = vlaneseq
    %v377 = vshrl.u32 %v376, 7
    %v378 = vsub.s32 1, %v377
    %v379 = vrot.slane %v370, %v378
    %v380 = vlaneseq
    %v381 = vshrl.u32 %v380, 7
    %v382 = vsub.s32 2, %v381
    %v383 = vrot.slane %v370, %v382
    %v384 = vlaneseq
    %v385 = vshrl.u32 %v384, 7
    %v386 = vsub.s32 3, %v385
    %v387 = vrot.slane %v370, %v386
    %388 = vrot.lane.b32.xlu0 %v375, 127
    %v389 = vpop.permute.xlu0 %388
    %390 = vrot.lane.b32.xlu0 %v379, 127
    %v391 = vpop.permute.xlu0 %390
    %392 = vrot.lane.b32.xlu0 %v383, 127
    %v393 = vpop.permute.xlu0 %392
    %394 = vrot.lane.b32.xlu0 %v387, 127
    %v395 = vpop.permute.xlu0 %394
    %vm396 = vcmask 1039360
    %v397 = vsel %vm396, %v389, %v391
    %v398 = vsel %vm396, %v391, %v393
    %v399 = vsel %vm396, %v393, %v395
    %v405 = vmul.f32 %v364, %v389
    %v406 = vmul.f32 %v365, %v397
    %v407 = vmul.f32 %v366, %v398
    %v408 = vmul.f32 %v367, %v399
    %v409 = vmul.f32 %v368, %v395
    %v410 = vpack.c.bf16 %v405, %v405
    %v411 = vpack.c.bf16 %v406, %v406
    %v412 = vpack.c.bf16 %v407, %v407
    %v413 = vpack.c.bf16 %v408, %v408
    %v414 = vpack.c.bf16 %v409, %v409
    %420 = vrot.lane.b32.xlu0 %v410, 1
    %v421 = vpop.permute.xlu0 %420
    %422 = vrot.lane.b32.xlu0 %v411, 1
    %v423 = vpop.permute.xlu0 %422
    %424 = vrot.lane.b32.xlu0 %v412, 1
    %v425 = vpop.permute.xlu0 %424
    %426 = vrot.lane.b32.xlu0 %v413, 1
    %v427 = vpop.permute.xlu0 %426
    %428 = vrot.lane.b32.xlu0 %v414, 1
    %v429 = vpop.permute.xlu0 %428
    %vm430 = vcmask 7168
    %v431 = vsel %vm430, %v421, %v423
    %v432 = vsel %vm430, %v423, %v425
    %v433 = vsel %vm430, %v425, %v427
    %v434 = vsel %vm430, %v427, %v429
    %v439 = vld [vmem:[#allocation3 + $0x60] sm:$0x3]
    %v440 = vsel %vm177, %v431, %v439
    %441 = vst [vmem:[#allocation3 + $0x60] sm:$0x3] %v440
    %v442 = vld [vmem:[#allocation3 + $0x68] sm:$0x3]
    %v443 = vsel %vm177, %v432, %v442
    %444 = vst [vmem:[#allocation3 + $0x68] sm:$0x3] %v443
    %v445 = vld [vmem:[#allocation3 + $0x70] sm:$0x3]
    %v446 = vsel %vm177, %v433, %v445
    %447 = vst [vmem:[#allocation3 + $0x70] sm:$0x3] %v446
    %v448 = vld [vmem:[#allocation3 + $0x78] sm:$0x3]
    %v449 = vsel %vm177, %v434, %v448
    %450 = vst [vmem:[#allocation3 + $0x78] sm:$0x3] %v449
    %v451 = vld [vmem:[#allocation2 + $0x8] sm:$0x7]
    %v452 = vld [vmem:[#allocation2 + $0x10] sm:$0x7]
    %v453 = vld [vmem:[#allocation2 + $0x18] sm:$0x7]
    %v454 = vld [vmem:[#allocation2 + $0x20] sm:$0x7]
    %s455 = scalar_lea.vmem %s1, 4
    %v456 = vld [vmem:[%s455] ss:$8 sm:$0xf]
    %v458 = vlaneseq
    %v459 = vshrl.u32 %v458, 7
    %v460 = vsub.s32 0, %v459
    %v461 = vrot.slane %v456, %v460
    %v462 = vlaneseq
    %v463 = vshrl.u32 %v462, 7
    %v464 = vsub.s32 1, %v463
    %v465 = vrot.slane %v456, %v464
    %v466 = vlaneseq
    %v467 = vshrl.u32 %v466, 7
    %v468 = vsub.s32 2, %v467
    %v469 = vrot.slane %v456, %v468
    %v470 = vlaneseq
    %v471 = vshrl.u32 %v470, 7
    %v472 = vsub.s32 3, %v471
    %v473 = vrot.slane %v456, %v472
    %v478 = vmul.f32 %v451, %v461
    %v479 = vmul.f32 %v452, %v465
    %v480 = vmul.f32 %v453, %v469
    %v481 = vmul.f32 %v454, %v473
    %v482 = vpack.c.bf16 %v478, %v478
    %v483 = vpack.c.bf16 %v479, %v479
    %v484 = vpack.c.bf16 %v480, %v480
    %v485 = vpack.c.bf16 %v481, %v481
    %v486 = vld [vmem:[#allocation3 + $0x80] sm:$0x3]
    %v487 = vsel %vm177, %v482, %v486
    %488 = vst [vmem:[#allocation3 + $0x80] sm:$0x3] %v487
    %v489 = vld [vmem:[#allocation3 + $0x88] sm:$0x3]
    %v490 = vsel %vm177, %v483, %v489
    %491 = vst [vmem:[#allocation3 + $0x88] sm:$0x3] %v490
    %v492 = vld [vmem:[#allocation3 + $0x90] sm:$0x3]
    %v493 = vsel %vm177, %v484, %v492
    %494 = vst [vmem:[#allocation3 + $0x90] sm:$0x3] %v493
    %v495 = vld [vmem:[#allocation3 + $0x98] sm:$0x3]
    %v496 = vsel %vm177, %v485, %v495
    %497 = vst [vmem:[#allocation3 + $0x98] sm:$0x3] %v496
    %v498 = vld [vmem:[#allocation2 + $0x8] sm:$0x7]
    %v499 = vld [vmem:[#allocation2 + $0x10] sm:$0x7]
    %v500 = vld [vmem:[#allocation2 + $0x18] sm:$0x7]
    %v501 = vld [vmem:[#allocation2 + $0x20] sm:$0x7]
    %v502 = vld [vmem:[#allocation2 + $0x28] sm:$0x7]
    %s503 = scalar_lea.vmem %s1, 5
    %v504 = vld [vmem:[%s503] ss:$8 sm:$0xf]
    %v506 = vlaneseq
    %v507 = vshrl.u32 %v506, 7
    %v508 = vsub.s32 0, %v507
    %v509 = vrot.slane %v504, %v508
    %v510 = vlaneseq
    %v511 = vshrl.u32 %v510, 7
    %v512 = vsub.s32 1, %v511
    %v513 = vrot.slane %v504, %v512
    %v514 = vlaneseq
    %v515 = vshrl.u32 %v514, 7
    %v516 = vsub.s32 2, %v515
    %v517 = vrot.slane %v504, %v516
    %v518 = vlaneseq
    %v519 = vshrl.u32 %v518, 7
    %v520 = vsub.s32 3, %v519
    %v521 = vrot.slane %v504, %v520
    %522 = vrot.lane.b32.xlu0 %v509, 1
    %v523 = vpop.permute.xlu0 %522
    %524 = vrot.lane.b32.xlu0 %v513, 1
    %v525 = vpop.permute.xlu0 %524
    %526 = vrot.lane.b32.xlu0 %v517, 1
    %v527 = vpop.permute.xlu0 %526
    %528 = vrot.lane.b32.xlu0 %v521, 1
    %v529 = vpop.permute.xlu0 %528
    %vm530 = vcmask 7168
    %v531 = vsel %vm530, %v523, %v525
    %v532 = vsel %vm530, %v525, %v527
    %v533 = vsel %vm530, %v527, %v529
    %v539 = vmul.f32 %v498, %v523
    %v540 = vmul.f32 %v499, %v531
    %v541 = vmul.f32 %v500, %v532
    %v542 = vmul.f32 %v501, %v533
    %v543 = vmul.f32 %v502, %v529
    %v544 = vpack.c.bf16 %v539, %v539
    %v545 = vpack.c.bf16 %v540, %v540
    %v546 = vpack.c.bf16 %v541, %v541
    %v547 = vpack.c.bf16 %v542, %v542
    %v548 = vpack.c.bf16 %v543, %v543
    %554 = vrot.lane.b32.xlu0 %v544, 127
    %v555 = vpop.permute.xlu0 %554
    %556 = vrot.lane.b32.xlu0 %v545, 127
    %v557 = vpop.permute.xlu0 %556
    %558 = vrot.lane.b32.xlu0 %v546, 127
    %v559 = vpop.permute.xlu0 %558
    %560 = vrot.lane.b32.xlu0 %v547, 127
    %v561 = vpop.permute.xlu0 %560
    %562 = vrot.lane.b32.xlu0 %v548, 127
    %v563 = vpop.permute.xlu0 %562
    %vm564 = vcmask 1039360
    %v565 = vsel %vm564, %v555, %v557
    %v566 = vsel %vm564, %v557, %v559
    %v567 = vsel %vm564, %v559, %v561
    %v568 = vsel %vm564, %v561, %v563
    %v573 = vld [vmem:[#allocation3 + $0xa0] sm:$0x3]
    %v574 = vsel %vm177, %v565, %v573
    %575 = vst [vmem:[#allocation3 + $0xa0] sm:$0x3] %v574
    %v576 = vld [vmem:[#allocation3 + $0xa8] sm:$0x3]
    %v577 = vsel %vm177, %v566, %v576
    %578 = vst [vmem:[#allocation3 + $0xa8] sm:$0x3] %v577
    %v579 = vld [vmem:[#allocation3 + $0xb0] sm:$0x3]
    %v580 = vsel %vm177, %v567, %v579
    %581 = vst [vmem:[#allocation3 + $0xb0] sm:$0x3] %v580
    %v582 = vld [vmem:[#allocation3 + $0xb8] sm:$0x3]
    %v583 = vsel %vm177, %v568, %v582
    %584 = vst [vmem:[#allocation3 + $0xb8] sm:$0x3] %v583
    %v585 = vld [vmem:[#allocation2 + $0x8] sm:$0x7]
    %v586 = vld [vmem:[#allocation2 + $0x10] sm:$0x7]
    %v587 = vld [vmem:[#allocation2 + $0x18] sm:$0x7]
    %v588 = vld [vmem:[#allocation2 + $0x20] sm:$0x7]
    %v589 = vld [vmem:[#allocation2 + $0x28] sm:$0x7]
    %s590 = scalar_lea.vmem %s1, 6
    %v591 = vld [vmem:[%s590] ss:$8 sm:$0xf]
    %v593 = vlaneseq
    %v594 = vshrl.u32 %v593, 7
    %v595 = vsub.s32 0, %v594
    %v596 = vrot.slane %v591, %v595
    %v597 = vlaneseq
    %v598 = vshrl.u32 %v597, 7
    %v599 = vsub.s32 1, %v598
    %v600 = vrot.slane %v591, %v599
    %v601 = vlaneseq
    %v602 = vshrl.u32 %v601, 7
    %v603 = vsub.s32 2, %v602
    %v604 = vrot.slane %v591, %v603
    %v605 = vlaneseq
    %v606 = vshrl.u32 %v605, 7
    %v607 = vsub.s32 3, %v606
    %v608 = vrot.slane %v591, %v607
    %609 = vrot.lane.b32.xlu0 %v596, 15
    %v610 = vpop.permute.xlu0 %609
    %611 = vrot.lane.b32.xlu0 %v600, 15
    %v612 = vpop.permute.xlu0 %611
    %613 = vrot.lane.b32.xlu0 %v604, 15
    %v614 = vpop.permute.xlu0 %613
    %615 = vrot.lane.b32.xlu0 %v608, 15
    %v616 = vpop.permute.xlu0 %615
    %vm617 = vcmask 121856
    %v618 = vsel %vm617, %v610, %v612
    %v619 = vsel %vm617, %v612, %v614
    %v620 = vsel %vm617, %v614, %v616
    %v626 = vmul.f32 %v585, %v610
    %v627 = vmul.f32 %v586, %v618
    %v628 = vmul.f32 %v587, %v619
    %v629 = vmul.f32 %v588, %v620
    %v630 = vmul.f32 %v589, %v616
    %v631 = vpack.c.bf16 %v626, %v626
    %v632 = vpack.c.bf16 %v627, %v627
    %v633 = vpack.c.bf16 %v628, %v628
    %v634 = vpack.c.bf16 %v629, %v629
    %v635 = vpack.c.bf16 %v630, %v630
    %641 = vrot.lane.b32.xlu0 %v631, 113
    %v642 = vpop.permute.xlu0 %641
    %643 = vrot.lane.b32.xlu0 %v632, 113
    %v644 = vpop.permute.xlu0 %643
    %645 = vrot.lane.b32.xlu0 %v633, 113
    %v646 = vpop.permute.xlu0 %645
    %647 = vrot.lane.b32.xlu0 %v634, 113
    %v648 = vpop.permute.xlu0 %647
    %649 = vrot.lane.b32.xlu0 %v635, 113
    %v650 = vpop.permute.xlu0 %649
    %vm651 = vcmask 924672
    %v652 = vsel %vm651, %v642, %v644
    %v653 = vsel %vm651, %v644, %v646
    %v654 = vsel %vm651, %v646, %v648
    %v655 = vsel %vm651, %v648, %v650
    %v660 = vld [vmem:[#allocation3 + $0xc0] sm:$0x3]
    %v661 = vsel %vm177, %v652, %v660
    %662 = vst [vmem:[#allocation3 + $0xc0] sm:$0x3] %v661
    %v663 = vld [vmem:[#allocation3 + $0xc8] sm:$0x3]
    %v664 = vsel %vm177, %v653, %v663
    %665 = vst [vmem:[#allocation3 + $0xc8] sm:$0x3] %v664
    %v666 = vld [vmem:[#allocation3 + $0xd0] sm:$0x3]
    %v667 = vsel %vm177, %v654, %v666
    %668 = vst [vmem:[#allocation3 + $0xd0] sm:$0x3] %v667
    %v669 = vld [vmem:[#allocation3 + $0xd8] sm:$0x3]
    %v670 = vsel %vm177, %v655, %v669
    %671 = vst [vmem:[#allocation3 + $0xd8] sm:$0x3] %v670
    %v672 = vld [vmem:[#allocation2 + $0x8] sm:$0x7]
    %v673 = vld [vmem:[#allocation2 + $0x10] sm:$0x7]
    %v674 = vld [vmem:[#allocation2 + $0x18] sm:$0x7]
    %v675 = vld [vmem:[#allocation2 + $0x20] sm:$0x7]
    %v676 = vld [vmem:[#allocation2 + $0x28] sm:$0x7]
    %s677 = scalar_lea.vmem %s1, 7
    %v678 = vld [vmem:[%s677] ss:$8 sm:$0xf]
    %v680 = vlaneseq
    %v681 = vshrl.u32 %v680, 7
    %v682 = vsub.s32 0, %v681
    %v683 = vrot.slane %v678, %v682
    %v684 = vlaneseq
    %v685 = vshrl.u32 %v684, 7
    %v686 = vsub.s32 1, %v685
    %v687 = vrot.slane %v678, %v686
    %v688 = vlaneseq
    %v689 = vshrl.u32 %v688, 7
    %v690 = vsub.s32 2, %v689
    %v691 = vrot.slane %v678, %v690
    %v692 = vlaneseq
    %v693 = vshrl.u32 %v692, 7
    %v694 = vsub.s32 3, %v693
    %v695 = vrot.slane %v678, %v694
    %696 = vrot.lane.b32.xlu0 %v683, 16
    %v697 = vpop.permute.xlu0 %696
    %698 = vrot.lane.b32.xlu0 %v687, 16
    %v699 = vpop.permute.xlu0 %698
    %700 = vrot.lane.b32.xlu0 %v691, 16
    %v701 = vpop.permute.xlu0 %700
    %702 = vrot.lane.b32.xlu0 %v695, 16
    %v703 = vpop.permute.xlu0 %702
    %vm704 = vcmask 130048
    %v705 = vsel %vm704, %v697, %v699
    %v706 = vsel %vm704, %v699, %v701
    %v707 = vsel %vm704, %v701, %v703
    %v713 = vmul.f32 %v672, %v697
    %v714 = vmul.f32 %v673, %v705
    %v715 = vmul.f32 %v674, %v706
    %v716 = vmul.f32 %v675, %v707
    %v717 = vmul.f32 %v676, %v703
    %v718 = vpack.c.bf16 %v713, %v713
    %v719 = vpack.c.bf16 %v714, %v714
    %v720 = vpack.c.bf16 %v715, %v715
    %v721 = vpack.c.bf16 %v716, %v716
    %v722 = vpack.c.bf16 %v717, %v717
    %728 = vrot.lane.b32.xlu0 %v718, 112
    %v729 = vpop.permute.xlu0 %728
    %730 = vrot.lane.b32.xlu0 %v719, 112
    %v731 = vpop.permute.xlu0 %730
    %732 = vrot.lane.b32.xlu0 %v720, 112
    %v733 = vpop.permute.xlu0 %732
    %734 = vrot.lane.b32.xlu0 %v721, 112
    %v735 = vpop.permute.xlu0 %734
    %736 = vrot.lane.b32.xlu0 %v722, 112
    %v737 = vpop.permute.xlu0 %736
    %vm738 = vcmask 916480
    %v739 = vsel %vm738, %v729, %v731
    %v740 = vsel %vm738, %v731, %v733
    %v741 = vsel %vm738, %v733, %v735
    %v742 = vsel %vm738, %v735, %v737
    %v747 = vld [vmem:[#allocation3 + $0xe0] sm:$0x3]
    %v748 = vsel %vm177, %v739, %v747
    %749 = vst [vmem:[#allocation3 + $0xe0] sm:$0x3] %v748
    %v750 = vld [vmem:[#allocation3 + $0xe8] sm:$0x3]
    %v751 = vsel %vm177, %v740, %v750
    %752 = vst [vmem:[#allocation3 + $0xe8] sm:$0x3] %v751
    %v753 = vld [vmem:[#allocation3 + $0xf0] sm:$0x3]
    %v754 = vsel %vm177, %v741, %v753
    %755 = vst [vmem:[#allocation3 + $0xf0] sm:$0x3] %v754
    %v756 = vld [vmem:[#allocation3 + $0xf8] sm:$0x3]
    %v757 = vsel %vm177, %v742, %v756
    %758 = vst [vmem:[#allocation3 + $0xf8] sm:$0x3] %v757
    %v759 = vld [vmem:[#allocation2 + $0x8] sm:$0x7]
    %v760 = vld [vmem:[#allocation2 + $0x10] sm:$0x7]
    %v761 = vld [vmem:[#allocation2 + $0x18] sm:$0x7]
    %v762 = vld [vmem:[#allocation2 + $0x20] sm:$0x7]
    %v763 = vld [vmem:[#allocation2 + $0x28] sm:$0x7]
    %s764 = scalar_lea.vmem %s1, 32
    %v765 = vld [vmem:[%s764] ss:$8 sm:$0xf]
    %v767 = vlaneseq
    %v768 = vshrl.u32 %v767, 7
    %v769 = vsub.s32 0, %v768
    %v770 = vrot.slane %v765, %v769
    %v771 = vlaneseq
    %v772 = vshrl.u32 %v771, 7
    %v773 = vsub.s32 1, %v772
    %v774 = vrot.slane %v765, %v773
    %v775 = vlaneseq
    %v776 = vshrl.u32 %v775, 7
    %v777 = vsub.s32 2, %v776
    %v778 = vrot.slane %v765, %v777
    %v779 = vlaneseq
    %v780 = vshrl.u32 %v779, 7
    %v781 = vsub.s32 3, %v780
    %v782 = vrot.slane %v765, %v781
    %783 = vrot.lane.b32.xlu0 %v770, 17
    %v784 = vpop.permute.xlu0 %783
    %785 = vrot.lane.b32.xlu0 %v774, 17
    %v786 = vpop.permute.xlu0 %785
    %787 = vrot.lane.b32.xlu0 %v778, 17
    %v788 = vpop.permute.xlu0 %787
    %789 = vrot.lane.b32.xlu0 %v782, 17
    %v790 = vpop.permute.xlu0 %789
    %vm791 = vcmask 138240
    %v792 = vsel %vm791, %v784, %v786
    %v793 = vsel %vm791, %v786, %v788
    %v794 = vsel %vm791, %v788, %v790
    %v800 = vmul.f32 %v759, %v784
    %v801 = vmul.f32 %v760, %v792
    %v802 = vmul.f32 %v761, %v793
    %v803 = vmul.f32 %v762, %v794
    %v804 = vmul.f32 %v763, %v790
    %v805 = vpack.c.bf16 %v800, %v800
    %v806 = vpack.c.bf16 %v801, %v801
    %v807 = vpack.c.bf16 %v802, %v802
    %v808 = vpack.c.bf16 %v803, %v803
    %v809 = vpack.c.bf16 %v804, %v804
    %815 = vrot.lane.b32.xlu0 %v805, 111
    %v816 = vpop.permute.xlu0 %815
    %817 = vrot.lane.b32.xlu0 %v806, 111
    %v818 = vpop.permute.xlu0 %817
    %819 = vrot.lane.b32.xlu0 %v807, 111
    %v820 = vpop.permute.xlu0 %819
    %821 = vrot.lane.b32.xlu0 %v808, 111
    %v822 = vpop.permute.xlu0 %821
    %823 = vrot.lane.b32.xlu0 %v809, 111
    %v824 = vpop.permute.xlu0 %823
    %vm825 = vcmask 908288
    %v826 = vsel %vm825, %v816, %v818
    %v827 = vsel %vm825, %v818, %v820
    %v828 = vsel %vm825, %v820, %v822
    %v829 = vsel %vm825, %v822, %v824
    %v834 = vld [vmem:[#allocation3 + $0x100] sm:$0x3]
    %v835 = vsel %vm177, %v826, %v834
    %836 = vst [vmem:[#allocation3 + $0x100] sm:$0x3] %v835
    %v837 = vld [vmem:[#allocation3 + $0x108] sm:$0x3]
    %v838 = vsel %vm177, %v827, %v837
    %839 = vst [vmem:[#allocation3 + $0x108] sm:$0x3] %v838
    %v840 = vld [vmem:[#allocation3 + $0x110] sm:$0x3]
    %v841 = vsel %vm177, %v828, %v840
    %842 = vst [vmem:[#allocation3 + $0x110] sm:$0x3] %v841
    %v843 = vld [vmem:[#allocation3 + $0x118] sm:$0x3]
    %v844 = vsel %vm177, %v829, %v843
    %845 = vst [vmem:[#allocation3 + $0x118] sm:$0x3] %v844
    %v846 = vld [vmem:[%s2] sm:$0xff]
    %v847 = vld [vmem:[#allocation3] sm:$0xff]
    %v848 = vld [vmem:[#allocation3 + $0x8] sm:$0xff]
    %v849 = vld [vmem:[#allocation3 + $0x10] sm:$0xff]
    %v850 = vld [vmem:[#allocation3 + $0x18] sm:$0xff]
    %v851 = vld [vmem:[#allocation3 + $0x20] sm:$0xff]
    %v852 = vld [vmem:[#allocation3 + $0x28] sm:$0xff]
    %v853 = vld [vmem:[#allocation3 + $0x30] sm:$0xff]
    %v854 = vld [vmem:[#allocation3 + $0x38] sm:$0xff]
    %v855 = vld [vmem:[#allocation3 + $0x40] sm:$0xff]
    %v856 = vld [vmem:[#allocation3 + $0x48] sm:$0xff]
    %v857 = vld [vmem:[#allocation3 + $0x50] sm:$0xff]
    %v858 = vld [vmem:[#allocation3 + $0x58] sm:$0xff]
    %v859 = vld [vmem:[#allocation3 + $0x60] sm:$0xff]
    %v860 = vld [vmem:[#allocation3 + $0x68] sm:$0xff]
    %v861 = vld [vmem:[#allocation3 + $0x70] sm:$0xff]
    %v862 = vld [vmem:[#allocation3 + $0x78] sm:$0xff]
    %v863 = vld [vmem:[#allocation3 + $0x80] sm:$0xff]
    %v864 = vld [vmem:[#allocation3 + $0x88] sm:$0xff]
    %v865 = vld [vmem:[#allocation3 + $0x90] sm:$0xff]
    %v866 = vld [vmem:[#allocation3 + $0x98] sm:$0xff]
    %v867 = vld [vmem:[#allocation3 + $0xa0] sm:$0xff]
    %v868 = vld [vmem:[#allocation3 + $0xa8] sm:$0xff]
    %v869 = vld [vmem:[#allocation3 + $0xb0] sm:$0xff]
    %v870 = vld [vmem:[#allocation3 + $0xb8] sm:$0xff]
    %v871 = vld [vmem:[#allocation3 + $0xc0] sm:$0xff]
    %v872 = vld [vmem:[#allocation3 + $0xc8] sm:$0xff]
    %v873 = vld [vmem:[#allocation3 + $0xd0] sm:$0xff]
    %v874 = vld [vmem:[#allocation3 + $0xd8] sm:$0xff]
    %v875 = vld [vmem:[#allocation3 + $0xe0] sm:$0xff]
    %v876 = vld [vmem:[#allocation3 + $0xe8] sm:$0xff]
    %v877 = vld [vmem:[#allocation3 + $0xf0] sm:$0xff]
    %v878 = vld [vmem:[#allocation3 + $0xf8] sm:$0xff]
    %v879 = vld [vmem:[#allocation3 + $0x100] sm:$0xff]
    %v880 = vld [vmem:[#allocation3 + $0x108] sm:$0xff]
    %v881 = vld [vmem:[#allocation3 + $0x110] sm:$0xff]
    %v882 = vld [vmem:[#allocation3 + $0x118] sm:$0xff]
    %v883 = vld [vmem:[%s3] sm:$0xff]
    %885 = vset.pattern.permute.xlu0 0
    %886 = vperm.xlu0 %885, %v883
    %v887 = vpop.permute.xlu0 %886
    %v890 = vunpack.c.l.b16 %v846
    %v891 = vunpack.c.h.b16 %v846
    %v892 = vpack.c.b16 %v890, %v890
    %v893 = vpack.c.b16 %v891, %v891
    %v896 = vsel %vm704, %v893, 0
    %898 = vmatprep.subr.bf16.mxu0 %v848
    %899 = vmatpush1.bf16.msra.mxu0 %v847
    %900 = vmatprep.subr.bf16.mxu0 %v852
    %901 = vmatpush1.bf16.msra.mxu0 %v851
    %902 = vmatprep.subr.bf16.mxu0 %v856
    %903 = vmatpush1.bf16.msra.mxu0 %v855
    %904 = vmatprep.subr.bf16.mxu0 %v860
    %905 = vmatpush1.bf16.msra.mxu0 %v859
    %906 = vmatprep.subr.bf16.mxu0 %v864
    %907 = vmatpush1.bf16.msra.mxu0 %v863
    %908 = vmatprep.subr.bf16.mxu0 %v868
    %909 = vmatpush1.bf16.msra.mxu0 %v867
    %910 = vmatprep.subr.bf16.mxu0 %v872
    %911 = vmatpush1.bf16.msra.mxu0 %v871
    %912 = vmatprep.subr.bf16.mxu0 %v876
    %913 = vmatpush1.bf16.msra.mxu0 %v875
    %914 = vmatprep.subr.bf16.mxu0 %v880
    %915 = vmatpush1.bf16.msra.mxu0 %v879
    %916 = vmatprep.subr.bf16.mxu0 0
    %917 = vmatpush1.bf16.msra.mxu0 0
    %918 = vmatprep.subr.bf16.mxu0 0
    %919 = vmatpush1.bf16.msra.mxu0 0
    %920 = vmatprep.subr.bf16.mxu0 0
    %921 = vmatpush1.bf16.msra.mxu0 0
    %922 = vmatprep.subr.bf16.mxu0 0
    %923 = vmatpush1.bf16.msra.mxu0 0
    %924 = vmatprep.subr.bf16.mxu0 0
    %925 = vmatpush1.bf16.msra.mxu0 0
    %926 = vmatprep.subr.bf16.mxu0 0
    %927 = vmatpush1.bf16.msra.mxu0 0
    %928 = vmatprep.subr.bf16.mxu0 0
    %929 = vmatpush1.bf16.msra.mxu0 0
    %930 = vmatprep.mubr.bf16.mxu0 %v896
    %931 = vmatmul.mubr.bf16.gmra.mrb[0].mxu0 %v892
    %v932 = vpop.f32.mrb[0].mxu0
    %v933 = vadd.f32 %v887, %v932
    %v934 = vpop.f32.mrb[0].mxu0
    %v935 = vadd.f32 %v887, %v934
    %v936 = vpop.f32.mrb[0].mxu0
    %v937 = vpop.f32.mrb[0].mxu0
    %938 = vdwg.mxu0
    %939 = vmatprep.subr.bf16.mxu0 %v850
    %940 = vmatpush1.bf16.msra.mxu0 %v849
    %941 = vmatprep.subr.bf16.mxu0 %v854
    %942 = vmatpush1.bf16.msra.mxu0 %v853
    %943 = vmatprep.subr.bf16.mxu0 %v858
    %944 = vmatpush1.bf16.msra.mxu0 %v857
    %945 = vmatprep.subr.bf16.mxu0 %v862
    %946 = vmatpush1.bf16.msra.mxu0 %v861
    %947 = vmatprep.subr.bf16.mxu0 %v866
    %948 = vmatpush1.bf16.msra.mxu0 %v865
    %949 = vmatprep.subr.bf16.mxu0 %v870
    %950 = vmatpush1.bf16.msra.mxu0 %v869
    %951 = vmatprep.subr.bf16.mxu0 %v874
    %952 = vmatpush1.bf16.msra.mxu0 %v873
    %953 = vmatprep.subr.bf16.mxu0 %v878
    %954 = vmatpush1.bf16.msra.mxu0 %v877
    %955 = vmatprep.subr.bf16.mxu0 %v882
    %956 = vmatpush1.bf16.msra.mxu0 %v881
    %957 = vmatprep.subr.bf16.mxu0 0
    %958 = vmatpush1.bf16.msra.mxu0 0
    %959 = vmatprep.subr.bf16.mxu0 0
    %960 = vmatpush1.bf16.msra.mxu0 0
    %961 = vmatprep.subr.bf16.mxu0 0
    %962 = vmatpush1.bf16.msra.mxu0 0
    %963 = vmatprep.subr.bf16.mxu0 0
    %964 = vmatpush1.bf16.msra.mxu0 0
    %965 = vmatprep.subr.bf16.mxu0 0
    %966 = vmatpush1.bf16.msra.mxu0 0
    %967 = vmatprep.subr.bf16.mxu0 0
    %968 = vmatpush1.bf16.msra.mxu0 0
    %969 = vmatprep.subr.bf16.mxu0 0
    %970 = vmatpush1.bf16.msra.mxu0 0
    %971 = vmatprep.mubr.bf16.mxu0 %v896
    %972 = vmatmul.mubr.bf16.gmra.mrb[0].mxu0 %v892
    %v973 = vpop.f32.mrb[0].mxu0
    %v974 = vadd.f32 %v887, %v973
    %v975 = vpop.f32.mrb[0].mxu0
    %v976 = vadd.f32 %v887, %v975
    %v977 = vpop.f32.mrb[0].mxu0
    %v978 = vpop.f32.mrb[0].mxu0
    %979 = vdwg.mxu0
    %v980 = vmax.f32 %v933, 0.0
    %v981 = vmax.f32 %v935, 0.0
    %v982 = vmax.f32 %v974, 0.0
    %v983 = vmax.f32 %v976, 0.0
    %984 = vst [vmem:[#allocation2 + $0x8] sm:$0xff] %v980
    %985 = vst [vmem:[#allocation2 + $0x10] sm:$0xff] %v981
    %986 = vst [vmem:[#allocation2 + $0x18] sm:$0xff] %v982
    %987 = vst [vmem:[#allocation2 + $0x20] sm:$0xff] %v983
    %v988 = vld [vmem:[#allocation2] sm:$0xff]
    %v989 = vld [vmem:[#allocation2 + $0x8] sm:$0xff]
    %v990 = vld [vmem:[#allocation2 + $0x10] sm:$0xff]
    %v991 = vld [vmem:[#allocation2 + $0x18] sm:$0xff]
    %v992 = vld [vmem:[#allocation2 + $0x20] sm:$0xff]
    %v993 = vld [vmem:[%s1] ss:$8 sm:$0xf]
    %v995 = vlaneseq
    %v996 = vshrl.u32 %v995, 7
    %v997 = vsub.s32 0, %v996
    %v998 = vrot.slane %v993, %v997
    %v999 = vlaneseq
    %v1000 = vshrl.u32 %v999, 7
    %v1001 = vsub.s32 1, %v1000
    %v1002 = vrot.slane %v993, %v1001
    %v1003 = vlaneseq
    %v1004 = vshrl.u32 %v1003, 7
    %v1005 = vsub.s32 2, %v1004
    %v1006 = vrot.slane %v993, %v1005
    %v1007 = vlaneseq
    %v1008 = vshrl.u32 %v1007, 7
    %v1009 = vsub.s32 3, %v1008
    %v1010 = vrot.slane %v993, %v1009
    %1011 = vrot.lane.b32.xlu0 %v998, 111
    %v1012 = vpop.permute.xlu0 %1011
    %1013 = vrot.lane.b32.xlu0 %v1002, 111
    %v1014 = vpop.permute.xlu0 %1013
    %1015 = vrot.lane.b32.xlu0 %v1006, 111
    %v1016 = vpop.permute.xlu0 %1015
    %1017 = vrot.lane.b32.xlu0 %v1010, 111
    %v1018 = vpop.permute.xlu0 %1017
    %v1019 = vsel %vm132, %v1012, %v1014
    %v1020 = vsel %vm132, %v1014, %v1016
    %v1021 = vsel %vm132, %v1016, %v1018
    %v1027 = vmul.f32 %v988, %v1012
    %v1028 = vmul.f32 %v989, %v1019
    %v1029 = vmul.f32 %v990, %v1020
    %v1030 = vmul.f32 %v991, %v1021
    %v1031 = vmul.f32 %v992, %v1018
    %v1032 = vpack.c.bf16 %v1027, %v1027
    %v1033 = vpack.c.bf16 %v1028, %v1028
    %v1034 = vpack.c.bf16 %v1029, %v1029
    %v1035 = vpack.c.bf16 %v1030, %v1030
    %v1036 = vpack.c.bf16 %v1031, %v1031
    %1042 = vrot.lane.b32.xlu0 %v1032, 17
    %v1043 = vpop.permute.xlu0 %1042
    %1044 = vrot.lane.b32.xlu0 %v1033, 17
    %v1045 = vpop.permute.xlu0 %1044
    %1046 = vrot.lane.b32.xlu0 %v1034, 17
    %v1047 = vpop.permute.xlu0 %1046
    %1048 = vrot.lane.b32.xlu0 %v1035, 17
    %v1049 = vpop.permute.xlu0 %1048
    %1050 = vrot.lane.b32.xlu0 %v1036, 17
    %v1051 = vpop.permute.xlu0 %1050
    %v1052 = vsel %vm166, %v1043, %v1045
    %v1053 = vsel %vm166, %v1045, %v1047
    %v1054 = vsel %vm166, %v1047, %v1049
    %v1055 = vsel %vm166, %v1049, %v1051
    %1060 = vst [vmem:[#allocation3] sm:$0xf] %v1052
    %1061 = vst [vmem:[#allocation3 + $0x8] sm:$0xf] %v1053
    %1062 = vst [vmem:[#allocation3 + $0x10] sm:$0xf] %v1054
    %1063 = vst [vmem:[#allocation3 + $0x18] sm:$0xf] %v1055
    %v1064 = vld [vmem:[#allocation2] sm:$0xff]
    %v1065 = vld [vmem:[#allocation2 + $0x8] sm:$0xff]
    %v1066 = vld [vmem:[#allocation2 + $0x10] sm:$0xff]
    %v1067 = vld [vmem:[#allocation2 + $0x18] sm:$0xff]
    %v1068 = vld [vmem:[#allocation2 + $0x20] sm:$0xff]
    %v1069 = vld [vmem:[%s195] ss:$8 sm:$0xf]
    %v1071 = vlaneseq
    %v1072 = vshrl.u32 %v1071, 7
    %v1073 = vsub.s32 0, %v1072
    %v1074 = vrot.slane %v1069, %v1073
    %v1075 = vlaneseq
    %v1076 = vshrl.u32 %v1075, 7
    %v1077 = vsub.s32 1, %v1076
    %v1078 = vrot.slane %v1069, %v1077
    %v1079 = vlaneseq
    %v1080 = vshrl.u32 %v1079, 7
    %v1081 = vsub.s32 2, %v1080
    %v1082 = vrot.slane %v1069, %v1081
    %v1083 = vlaneseq
    %v1084 = vshrl.u32 %v1083, 7
    %v1085 = vsub.s32 3, %v1084
    %v1086 = vrot.slane %v1069, %v1085
    %1087 = vrot.lane.b32.xlu0 %v1074, 112
    %v1088 = vpop.permute.xlu0 %1087
    %1089 = vrot.lane.b32.xlu0 %v1078, 112
    %v1090 = vpop.permute.xlu0 %1089
    %1091 = vrot.lane.b32.xlu0 %v1082, 112
    %v1092 = vpop.permute.xlu0 %1091
    %1093 = vrot.lane.b32.xlu0 %v1086, 112
    %v1094 = vpop.permute.xlu0 %1093
    %v1095 = vsel %vm222, %v1088, %v1090
    %v1096 = vsel %vm222, %v1090, %v1092
    %v1097 = vsel %vm222, %v1092, %v1094
    %v1103 = vmul.f32 %v1064, %v1088
    %v1104 = vmul.f32 %v1065, %v1095
    %v1105 = vmul.f32 %v1066, %v1096
    %v1106 = vmul.f32 %v1067, %v1097
    %v1107 = vmul.f32 %v1068, %v1094
    %v1108 = vpack.c.bf16 %v1103, %v1103
    %v1109 = vpack.c.bf16 %v1104, %v1104
    %v1110 = vpack.c.bf16 %v1105, %v1105
    %v1111 = vpack.c.bf16 %v1106, %v1106
    %v1112 = vpack.c.bf16 %v1107, %v1107
    %1118 = vrot.lane.b32.xlu0 %v1108, 16
    %v1119 = vpop.permute.xlu0 %1118
    %1120 = vrot.lane.b32.xlu0 %v1109, 16
    %v1121 = vpop.permute.xlu0 %1120
    %1122 = vrot.lane.b32.xlu0 %v1110, 16
    %v1123 = vpop.permute.xlu0 %1122
    %1124 = vrot.lane.b32.xlu0 %v1111, 16
    %v1125 = vpop.permute.xlu0 %1124
    %1126 = vrot.lane.b32.xlu0 %v1112, 16
    %v1127 = vpop.permute.xlu0 %1126
    %v1128 = vsel %vm256, %v1119, %v1121
    %v1129 = vsel %vm256, %v1121, %v1123
    %v1130 = vsel %vm256, %v1123, %v1125
    %v1131 = vsel %vm256, %v1125, %v1127
    %1136 = vst [vmem:[#allocation3 + $0x20] sm:$0xf] %v1128
    %1137 = vst [vmem:[#allocation3 + $0x28] sm:$0xf] %v1129
    %1138 = vst [vmem:[#allocation3 + $0x30] sm:$0xf] %v1130
    %1139 = vst [vmem:[#allocation3 + $0x38] sm:$0xf] %v1131
    %v1140 = vld [vmem:[#allocation2] sm:$0xff]
    %v1141 = vld [vmem:[#allocation2 + $0x8] sm:$0xff]
    %v1142 = vld [vmem:[#allocation2 + $0x10] sm:$0xff]
    %v1143 = vld [vmem:[#allocation2 + $0x18] sm:$0xff]
    %v1144 = vld [vmem:[#allocation2 + $0x20] sm:$0xff]
    %v1145 = vld [vmem:[%s282] ss:$8 sm:$0xf]
    %v1147 = vlaneseq
    %v1148 = vshrl.u32 %v1147, 7
    %v1149 = vsub.s32 0, %v1148
    %v1150 = vrot.slane %v1145, %v1149
    %v1151 = vlaneseq
    %v1152 = vshrl.u32 %v1151, 7
    %v1153 = vsub.s32 1, %v1152
    %v1154 = vrot.slane %v1145, %v1153
    %v1155 = vlaneseq
    %v1156 = vshrl.u32 %v1155, 7
    %v1157 = vsub.s32 2, %v1156
    %v1158 = vrot.slane %v1145, %v1157
    %v1159 = vlaneseq
    %v1160 = vshrl.u32 %v1159, 7
    %v1161 = vsub.s32 3, %v1160
    %v1162 = vrot.slane %v1145, %v1161
    %1163 = vrot.lane.b32.xlu0 %v1150, 113
    %v1164 = vpop.permute.xlu0 %1163
    %1165 = vrot.lane.b32.xlu0 %v1154, 113
    %v1166 = vpop.permute.xlu0 %1165
    %1167 = vrot.lane.b32.xlu0 %v1158, 113
    %v1168 = vpop.permute.xlu0 %1167
    %1169 = vrot.lane.b32.xlu0 %v1162, 113
    %v1170 = vpop.permute.xlu0 %1169
    %v1171 = vsel %vm309, %v1164, %v1166
    %v1172 = vsel %vm309, %v1166, %v1168
    %v1173 = vsel %vm309, %v1168, %v1170
    %v1179 = vmul.f32 %v1140, %v1164
    %v1180 = vmul.f32 %v1141, %v1171
    %v1181 = vmul.f32 %v1142, %v1172
    %v1182 = vmul.f32 %v1143, %v1173
    %v1183 = vmul.f32 %v1144, %v1170
    %v1184 = vpack.c.bf16 %v1179, %v1179
    %v1185 = vpack.c.bf16 %v1180, %v1180
    %v1186 = vpack.c.bf16 %v1181, %v1181
    %v1187 = vpack.c.bf16 %v1182, %v1182
    %v1188 = vpack.c.bf16 %v1183, %v1183
    %1194 = vrot.lane.b32.xlu0 %v1184, 15
    %v1195 = vpop.permute.xlu0 %1194
    %1196 = vrot.lane.b32.xlu0 %v1185, 15
    %v1197 = vpop.permute.xlu0 %1196
    %1198 = vrot.lane.b32.xlu0 %v1186, 15
    %v1199 = vpop.permute.xlu0 %1198
    %1200 = vrot.lane.b32.xlu0 %v1187, 15
    %v1201 = vpop.permute.xlu0 %1200
    %1202 = vrot.lane.b32.xlu0 %v1188, 15
    %v1203 = vpop.permute.xlu0 %1202
    %v1204 = vsel %vm343, %v1195, %v1197
    %v1205 = vsel %vm343, %v1197, %v1199
    %v1206 = vsel %vm343, %v1199, %v1201
    %v1207 = vsel %vm343, %v1201, %v1203
    %1212 = vst [vmem:[#allocation3 + $0x40] sm:$0xf] %v1204
    %1213 = vst [vmem:[#allocation3 + $0x48] sm:$0xf] %v1205
    %1214 = vst [vmem:[#allocation3 + $0x50] sm:$0xf] %v1206
    %1215 = vst [vmem:[#allocation3 + $0x58] sm:$0xf] %v1207
    %v1216 = vld [vmem:[#allocation2] sm:$0xff]
    %v1217 = vld [vmem:[#allocation2 + $0x8] sm:$0xff]
    %v1218 = vld [vmem:[#allocation2 + $0x10] sm:$0xff]
    %v1219 = vld [vmem:[#allocation2 + $0x18] sm:$0xff]
    %v1220 = vld [vmem:[#allocation2 + $0x20] sm:$0xff]
    %v1221 = vld [vmem:[%s369] ss:$8 sm:$0xf]
    %v1223 = vlaneseq
    %v1224 = vshrl.u32 %v1223, 7
    %v1225 = vsub.s32 0, %v1224
    %v1226 = vrot.slane %v1221, %v1225
    %v1227 = vlaneseq
    %v1228 = vshrl.u32 %v1227, 7
    %v1229 = vsub.s32 1, %v1228
    %v1230 = vrot.slane %v1221, %v1229
    %v1231 = vlaneseq
    %v1232 = vshrl.u32 %v1231, 7
    %v1233 = vsub.s32 2, %v1232
    %v1234 = vrot.slane %v1221, %v1233
    %v1235 = vlaneseq
    %v1236 = vshrl.u32 %v1235, 7
    %v1237 = vsub.s32 3, %v1236
    %v1238 = vrot.slane %v1221, %v1237
    %1239 = vrot.lane.b32.xlu0 %v1226, 127
    %v1240 = vpop.permute.xlu0 %1239
    %1241 = vrot.lane.b32.xlu0 %v1230, 127
    %v1242 = vpop.permute.xlu0 %1241
    %1243 = vrot.lane.b32.xlu0 %v1234, 127
    %v1244 = vpop.permute.xlu0 %1243
    %1245 = vrot.lane.b32.xlu0 %v1238, 127
    %v1246 = vpop.permute.xlu0 %1245
    %v1247 = vsel %vm396, %v1240, %v1242
    %v1248 = vsel %vm396, %v1242, %v1244
    %v1249 = vsel %vm396, %v1244, %v1246
    %v1255 = vmul.f32 %v1216, %v1240
    %v1256 = vmul.f32 %v1217, %v1247
    %v1257 = vmul.f32 %v1218, %v1248
    %v1258 = vmul.f32 %v1219, %v1249
    %v1259 = vmul.f32 %v1220, %v1246
    %v1260 = vpack.c.bf16 %v1255, %v1255
    %v1261 = vpack.c.bf16 %v1256, %v1256
    %v1262 = vpack.c.bf16 %v1257, %v1257
    %v1263 = vpack.c.bf16 %v1258, %v1258
    %v1264 = vpack.c.bf16 %v1259, %v1259
    %1270 = vrot.lane.b32.xlu0 %v1260, 1
    %v1271 = vpop.permute.xlu0 %1270
    %1272 = vrot.lane.b32.xlu0 %v1261, 1
    %v1273 = vpop.permute.xlu0 %1272
    %1274 = vrot.lane.b32.xlu0 %v1262, 1
    %v1275 = vpop.permute.xlu0 %1274
    %1276 = vrot.lane.b32.xlu0 %v1263, 1
    %v1277 = vpop.permute.xlu0 %1276
    %1278 = vrot.lane.b32.xlu0 %v1264, 1
    %v1279 = vpop.permute.xlu0 %1278
    %v1280 = vsel %vm430, %v1271, %v1273
    %v1281 = vsel %vm430, %v1273, %v1275
    %v1282 = vsel %vm430, %v1275, %v1277
    %v1283 = vsel %vm430, %v1277, %v1279
    %1288 = vst [vmem:[#allocation3 + $0x60] sm:$0xf] %v1280
    %1289 = vst [vmem:[#allocation3 + $0x68] sm:$0xf] %v1281
    %1290 = vst [vmem:[#allocation3 + $0x70] sm:$0xf] %v1282
    %1291 = vst [vmem:[#allocation3 + $0x78] sm:$0xf] %v1283
    %v1292 = vld [vmem:[#allocation2 + $0x8] sm:$0xff]
    %v1293 = vld [vmem:[#allocation2 + $0x10] sm:$0xff]
    %v1294 = vld [vmem:[#allocation2 + $0x18] sm:$0xff]
    %v1295 = vld [vmem:[#allocation2 + $0x20] sm:$0xff]
    %v1296 = vld [vmem:[%s455] ss:$8 sm:$0xf]
    %v1298 = vlaneseq
    %v1299 = vshrl.u32 %v1298, 7
    %v1300 = vsub.s32 0, %v1299
    %v1301 = vrot.slane %v1296, %v1300
    %v1302 = vlaneseq
    %v1303 = vshrl.u32 %v1302, 7
    %v1304 = vsub.s32 1, %v1303
    %v1305 = vrot.slane %v1296, %v1304
    %v1306 = vlaneseq
    %v1307 = vshrl.u32 %v1306, 7
    %v1308 = vsub.s32 2, %v1307
    %v1309 = vrot.slane %v1296, %v1308
    %v1310 = vlaneseq
    %v1311 = vshrl.u32 %v1310, 7
    %v1312 = vsub.s32 3, %v1311
    %v1313 = vrot.slane %v1296, %v1312
    %v1318 = vmul.f32 %v1292, %v1301
    %v1319 = vmul.f32 %v1293, %v1305
    %v1320 = vmul.f32 %v1294, %v1309
    %v1321 = vmul.f32 %v1295, %v1313
    %v1322 = vpack.c.bf16 %v1318, %v1318
    %v1323 = vpack.c.bf16 %v1319, %v1319
    %v1324 = vpack.c.bf16 %v1320, %v1320
    %v1325 = vpack.c.bf16 %v1321, %v1321
    %1326 = vst [vmem:[#allocation3 + $0x80] sm:$0xf] %v1322
    %1327 = vst [vmem:[#allocation3 + $0x88] sm:$0xf] %v1323
    %1328 = vst [vmem:[#allocation3 + $0x90] sm:$0xf] %v1324
    %1329 = vst [vmem:[#allocation3 + $0x98] sm:$0xf] %v1325
    %v1330 = vld [vmem:[#allocation2 + $0x8] sm:$0xff]
    %v1331 = vld [vmem:[#allocation2 + $0x10] sm:$0xff]
    %v1332 = vld [vmem:[#allocation2 + $0x18] sm:$0xff]
    %v1333 = vld [vmem:[#allocation2 + $0x20] sm:$0xff]
    %v1334 = vld [vmem:[#allocation2 + $0x28] sm:$0xff]
    %v1335 = vld [vmem:[%s503] ss:$8 sm:$0xf]
    %v1337 = vlaneseq
    %v1338 = vshrl.u32 %v1337, 7
    %v1339 = vsub.s32 0, %v1338
    %v1340 = vrot.slane %v1335, %v1339
    %v1341 = vlaneseq
    %v1342 = vshrl.u32 %v1341, 7
    %v1343 = vsub.s32 1, %v1342
    %v1344 = vrot.slane %v1335, %v1343
    %v1345 = vlaneseq
    %v1346 = vshrl.u32 %v1345, 7
    %v1347 = vsub.s32 2, %v1346
    %v1348 = vrot.slane %v1335, %v1347
    %v1349 = vlaneseq
    %v1350 = vshrl.u32 %v1349, 7
    %v1351 = vsub.s32 3, %v1350
    %v1352 = vrot.slane %v1335, %v1351
    %1353 = vrot.lane.b32.xlu0 %v1340, 1
    %v1354 = vpop.permute.xlu0 %1353
    %1355 = vrot.lane.b32.xlu0 %v1344, 1
    %v1356 = vpop.permute.xlu0 %1355
    %1357 = vrot.lane.b32.xlu0 %v1348, 1
    %v1358 = vpop.permute.xlu0 %1357
    %1359 = vrot.lane.b32.xlu0 %v1352, 1
    %v1360 = vpop.permute.xlu0 %1359
    %v1361 = vsel %vm530, %v1354, %v1356
    %v1362 = vsel %vm530, %v1356, %v1358
    %v1363 = vsel %vm530, %v1358, %v1360
    %v1369 = vmul.f32 %v1330, %v1354
    %v1370 = vmul.f32 %v1331, %v1361
    %v1371 = vmul.f32 %v1332, %v1362
    %v1372 = vmul.f32 %v1333, %v1363
    %v1373 = vmul.f32 %v1334, %v1360
    %v1374 = vpack.c.bf16 %v1369, %v1369
    %v1375 = vpack.c.bf16 %v1370, %v1370
    %v1376 = vpack.c.bf16 %v1371, %v1371
    %v1377 = vpack.c.bf16 %v1372, %v1372
    %v1378 = vpack.c.bf16 %v1373, %v1373
    %1384 = vrot.lane.b32.xlu0 %v1374, 127
    %v1385 = vpop.permute.xlu0 %1384
    %1386 = vrot.lane.b32.xlu0 %v1375, 127
    %v1387 = vpop.permute.xlu0 %1386
    %1388 = vrot.lane.b32.xlu0 %v1376, 127
    %v1389 = vpop.permute.xlu0 %1388
    %1390 = vrot.lane.b32.xlu0 %v1377, 127
    %v1391 = vpop.permute.xlu0 %1390
    %1392 = vrot.lane.b32.xlu0 %v1378, 127
    %v1393 = vpop.permute.xlu0 %1392
    %v1394 = vsel %vm564, %v1385, %v1387
    %v1395 = vsel %vm564, %v1387, %v1389
    %v1396 = vsel %vm564, %v1389, %v1391
    %v1397 = vsel %vm564, %v1391, %v1393
    %1402 = vst [vmem:[#allocation3 + $0xa0] sm:$0xf] %v1394
    %1403 = vst [vmem:[#allocation3 + $0xa8] sm:$0xf] %v1395
    %1404 = vst [vmem:[#allocation3 + $0xb0] sm:$0xf] %v1396
    %1405 = vst [vmem:[#allocation3 + $0xb8] sm:$0xf] %v1397
    %v1406 = vld [vmem:[#allocation2 + $0x8] sm:$0xff]
    %v1407 = vld [vmem:[#allocation2 + $0x10] sm:$0xff]
    %v1408 = vld [vmem:[#allocation2 + $0x18] sm:$0xff]
    %v1409 = vld [vmem:[#allocation2 + $0x20] sm:$0xff]
    %v1410 = vld [vmem:[#allocation2 + $0x28] sm:$0xff]
    %v1411 = vld [vmem:[%s590] ss:$8 sm:$0xf]
    %v1413 = vlaneseq
    %v1414 = vshrl.u32 %v1413, 7
    %v1415 = vsub.s32 0, %v1414
    %v1416 = vrot.slane %v1411, %v1415
    %v1417 = vlaneseq
    %v1418 = vshrl.u32 %v1417, 7
    %v1419 = vsub.s32 1, %v1418
    %v1420 = vrot.slane %v1411, %v1419
    %v1421 = vlaneseq
    %v1422 = vshrl.u32 %v1421, 7
    %v1423 = vsub.s32 2, %v1422
    %v1424 = vrot.slane %v1411, %v1423
    %v1425 = vlaneseq
    %v1426 = vshrl.u32 %v1425, 7
    %v1427 = vsub.s32 3, %v1426
    %v1428 = vrot.slane %v1411, %v1427
    %1429 = vrot.lane.b32.xlu0 %v1416, 15
    %v1430 = vpop.permute.xlu0 %1429
    %1431 = vrot.lane.b32.xlu0 %v1420, 15
    %v1432 = vpop.permute.xlu0 %1431
    %1433 = vrot.lane.b32.xlu0 %v1424, 15
    %v1434 = vpop.permute.xlu0 %1433
    %1435 = vrot.lane.b32.xlu0 %v1428, 15
    %v1436 = vpop.permute.xlu0 %1435
    %v1437 = vsel %vm617, %v1430, %v1432
    %v1438 = vsel %vm617, %v1432, %v1434
    %v1439 = vsel %vm617, %v1434, %v1436
    %v1445 = vmul.f32 %v1406, %v1430
    %v1446 = vmul.f32 %v1407, %v1437
    %v1447 = vmul.f32 %v1408, %v1438
    %v1448 = vmul.f32 %v1409, %v1439
    %v1449 = vmul.f32 %v1410, %v1436
    %v1450 = vpack.c.bf16 %v1445, %v1445
    %v1451 = vpack.c.bf16 %v1446, %v1446
    %v1452 = vpack.c.bf16 %v1447, %v1447
    %v1453 = vpack.c.bf16 %v1448, %v1448
    %v1454 = vpack.c.bf16 %v1449, %v1449
    %1460 = vrot.lane.b32.xlu0 %v1450, 113
    %v1461 = vpop.permute.xlu0 %1460
    %1462 = vrot.lane.b32.xlu0 %v1451, 113
    %v1463 = vpop.permute.xlu0 %1462
    %1464 = vrot.lane.b32.xlu0 %v1452, 113
    %v1465 = vpop.permute.xlu0 %1464
    %1466 = vrot.lane.b32.xlu0 %v1453, 113
    %v1467 = vpop.permute.xlu0 %1466
    %1468 = vrot.lane.b32.xlu0 %v1454, 113
    %v1469 = vpop.permute.xlu0 %1468
    %v1470 = vsel %vm651, %v1461, %v1463
    %v1471 = vsel %vm651, %v1463, %v1465
    %v1472 = vsel %vm651, %v1465, %v1467
    %v1473 = vsel %vm651, %v1467, %v1469
    %1478 = vst [vmem:[#allocation3 + $0xc0] sm:$0xf] %v1470
    %1479 = vst [vmem:[#allocation3 + $0xc8] sm:$0xf] %v1471
    %1480 = vst [vmem:[#allocation3 + $0xd0] sm:$0xf] %v1472
    %1481 = vst [vmem:[#allocation3 + $0xd8] sm:$0xf] %v1473
    %v1482 = vld [vmem:[#allocation2 + $0x8] sm:$0xff]
    %v1483 = vld [vmem:[#allocation2 + $0x10] sm:$0xff]
    %v1484 = vld [vmem:[#allocation2 + $0x18] sm:$0xff]
    %v1485 = vld [vmem:[#allocation2 + $0x20] sm:$0xff]
    %v1486 = vld [vmem:[#allocation2 + $0x28] sm:$0xff]
    %v1487 = vld [vmem:[%s677] ss:$8 sm:$0xf]
    %v1489 = vlaneseq
    %v1490 = vshrl.u32 %v1489, 7
    %v1491 = vsub.s32 0, %v1490
    %v1492 = vrot.slane %v1487, %v1491
    %v1493 = vlaneseq
    %v1494 = vshrl.u32 %v1493, 7
    %v1495 = vsub.s32 1, %v1494
    %v1496 = vrot.slane %v1487, %v1495
    %v1497 = vlaneseq
    %v1498 = vshrl.u32 %v1497, 7
    %v1499 = vsub.s32 2, %v1498
    %v1500 = vrot.slane %v1487, %v1499
    %v1501 = vlaneseq
    %v1502 = vshrl.u32 %v1501, 7
    %v1503 = vsub.s32 3, %v1502
    %v1504 = vrot.slane %v1487, %v1503
    %1505 = vrot.lane.b32.xlu0 %v1492, 16
    %v1506 = vpop.permute.xlu0 %1505
    %1507 = vrot.lane.b32.xlu0 %v1496, 16
    %v1508 = vpop.permute.xlu0 %1507
    %1509 = vrot.lane.b32.xlu0 %v1500, 16
    %v1510 = vpop.permute.xlu0 %1509
    %1511 = vrot.lane.b32.xlu0 %v1504, 16
    %v1512 = vpop.permute.xlu0 %1511
    %v1513 = vsel %vm704, %v1506, %v1508
    %v1514 = vsel %vm704, %v1508, %v1510
    %v1515 = vsel %vm704, %v1510, %v1512
    %v1521 = vmul.f32 %v1482, %v1506
    %v1522 = vmul.f32 %v1483, %v1513
    %v1523 = vmul.f32 %v1484, %v1514
    %v1524 = vmul.f32 %v1485, %v1515
    %v1525 = vmul.f32 %v1486, %v1512
    %v1526 = vpack.c.bf16 %v1521, %v1521
    %v1527 = vpack.c.bf16 %v1522, %v1522
    %v1528 = vpack.c.bf16 %v1523, %v1523
    %v1529 = vpack.c.bf16 %v1524, %v1524
    %v1530 = vpack.c.bf16 %v1525, %v1525
    %1536 = vrot.lane.b32.xlu0 %v1526, 112
    %v1537 = vpop.permute.xlu0 %1536
    %1538 = vrot.lane.b32.xlu0 %v1527, 112
    %v1539 = vpop.permute.xlu0 %1538
    %1540 = vrot.lane.b32.xlu0 %v1528, 112
    %v1541 = vpop.permute.xlu0 %1540
    %1542 = vrot.lane.b32.xlu0 %v1529, 112
    %v1543 = vpop.permute.xlu0 %1542
    %1544 = vrot.lane.b32.xlu0 %v1530, 112
    %v1545 = vpop.permute.xlu0 %1544
    %v1546 = vsel %vm738, %v1537, %v1539
    %v1547 = vsel %vm738, %v1539, %v1541
    %v1548 = vsel %vm738, %v1541, %v1543
    %v1549 = vsel %vm738, %v1543, %v1545
    %1554 = vst [vmem:[#allocation3 + $0xe0] sm:$0xf] %v1546
    %1555 = vst [vmem:[#allocation3 + $0xe8] sm:$0xf] %v1547
    %1556 = vst [vmem:[#allocation3 + $0xf0] sm:$0xf] %v1548
    %1557 = vst [vmem:[#allocation3 + $0xf8] sm:$0xf] %v1549
    %v1558 = vld [vmem:[#allocation2 + $0x8] sm:$0xff]
    %v1559 = vld [vmem:[#allocation2 + $0x10] sm:$0xff]
    %v1560 = vld [vmem:[#allocation2 + $0x18] sm:$0xff]
    %v1561 = vld [vmem:[#allocation2 + $0x20] sm:$0xff]
    %v1562 = vld [vmem:[#allocation2 + $0x28] sm:$0xff]
    %v1563 = vld [vmem:[%s764] ss:$8 sm:$0xf]
    %v1565 = vlaneseq
    %v1566 = vshrl.u32 %v1565, 7
    %v1567 = vsub.s32 0, %v1566
    %v1568 = vrot.slane %v1563, %v1567
    %v1569 = vlaneseq
    %v1570 = vshrl.u32 %v1569, 7
    %v1571 = vsub.s32 1, %v1570
    %v1572 = vrot.slane %v1563, %v1571
    %v1573 = vlaneseq
    %v1574 = vshrl.u32 %v1573, 7
    %v1575 = vsub.s32 2, %v1574
    %v1576 = vrot.slane %v1563, %v1575
    %v1577 = vlaneseq
    %v1578 = vshrl.u32 %v1577, 7
    %v1579 = vsub.s32 3, %v1578
    %v1580 = vrot.slane %v1563, %v1579
    %1581 = vrot.lane.b32.xlu0 %v1568, 17
    %v1582 = vpop.permute.xlu0 %1581
    %1583 = vrot.lane.b32.xlu0 %v1572, 17
    %v1584 = vpop.permute.xlu0 %1583
    %1585 = vrot.lane.b32.xlu0 %v1576, 17
    %v1586 = vpop.permute.xlu0 %1585
    %1587 = vrot.lane.b32.xlu0 %v1580, 17
    %v1588 = vpop.permute.xlu0 %1587
    %v1589 = vsel %vm791, %v1582, %v1584
    %v1590 = vsel %vm791, %v1584, %v1586
    %v1591 = vsel %vm791, %v1586, %v1588
    %v1597 = vmul.f32 %v1558, %v1582
    %v1598 = vmul.f32 %v1559, %v1589
    %v1599 = vmul.f32 %v1560, %v1590
    %v1600 = vmul.f32 %v1561, %v1591
    %v1601 = vmul.f32 %v1562, %v1588
    %v1602 = vpack.c.bf16 %v1597, %v1597
    %v1603 = vpack.c.bf16 %v1598, %v1598
    %v1604 = vpack.c.bf16 %v1599, %v1599
    %v1605 = vpack.c.bf16 %v1600, %v1600
    %v1606 = vpack.c.bf16 %v1601, %v1601
    %1612 = vrot.lane.b32.xlu0 %v1602, 111
    %v1613 = vpop.permute.xlu0 %1612
    %1614 = vrot.lane.b32.xlu0 %v1603, 111
    %v1615 = vpop.permute.xlu0 %1614
    %1616 = vrot.lane.b32.xlu0 %v1604, 111
    %v1617 = vpop.permute.xlu0 %1616
    %1618 = vrot.lane.b32.xlu0 %v1605, 111
    %v1619 = vpop.permute.xlu0 %1618
    %1620 = vrot.lane.b32.xlu0 %v1606, 111
    %v1621 = vpop.permute.xlu0 %1620
    %v1622 = vsel %vm825, %v1613, %v1615
    %v1623 = vsel %vm825, %v1615, %v1617
    %v1624 = vsel %vm825, %v1617, %v1619
    %v1625 = vsel %vm825, %v1619, %v1621
    %1630 = vst [vmem:[#allocation3 + $0x100] sm:$0xf] %v1622
    %1631 = vst [vmem:[#allocation3 + $0x108] sm:$0xf] %v1623
    %1632 = vst [vmem:[#allocation3 + $0x110] sm:$0xf] %v1624
    %1633 = vst [vmem:[#allocation3 + $0x118] sm:$0xf] %v1625
    %v1634 = vld [vmem:[%s4] sm:$0xff]
    %v1635 = vld [vmem:[%s4 + $0x8] sm:$0xff]
    %v1636 = vld [vmem:[#allocation3] sm:$0xff]
    %v1637 = vld [vmem:[#allocation3 + $0x8] sm:$0xff]
    %v1638 = vld [vmem:[#allocation3 + $0x10] sm:$0xff]
    %v1639 = vld [vmem:[#allocation3 + $0x18] sm:$0xff]
    %v1640 = vld [vmem:[#allocation3 + $0x20] sm:$0xff]
    %v1641 = vld [vmem:[#allocation3 + $0x28] sm:$0xff]
    %v1642 = vld [vmem:[#allocation3 + $0x30] sm:$0xff]
    %v1643 = vld [vmem:[#allocation3 + $0x38] sm:$0xff]
    %v1644 = vld [vmem:[#allocation3 + $0x40] sm:$0xff]
    %v1645 = vld [vmem:[#allocation3 + $0x48] sm:$0xff]
    %v1646 = vld [vmem:[#allocation3 + $0x50] sm:$0xff]
    %v1647 = vld [vmem:[#allocation3 + $0x58] sm:$0xff]
    %v1648 = vld [vmem:[#allocation3 + $0x60] sm:$0xff]
    %v1649 = vld [vmem:[#allocation3 + $0x68] sm:$0xff]
    %v1650 = vld [vmem:[#allocation3 + $0x70] sm:$0xff]
    %v1651 = vld [vmem:[#allocation3 + $0x78] sm:$0xff]
    %v1652 = vld [vmem:[#allocation3 + $0x80] sm:$0xff]
    %v1653 = vld [vmem:[#allocation3 + $0x88] sm:$0xff]
    %v1654 = vld [vmem:[#allocation3 + $0x90] sm:$0xff]
    %v1655 = vld [vmem:[#allocation3 + $0x98] sm:$0xff]
    %v1656 = vld [vmem:[#allocation3 + $0xa0] sm:$0xff]
    %v1657 = vld [vmem:[#allocation3 + $0xa8] sm:$0xff]
    %v1658 = vld [vmem:[#allocation3 + $0xb0] sm:$0xff]
    %v1659 = vld [vmem:[#allocation3 + $0xb8] sm:$0xff]
    %v1660 = vld [vmem:[#allocation3 + $0xc0] sm:$0xff]
    %v1661 = vld [vmem:[#allocation3 + $0xc8] sm:$0xff]
    %v1662 = vld [vmem:[#allocation3 + $0xd0] sm:$0xff]
    %v1663 = vld [vmem:[#allocation3 + $0xd8] sm:$0xff]
    %v1664 = vld [vmem:[#allocation3 + $0xe0] sm:$0xff]
    %v1665 = vld [vmem:[#allocation3 + $0xe8] sm:$0xff]
    %v1666 = vld [vmem:[#allocation3 + $0xf0] sm:$0xff]
    %v1667 = vld [vmem:[#allocation3 + $0xf8] sm:$0xff]
    %v1668 = vld [vmem:[#allocation3 + $0x100] sm:$0xff]
    %v1669 = vld [vmem:[#allocation3 + $0x108] sm:$0xff]
    %v1670 = vld [vmem:[#allocation3 + $0x110] sm:$0xff]
    %v1671 = vld [vmem:[#allocation3 + $0x118] sm:$0xff]
    %v1672 = vld [vmem:[%s5] sm:$0xff]
    %v1673 = vld [vmem:[%s5 + $0x8] sm:$0xff]
    %1675 = vset.pattern.permute.xlu0 0
    %1676 = vperm.xlu0 %1675, %v1672
    %v1677 = vpop.permute.xlu0 %1676
    %1680 = vset.pattern.permute.xlu0 0
    %1681 = vperm.xlu0 %1680, %v1673
    %v1682 = vpop.permute.xlu0 %1681
    %v1686 = vunpack.c.l.b16 %v1634
    %v1687 = vunpack.c.h.b16 %v1634
    %v1688 = vunpack.c.l.b16 %v1635
    %v1689 = vunpack.c.h.b16 %v1635
    %v1690 = vpack.c.b16 %v1688, %v1686
    %v1691 = vpack.c.b16 %v1689, %v1687
    %v1694 = vsel %vm704, %v1691, 0
    %1696 = vmatprep.subr.bf16.mxu0 %v1637
    %1697 = vmatpush1.bf16.msra.mxu0 %v1636
    %1698 = vmatprep.subr.bf16.mxu0 %v1641
    %1699 = vmatpush1.bf16.msra.mxu0 %v1640
    %1700 = vmatprep.subr.bf16.mxu0 %v1645
    %1701 = vmatpush1.bf16.msra.mxu0 %v1644
    %1702 = vmatprep.subr.bf16.mxu0 %v1649
    %1703 = vmatpush1.bf16.msra.mxu0 %v1648
    %1704 = vmatprep.subr.bf16.mxu0 %v1653
    %1705 = vmatpush1.bf16.msra.mxu0 %v1652
    %1706 = vmatprep.subr.bf16.mxu0 %v1657
    %1707 = vmatpush1.bf16.msra.mxu0 %v1656
    %1708 = vmatprep.subr.bf16.mxu0 %v1661
    %1709 = vmatpush1.bf16.msra.mxu0 %v1660
    %1710 = vmatprep.subr.bf16.mxu0 %v1665
    %1711 = vmatpush1.bf16.msra.mxu0 %v1664
    %1712 = vmatprep.subr.bf16.mxu0 %v1669
    %1713 = vmatpush1.bf16.msra.mxu0 %v1668
    %1714 = vmatprep.subr.bf16.mxu0 0
    %1715 = vmatpush1.bf16.msra.mxu0 0
    %1716 = vmatprep.subr.bf16.mxu0 0
    %1717 = vmatpush1.bf16.msra.mxu0 0
    %1718 = vmatprep.subr.bf16.mxu0 0
    %1719 = vmatpush1.bf16.msra.mxu0 0
    %1720 = vmatprep.subr.bf16.mxu0 0
    %1721 = vmatpush1.bf16.msra.mxu0 0
    %1722 = vmatprep.subr.bf16.mxu0 0
    %1723 = vmatpush1.bf16.msra.mxu0 0
    %1724 = vmatprep.subr.bf16.mxu0 0
    %1725 = vmatpush1.bf16.msra.mxu0 0
    %1726 = vmatprep.subr.bf16.mxu0 0
    %1727 = vmatpush1.bf16.msra.mxu0 0
    %1728 = vmatprep.mubr.bf16.mxu0 %v1694
    %1729 = vmatmul.mubr.bf16.gmra.mrb[0].mxu0 %v1690
    %v1730 = vpop.f32.mrb[0].mxu0
    %v1731 = vadd.f32 %v1677, %v1730
    %v1732 = vpop.f32.mrb[0].mxu0
    %v1733 = vadd.f32 %v1677, %v1732
    %v1734 = vpop.f32.mrb[0].mxu0
    %v1735 = vadd.f32 %v1682, %v1734
    %v1736 = vpop.f32.mrb[0].mxu0
    %v1737 = vadd.f32 %v1682, %v1736
    %1738 = vdwg.mxu0
    %1739 = vmatprep.subr.bf16.mxu0 %v1639
    %1740 = vmatpush1.bf16.msra.mxu0 %v1638
    %1741 = vmatprep.subr.bf16.mxu0 %v1643
    %1742 = vmatpush1.bf16.msra.mxu0 %v1642
    %1743 = vmatprep.subr.bf16.mxu0 %v1647
    %1744 = vmatpush1.bf16.msra.mxu0 %v1646
    %1745 = vmatprep.subr.bf16.mxu0 %v1651
    %1746 = vmatpush1.bf16.msra.mxu0 %v1650
    %1747 = vmatprep.subr.bf16.mxu0 %v1655
    %1748 = vmatpush1.bf16.msra.mxu0 %v1654
    %1749 = vmatprep.subr.bf16.mxu0 %v1659
    %1750 = vmatpush1.bf16.msra.mxu0 %v1658
    %1751 = vmatprep.subr.bf16.mxu0 %v1663
    %1752 = vmatpush1.bf16.msra.mxu0 %v1662
    %1753 = vmatprep.subr.bf16.mxu0 %v1667
    %1754 = vmatpush1.bf16.msra.mxu0 %v1666
    %1755 = vmatprep.subr.bf16.mxu0 %v1671
    %1756 = vmatpush1.bf16.msra.mxu0 %v1670
    %1757 = vmatprep.subr.bf16.mxu0 0
    %1758 = vmatpush1.bf16.msra.mxu0 0
    %1759 = vmatprep.subr.bf16.mxu0 0
    %1760 = vmatpush1.bf16.msra.mxu0 0
    %1761 = vmatprep.subr.bf16.mxu0 0
    %1762 = vmatpush1.bf16.msra.mxu0 0
    %1763 = vmatprep.subr.bf16.mxu0 0
    %1764 = vmatpush1.bf16.msra.mxu0 0
    %1765 = vmatprep.subr.bf16.mxu0 0
    %1766 = vmatpush1.bf16.msra.mxu0 0
    %1767 = vmatprep.subr.bf16.mxu0 0
    %1768 = vmatpush1.bf16.msra.mxu0 0
    %1769 = vmatprep.subr.bf16.mxu0 0
    %1770 = vmatpush1.bf16.msra.mxu0 0
    %1771 = vmatprep.mubr.bf16.mxu0 %v1694
    %1772 = vmatmul.mubr.bf16.gmra.mrb[0].mxu0 %v1690
    %v1773 = vpop.f32.mrb[0].mxu0
    %v1774 = vadd.f32 %v1677, %v1773
    %v1775 = vpop.f32.mrb[0].mxu0
    %v1776 = vadd.f32 %v1677, %v1775
    %v1777 = vpop.f32.mrb[0].mxu0
    %v1778 = vadd.f32 %v1682, %v1777
    %v1779 = vpop.f32.mrb[0].mxu0
    %v1780 = vadd.f32 %v1682, %v1779
    %1781 = vdwg.mxu0
    %v1782 = vmax.f32 %v1731, 0.0
    %v1783 = vmax.f32 %v1733, 0.0
    %v1784 = vmax.f32 %v1774, 0.0
    %v1785 = vmax.f32 %v1776, 0.0
    %v1786 = vmax.f32 %v1735, 0.0
    %v1787 = vmax.f32 %v1737, 0.0
    %v1788 = vmax.f32 %v1778, 0.0
    %v1789 = vmax.f32 %v1780, 0.0
    %1790 = vst [vmem:[#allocation2 + $0x8] sm:$0xff] %v1782
    %1791 = vst [vmem:[#allocation2 + $0x10] sm:$0xff] %v1783
    %1792 = vst [vmem:[#allocation2 + $0x18] sm:$0xff] %v1784
    %1793 = vst [vmem:[#allocation2 + $0x20] sm:$0xff] %v1785
    %1794 = vst [vmem:[#allocation2 + $0x38] sm:$0xff] %v1786
    %1795 = vst [vmem:[#allocation2 + $0x40] sm:$0xff] %v1787
    %1796 = vst [vmem:[#allocation2 + $0x48] sm:$0xff] %v1788
    %1797 = vst [vmem:[#allocation2 + $0x50] sm:$0xff] %v1789
    %v1798 = vld [vmem:[#allocation2] sm:$0xff]
    %v1799 = vld [vmem:[#allocation2 + $0x8] sm:$0xff]
    %v1800 = vld [vmem:[#allocation2 + $0x10] sm:$0xff]
    %v1801 = vld [vmem:[#allocation2 + $0x18] sm:$0xff]
    %v1802 = vld [vmem:[#allocation2 + $0x20] sm:$0xff]
    %v1803 = vld [vmem:[#allocation2 + $0x30] sm:$0xff]
    %v1804 = vld [vmem:[#allocation2 + $0x38] sm:$0xff]
    %v1805 = vld [vmem:[#allocation2 + $0x40] sm:$0xff]
    %v1806 = vld [vmem:[#allocation2 + $0x48] sm:$0xff]
    %v1807 = vld [vmem:[#allocation2 + $0x50] sm:$0xff]
    %v1808 = vld [vmem:[%s1] ss:$8 sm:$0xf]
    %v1810 = vlaneseq
    %v1811 = vshrl.u32 %v1810, 7
    %v1812 = vsub.s32 0, %v1811
    %v1813 = vrot.slane %v1808, %v1812
    %v1814 = vlaneseq
    %v1815 = vshrl.u32 %v1814, 7
    %v1816 = vsub.s32 1, %v1815
    %v1817 = vrot.slane %v1808, %v1816
    %v1818 = vlaneseq
    %v1819 = vshrl.u32 %v1818, 7
    %v1820 = vsub.s32 2, %v1819
    %v1821 = vrot.slane %v1808, %v1820
    %v1822 = vlaneseq
    %v1823 = vshrl.u32 %v1822, 7
    %v1824 = vsub.s32 3, %v1823
    %v1825 = vrot.slane %v1808, %v1824
    %1826 = vrot.lane.b32.xlu0 %v1813, 111
    %v1827 = vpop.permute.xlu0 %1826
    %1828 = vrot.lane.b32.xlu0 %v1817, 111
    %v1829 = vpop.permute.xlu0 %1828
    %1830 = vrot.lane.b32.xlu0 %v1821, 111
    %v1831 = vpop.permute.xlu0 %1830
    %1832 = vrot.lane.b32.xlu0 %v1825, 111
    %v1833 = vpop.permute.xlu0 %1832
    %v1834 = vsel %vm132, %v1827, %v1829
    %v1835 = vsel %vm132, %v1829, %v1831
    %v1836 = vsel %vm132, %v1831, %v1833
    %v1842 = vmul.f32 %v1798, %v1827
    %v1843 = vmul.f32 %v1799, %v1834
    %v1844 = vmul.f32 %v1800, %v1835
    %v1845 = vmul.f32 %v1801, %v1836
    %v1846 = vmul.f32 %v1802, %v1833
    %v1847 = vmul.f32 %v1803, %v1827
    %v1848 = vmul.f32 %v1804, %v1834
    %v1849 = vmul.f32 %v1805, %v1835
    %v1850 = vmul.f32 %v1806, %v1836
    %v1851 = vmul.f32 %v1807, %v1833
    %v1852 = vpack.c.bf16 %v1847, %v1842
    %v1853 = vpack.c.bf16 %v1848, %v1843
    %v1854 = vpack.c.bf16 %v1849, %v1844
    %v1855 = vpack.c.bf16 %v1850, %v1845
    %v1856 = vpack.c.bf16 %v1851, %v1846
    %1862 = vrot.lane.b32.xlu0 %v1852, 17
    %v1863 = vpop.permute.xlu0 %1862
    %1864 = vrot.lane.b32.xlu0 %v1853, 17
    %v1865 = vpop.permute.xlu0 %1864
    %1866 = vrot.lane.b32.xlu0 %v1854, 17
    %v1867 = vpop.permute.xlu0 %1866
    %1868 = vrot.lane.b32.xlu0 %v1855, 17
    %v1869 = vpop.permute.xlu0 %1868
    %1870 = vrot.lane.b32.xlu0 %v1856, 17
    %v1871 = vpop.permute.xlu0 %1870
    %v1872 = vsel %vm166, %v1863, %v1865
    %v1873 = vsel %vm166, %v1865, %v1867
    %v1874 = vsel %vm166, %v1867, %v1869
    %v1875 = vsel %vm166, %v1869, %v1871
    %1880 = vst [vmem:[#allocation3] sm:$0xff] %v1872
    %1881 = vst [vmem:[#allocation3 + $0x8] sm:$0xff] %v1873
    %1882 = vst [vmem:[#allocation3 + $0x10] sm:$0xff] %v1874
    %1883 = vst [vmem:[#allocation3 + $0x18] sm:$0xff] %v1875
    %v1884 = vld [vmem:[#allocation2] sm:$0xff]
    %v1885 = vld [vmem:[#allocation2 + $0x8] sm:$0xff]
    %v1886 = vld [vmem:[#allocation2 + $0x10] sm:$0xff]
    %v1887 = vld [vmem:[#allocation2 + $0x18] sm:$0xff]
    %v1888 = vld [vmem:[#allocation2 + $0x20] sm:$0xff]
    %v1889 = vld [vmem:[#allocation2 + $0x30] sm:$0xff]
    %v1890 = vld [vmem:[#allocation2 + $0x38] sm:$0xff]
    %v1891 = vld [vmem:[#allocation2 + $0x40] sm:$0xff]
    %v1892 = vld [vmem:[#allocation2 + $0x48] sm:$0xff]
    %v1893 = vld [vmem:[#allocation2 + $0x50] sm:$0xff]
    %v1894 = vld [vmem:[%s195] ss:$8 sm:$0xf]
    %v1896 = vlaneseq
    %v1897 = vshrl.u32 %v1896, 7
    %v1898 = vsub.s32 0, %v1897
    %v1899 = vrot.slane %v1894, %v1898
    %v1900 = vlaneseq
    %v1901 = vshrl.u32 %v1900, 7
    %v1902 = vsub.s32 1, %v1901
    %v1903 = vrot.slane %v1894, %v1902
    %v1904 = vlaneseq
    %v1905 = vshrl.u32 %v1904, 7
    %v1906 = vsub.s32 2, %v1905
    %v1907 = vrot.slane %v1894, %v1906
    %v1908 = vlaneseq
    %v1909 = vshrl.u32 %v1908, 7
    %v1910 = vsub.s32 3, %v1909
    %v1911 = vrot.slane %v1894, %v1910
    %1912 = vrot.lane.b32.xlu0 %v1899, 112
    %v1913 = vpop.permute.xlu0 %1912
    %1914 = vrot.lane.b32.xlu0 %v1903, 112
    %v1915 = vpop.permute.xlu0 %1914
    %1916 = vrot.lane.b32.xlu0 %v1907, 112
    %v1917 = vpop.permute.xlu0 %1916
    %1918 = vrot.lane.b32.xlu0 %v1911, 112
    %v1919 = vpop.permute.xlu0 %1918
    %v1920 = vsel %vm222, %v1913, %v1915
    %v1921 = vsel %vm222, %v1915, %v1917
    %v1922 = vsel %vm222, %v1917, %v1919
    %v1928 = vmul.f32 %v1884, %v1913
    %v1929 = vmul.f32 %v1885, %v1920
    %v1930 = vmul.f32 %v1886, %v1921
    %v1931 = vmul.f32 %v1887, %v1922
    %v1932 = vmul.f32 %v1888, %v1919
    %v1933 = vmul.f32 %v1889, %v1913
    %v1934 = vmul.f32 %v1890, %v1920
    %v1935 = vmul.f32 %v1891, %v1921
    %v1936 = vmul.f32 %v1892, %v1922
    %v1937 = vmul.f32 %v1893, %v1919
    %v1938 = vpack.c.bf16 %v1933, %v1928
    %v1939 = vpack.c.bf16 %v1934, %v1929
    %v1940 = vpack.c.bf16 %v1935, %v1930
    %v1941 = vpack.c.bf16 %v1936, %v1931
    %v1942 = vpack.c.bf16 %v1937, %v1932
    %1948 = vrot.lane.b32.xlu0 %v1938, 16
    %v1949 = vpop.permute.xlu0 %1948
    %1950 = vrot.lane.b32.xlu0 %v1939, 16
    %v1951 = vpop.permute.xlu0 %1950
    %1952 = vrot.lane.b32.xlu0 %v1940, 16
    %v1953 = vpop.permute.xlu0 %1952
    %1954 = vrot.lane.b32.xlu0 %v1941, 16
    %v1955 = vpop.permute.xlu0 %1954
    %1956 = vrot.lane.b32.xlu0 %v1942, 16
    %v1957 = vpop.permute.xlu0 %1956
    %v1958 = vsel %vm256, %v1949, %v1951
    %v1959 = vsel %vm256, %v1951, %v1953
    %v1960 = vsel %vm256, %v1953, %v1955
    %v1961 = vsel %vm256, %v1955, %v1957
    %1966 = vst [vmem:[#allocation3 + $0x20] sm:$0xff] %v1958
    %1967 = vst [vmem:[#allocation3 + $0x28] sm:$0xff] %v1959
    %1968 = vst [vmem:[#allocation3 + $0x30] sm:$0xff] %v1960
    %1969 = vst [vmem:[#allocation3 + $0x38] sm:$0xff] %v1961
    %v1970 = vld [vmem:[#allocation2] sm:$0xff]
    %v1971 = vld [vmem:[#allocation2 + $0x8] sm:$0xff]
    %v1972 = vld [vmem:[#allocation2 + $0x10] sm:$0xff]
    %v1973 = vld [vmem:[#allocation2 + $0x18] sm:$0xff]
    %v1974 = vld [vmem:[#allocation2 + $0x20] sm:$0xff]
    %v1975 = vld [vmem:[#allocation2 + $0x30] sm:$0xff]
    %v1976 = vld [vmem:[#allocation2 + $0x38] sm:$0xff]
    %v1977 = vld [vmem:[#allocation2 + $0x40] sm:$0xff]
    %v1978 = vld [vmem:[#allocation2 + $0x48] sm:$0xff]
    %v1979 = vld [vmem:[#allocation2 + $0x50] sm:$0xff]
    %v1980 = vld [vmem:[%s282] ss:$8 sm:$0xf]
    %v1982 = vlaneseq
    %v1983 = vshrl.u32 %v1982, 7
    %v1984 = vsub.s32 0, %v1983
    %v1985 = vrot.slane %v1980, %v1984
    %v1986 = vlaneseq
    %v1987 = vshrl.u32 %v1986, 7
    %v1988 = vsub.s32 1, %v1987
    %v1989 = vrot.slane %v1980, %v1988
    %v1990 = vlaneseq
    %v1991 = vshrl.u32 %v1990, 7
    %v1992 = vsub.s32 2, %v1991
    %v1993 = vrot.slane %v1980, %v1992
    %v1994 = vlaneseq
    %v1995 = vshrl.u32 %v1994, 7
    %v1996 = vsub.s32 3, %v1995
    %v1997 = vrot.slane %v1980, %v1996
    %1998 = vrot.lane.b32.xlu0 %v1985, 113
    %v1999 = vpop.permute.xlu0 %1998
    %2000 = vrot.lane.b32.xlu0 %v1989, 113
    %v2001 = vpop.permute.xlu0 %2000
    %2002 = vrot.lane.b32.xlu0 %v1993, 113
    %v2003 = vpop.permute.xlu0 %2002
    %2004 = vrot.lane.b32.xlu0 %v1997, 113
    %v2005 = vpop.permute.xlu0 %2004
    %v2006 = vsel %vm309, %v1999, %v2001
    %v2007 = vsel %vm309, %v2001, %v2003
    %v2008 = vsel %vm309, %v2003, %v2005
    %v2014 = vmul.f32 %v1970, %v1999
    %v2015 = vmul.f32 %v1971, %v2006
    %v2016 = vmul.f32 %v1972, %v2007
    %v2017 = vmul.f32 %v1973, %v2008
    %v2018 = vmul.f32 %v1974, %v2005
    %v2019 = vmul.f32 %v1975, %v1999
    %v2020 = vmul.f32 %v1976, %v2006
    %v2021 = vmul.f32 %v1977, %v2007
    %v2022 = vmul.f32 %v1978, %v2008
    %v2023 = vmul.f32 %v1979, %v2005
    %v2024 = vpack.c.bf16 %v2019, %v2014
    %v2025 = vpack.c.bf16 %v2020, %v2015
    %v2026 = vpack.c.bf16 %v2021, %v2016
    %v2027 = vpack.c.bf16 %v2022, %v2017
    %v2028 = vpack.c.bf16 %v2023, %v2018
    %2034 = vrot.lane.b32.xlu0 %v2024, 15
    %v2035 = vpop.permute.xlu0 %2034
    %2036 = vrot.lane.b32.xlu0 %v2025, 15
    %v2037 = vpop.permute.xlu0 %2036
    %2038 = vrot.lane.b32.xlu0 %v2026, 15
    %v2039 = vpop.permute.xlu0 %2038
    %2040 = vrot.lane.b32.xlu0 %v2027, 15
    %v2041 = vpop.permute.xlu0 %2040
    %2042 = vrot.lane.b32.xlu0 %v2028, 15
    %v2043 = vpop.permute.xlu0 %2042
    %v2044 = vsel %vm343, %v2035, %v2037
    %v2045 = vsel %vm343, %v2037, %v2039
    %v2046 = vsel %vm343, %v2039, %v2041
    %v2047 = vsel %vm343, %v2041, %v2043
    %2052 = vst [vmem:[#allocation3 + $0x40] sm:$0xff] %v2044
    %2053 = vst [vmem:[#allocation3 + $0x48] sm:$0xff] %v2045
    %2054 = vst [vmem:[#allocation3 + $0x50] sm:$0xff] %v2046
    %2055 = vst [vmem:[#allocation3 + $0x58] sm:$0xff] %v2047
    %v2056 = vld [vmem:[#allocation2] sm:$0xff]
    %v2057 = vld [vmem:[#allocation2 + $0x8] sm:$0xff]
    %v2058 = vld [vmem:[#allocation2 + $0x10] sm:$0xff]
    %v2059 = vld [vmem:[#allocation2 + $0x18] sm:$0xff]
    %v2060 = vld [vmem:[#allocation2 + $0x20] sm:$0xff]
    %v2061 = vld [vmem:[#allocation2 + $0x30] sm:$0xff]
    %v2062 = vld [vmem:[#allocation2 + $0x38] sm:$0xff]
    %v2063 = vld [vmem:[#allocation2 + $0x40] sm:$0xff]
    %v2064 = vld [vmem:[#allocation2 + $0x48] sm:$0xff]
    %v2065 = vld [vmem:[#allocation2 + $0x50] sm:$0xff]
    %v2066 = vld [vmem:[%s369] ss:$8 sm:$0xf]
    %v2068 = vlaneseq
    %v2069 = vshrl.u32 %v2068, 7
    %v2070 = vsub.s32 0, %v2069
    %v2071 = vrot.slane %v2066, %v2070
    %v2072 = vlaneseq
    %v2073 = vshrl.u32 %v2072, 7
    %v2074 = vsub.s32 1, %v2073
    %v2075 = vrot.slane %v2066, %v2074
    %v2076 = vlaneseq
    %v2077 = vshrl.u32 %v2076, 7
    %v2078 = vsub.s32 2, %v2077
    %v2079 = vrot.slane %v2066, %v2078
    %v2080 = vlaneseq
    %v2081 = vshrl.u32 %v2080, 7
    %v2082 = vsub.s32 3, %v2081
    %v2083 = vrot.slane %v2066, %v2082
    %2084 = vrot.lane.b32.xlu0 %v2071, 127
    %v2085 = vpop.permute.xlu0 %2084
    %2086 = vrot.lane.b32.xlu0 %v2075, 127
    %v2087 = vpop.permute.xlu0 %2086
    %2088 = vrot.lane.b32.xlu0 %v2079, 127
    %v2089 = vpop.permute.xlu0 %2088
    %2090 = vrot.lane.b32.xlu0 %v2083, 127
    %v2091 = vpop.permute.xlu0 %2090
    %v2092 = vsel %vm396, %v2085, %v2087
    %v2093 = vsel %vm396, %v2087, %v2089
    %v2094 = vsel %vm396, %v2089, %v2091
    %v2100 = vmul.f32 %v2056, %v2085
    %v2101 = vmul.f32 %v2057, %v2092
    %v2102 = vmul.f32 %v2058, %v2093
    %v2103 = vmul.f32 %v2059, %v2094
    %v2104 = vmul.f32 %v2060, %v2091
    %v2105 = vmul.f32 %v2061, %v2085
    %v2106 = vmul.f32 %v2062, %v2092
    %v2107 = vmul.f32 %v2063, %v2093
    %v2108 = vmul.f32 %v2064, %v2094
    %v2109 = vmul.f32 %v2065, %v2091
    %v2110 = vpack.c.bf16 %v2105, %v2100
    %v2111 = vpack.c.bf16 %v2106, %v2101
    %v2112 = vpack.c.bf16 %v2107, %v2102
    %v2113 = vpack.c.bf16 %v2108, %v2103
    %v2114 = vpack.c.bf16 %v2109, %v2104
    %2120 = vrot.lane.b32.xlu0 %v2110, 1
    %v2121 = vpop.permute.xlu0 %2120
    %2122 = vrot.lane.b32.xlu0 %v2111, 1
    %v2123 = vpop.permute.xlu0 %2122
    %2124 = vrot.lane.b32.xlu0 %v2112, 1
    %v2125 = vpop.permute.xlu0 %2124
    %2126 = vrot.lane.b32.xlu0 %v2113, 1
    %v2127 = vpop.permute.xlu0 %2126
    %2128 = vrot.lane.b32.xlu0 %v2114, 1
    %v2129 = vpop.permute.xlu0 %2128
    %v2130 = vsel %vm430, %v2121, %v2123
    %v2131 = vsel %vm430, %v2123, %v2125
    %v2132 = vsel %vm430, %v2125, %v2127
    %v2133 = vsel %vm430, %v2127, %v2129
    %2138 = vst [vmem:[#allocation3 + $0x60] sm:$0xff] %v2130
    %2139 = vst [vmem:[#allocation3 + $0x68] sm:$0xff] %v2131
    %2140 = vst [vmem:[#allocation3 + $0x70] sm:$0xff] %v2132
    %2141 = vst [vmem:[#allocation3 + $0x78] sm:$0xff] %v2133
    %v2142 = vld [vmem:[#allocation2 + $0x8] sm:$0xff]
    %v2143 = vld [vmem:[#allocation2 + $0x10] sm:$0xff]
    %v2144 = vld [vmem:[#allocation2 + $0x18] sm:$0xff]
    %v2145 = vld [vmem:[#allocation2 + $0x20] sm:$0xff]
    %v2146 = vld [vmem:[#allocation2 + $0x38] sm:$0xff]
    %v2147 = vld [vmem:[#allocation2 + $0x40] sm:$0xff]
    %v2148 = vld [vmem:[#allocation2 + $0x48] sm:$0xff]
    %v2149 = vld [vmem:[#allocation2 + $0x50] sm:$0xff]
    %v2150 = vld [vmem:[%s455] ss:$8 sm:$0xf]
    %v2152 = vlaneseq
    %v2153 = vshrl.u32 %v2152, 7
    %v2154 = vsub.s32 0, %v2153
    %v2155 = vrot.slane %v2150, %v2154
    %v2156 = vlaneseq
    %v2157 = vshrl.u32 %v2156, 7
    %v2158 = vsub.s32 1, %v2157
    %v2159 = vrot.slane %v2150, %v2158
    %v2160 = vlaneseq
    %v2161 = vshrl.u32 %v2160, 7
    %v2162 = vsub.s32 2, %v2161
    %v2163 = vrot.slane %v2150, %v2162
    %v2164 = vlaneseq
    %v2165 = vshrl.u32 %v2164, 7
    %v2166 = vsub.s32 3, %v2165
    %v2167 = vrot.slane %v2150, %v2166
    %v2172 = vmul.f32 %v2142, %v2155
    %v2173 = vmul.f32 %v2143, %v2159
    %v2174 = vmul.f32 %v2144, %v2163
    %v2175 = vmul.f32 %v2145, %v2167
    %v2176 = vmul.f32 %v2146, %v2155
    %v2177 = vmul.f32 %v2147, %v2159
    %v2178 = vmul.f32 %v2148, %v2163
    %v2179 = vmul.f32 %v2149, %v2167
    %v2180 = vpack.c.bf16 %v2176, %v2172
    %v2181 = vpack.c.bf16 %v2177, %v2173
    %v2182 = vpack.c.bf16 %v2178, %v2174
    %v2183 = vpack.c.bf16 %v2179, %v2175
    %2184 = vst [vmem:[#allocation3 + $0x80] sm:$0xff] %v2180
    %2185 = vst [vmem:[#allocation3 + $0x88] sm:$0xff] %v2181
    %2186 = vst [vmem:[#allocation3 + $0x90] sm:$0xff] %v2182
    %2187 = vst [vmem:[#allocation3 + $0x98] sm:$0xff] %v2183
    %v2188 = vld [vmem:[#allocation2 + $0x8] sm:$0xff]
    %v2189 = vld [vmem:[#allocation2 + $0x10] sm:$0xff]
    %v2190 = vld [vmem:[#allocation2 + $0x18] sm:$0xff]
    %v2191 = vld [vmem:[#allocation2 + $0x20] sm:$0xff]
    %v2192 = vld [vmem:[#allocation2 + $0x28] sm:$0xff]
    %v2193 = vld [vmem:[#allocation2 + $0x38] sm:$0xff]
    %v2194 = vld [vmem:[#allocation2 + $0x40] sm:$0xff]
    %v2195 = vld [vmem:[#allocation2 + $0x48] sm:$0xff]
    %v2196 = vld [vmem:[#allocation2 + $0x50] sm:$0xff]
    %v2197 = vld [vmem:[#allocation2 + $0x58] sm:$0xff]
    %v2198 = vld [vmem:[%s503] ss:$8 sm:$0xf]
    %v2200 = vlaneseq
    %v2201 = vshrl.u32 %v2200, 7
    %v2202 = vsub.s32 0, %v2201
    %v2203 = vrot.slane %v2198, %v2202
    %v2204 = vlaneseq
    %v2205 = vshrl.u32 %v2204, 7
    %v2206 = vsub.s32 1, %v2205
    %v2207 = vrot.slane %v2198, %v2206
    %v2208 = vlaneseq
    %v2209 = vshrl.u32 %v2208, 7
    %v2210 = vsub.s32 2, %v2209
    %v2211 = vrot.slane %v2198, %v2210
    %v2212 = vlaneseq
    %v2213 = vshrl.u32 %v2212, 7
    %v2214 = vsub.s32 3, %v2213
    %v2215 = vrot.slane %v2198, %v2214
    %2216 = vrot.lane.b32.xlu0 %v2203, 1
    %v2217 = vpop.permute.xlu0 %2216
    %2218 = vrot.lane.b32.xlu0 %v2207, 1
    %v2219 = vpop.permute.xlu0 %2218
    %2220 = vrot.lane.b32.xlu0 %v2211, 1
    %v2221 = vpop.permute.xlu0 %2220
    %2222 = vrot.lane.b32.xlu0 %v2215, 1
    %v2223 = vpop.permute.xlu0 %2222
    %v2224 = vsel %vm530, %v2217, %v2219
    %v2225 = vsel %vm530, %v2219, %v2221
    %v2226 = vsel %vm530, %v2221, %v2223
    %v2232 = vmul.f32 %v2188, %v2217
    %v2233 = vmul.f32 %v2189, %v2224
    %v2234 = vmul.f32 %v2190, %v2225
    %v2235 = vmul.f32 %v2191, %v2226
    %v2236 = vmul.f32 %v2192, %v2223
    %v2237 = vmul.f32 %v2193, %v2217
    %v2238 = vmul.f32 %v2194, %v2224
    %v2239 = vmul.f32 %v2195, %v2225
    %v2240 = vmul.f32 %v2196, %v2226
    %v2241 = vmul.f32 %v2197, %v2223
    %v2242 = vpack.c.bf16 %v2237, %v2232
    %v2243 = vpack.c.bf16 %v2238, %v2233
    %v2244 = vpack.c.bf16 %v2239, %v2234
    %v2245 = vpack.c.bf16 %v2240, %v2235
    %v2246 = vpack.c.bf16 %v2241, %v2236
    %2252 = vrot.lane.b32.xlu0 %v2242, 127
    %v2253 = vpop.permute.xlu0 %2252
    %2254 = vrot.lane.b32.xlu0 %v2243, 127
    %v2255 = vpop.permute.xlu0 %2254
    %2256 = vrot.lane.b32.xlu0 %v2244, 127
    %v2257 = vpop.permute.xlu0 %2256
    %2258 = vrot.lane.b32.xlu0 %v2245, 127
    %v2259 = vpop.permute.xlu0 %2258
    %2260 = vrot.lane.b32.xlu0 %v2246, 127
    %v2261 = vpop.permute.xlu0 %2260
    %v2262 = vsel %vm564, %v2253, %v2255
    %v2263 = vsel %vm564, %v2255, %v2257
    %v2264 = vsel %vm564, %v2257, %v2259
    %v2265 = vsel %vm564, %v2259, %v2261
    %2270 = vst [vmem:[#allocation3 + $0xa0] sm:$0xff] %v2262
    %2271 = vst [vmem:[#allocation3 + $0xa8] sm:$0xff] %v2263
    %2272 = vst [vmem:[#allocation3 + $0xb0] sm:$0xff] %v2264
    %2273 = vst [vmem:[#allocation3 + $0xb8] sm:$0xff] %v2265
    %v2274 = vld [vmem:[#allocation2 + $0x8] sm:$0xff]
    %v2275 = vld [vmem:[#allocation2 + $0x10] sm:$0xff]
    %v2276 = vld [vmem:[#allocation2 + $0x18] sm:$0xff]
    %v2277 = vld [vmem:[#allocation2 + $0x20] sm:$0xff]
    %v2278 = vld [vmem:[#allocation2 + $0x28] sm:$0xff]
    %v2279 = vld [vmem:[#allocation2 + $0x38] sm:$0xff]
    %v2280 = vld [vmem:[#allocation2 + $0x40] sm:$0xff]
    %v2281 = vld [vmem:[#allocation2 + $0x48] sm:$0xff]
    %v2282 = vld [vmem:[#allocation2 + $0x50] sm:$0xff]
    %v2283 = vld [vmem:[#allocation2 + $0x58] sm:$0xff]
    %v2284 = vld [vmem:[%s590] ss:$8 sm:$0xf]
    %v2286 = vlaneseq
    %v2287 = vshrl.u32 %v2286, 7
    %v2288 = vsub.s32 0, %v2287
    %v2289 = vrot.slane %v2284, %v2288
    %v2290 = vlaneseq
    %v2291 = vshrl.u32 %v2290, 7
    %v2292 = vsub.s32 1, %v2291
    %v2293 = vrot.slane %v2284, %v2292
    %v2294 = vlaneseq
    %v2295 = vshrl.u32 %v2294, 7
    %v2296 = vsub.s32 2, %v2295
    %v2297 = vrot.slane %v2284, %v2296
    %v2298 = vlaneseq
    %v2299 = vshrl.u32 %v2298, 7
    %v2300 = vsub.s32 3, %v2299
    %v2301 = vrot.slane %v2284, %v2300
    %2302 = vrot.lane.b32.xlu0 %v2289, 15
    %v2303 = vpop.permute.xlu0 %2302
    %2304 = vrot.lane.b32.xlu0 %v2293, 15
    %v2305 = vpop.permute.xlu0 %2304
    %2306 = vrot.lane.b32.xlu0 %v2297, 15
    %v2307 = vpop.permute.xlu0 %2306
    %2308 = vrot.lane.b32.xlu0 %v2301, 15
    %v2309 = vpop.permute.xlu0 %2308
    %v2310 = vsel %vm617, %v2303, %v2305
    %v2311 = vsel %vm617, %v2305, %v2307
    %v2312 = vsel %vm617, %v2307, %v2309
    %v2318 = vmul.f32 %v2274, %v2303
    %v2319 = vmul.f32 %v2275, %v2310
    %v2320 = vmul.f32 %v2276, %v2311
    %v2321 = vmul.f32 %v2277, %v2312
    %v2322 = vmul.f32 %v2278, %v2309
    %v2323 = vmul.f32 %v2279, %v2303
    %v2324 = vmul.f32 %v2280, %v2310
    %v2325 = vmul.f32 %v2281, %v2311
    %v2326 = vmul.f32 %v2282, %v2312
    %v2327 = vmul.f32 %v2283, %v2309
    %v2328 = vpack.c.bf16 %v2323, %v2318
    %v2329 = vpack.c.bf16 %v2324, %v2319
    %v2330 = vpack.c.bf16 %v2325, %v2320
    %v2331 = vpack.c.bf16 %v2326, %v2321
    %v2332 = vpack.c.bf16 %v2327, %v2322
    %2338 = vrot.lane.b32.xlu0 %v2328, 113
    %v2339 = vpop.permute.xlu0 %2338
    %2340 = vrot.lane.b32.xlu0 %v2329, 113
    %v2341 = vpop.permute.xlu0 %2340
    %2342 = vrot.lane.b32.xlu0 %v2330, 113
    %v2343 = vpop.permute.xlu0 %2342
    %2344 = vrot.lane.b32.xlu0 %v2331, 113
    %v2345 = vpop.permute.xlu0 %2344
    %2346 = vrot.lane.b32.xlu0 %v2332, 113
    %v2347 = vpop.permute.xlu0 %2346
    %v2348 = vsel %vm651, %v2339, %v2341
    %v2349 = vsel %vm651, %v2341, %v2343
    %v2350 = vsel %vm651, %v2343, %v2345
    %v2351 = vsel %vm651, %v2345, %v2347
    %2356 = vst [vmem:[#allocation3 + $0xc0] sm:$0xff] %v2348
    %2357 = vst [vmem:[#allocation3 + $0xc8] sm:$0xff] %v2349
    %2358 = vst [vmem:[#allocation3 + $0xd0] sm:$0xff] %v2350
    %2359 = vst [vmem:[#allocation3 + $0xd8] sm:$0xff] %v2351
    %v2360 = vld [vmem:[#allocation2 + $0x8] sm:$0xff]
    %v2361 = vld [vmem:[#allocation2 + $0x10] sm:$0xff]
    %v2362 = vld [vmem:[#allocation2 + $0x18] sm:$0xff]
    %v2363 = vld [vmem:[#allocation2 + $0x20] sm:$0xff]
    %v2364 = vld [vmem:[#allocation2 + $0x28] sm:$0xff]
    %v2365 = vld [vmem:[#allocation2 + $0x38] sm:$0xff]
    %v2366 = vld [vmem:[#allocation2 + $0x40] sm:$0xff]
    %v2367 = vld [vmem:[#allocation2 + $0x48] sm:$0xff]
    %v2368 = vld [vmem:[#allocation2 + $0x50] sm:$0xff]
    %v2369 = vld [vmem:[#allocation2 + $0x58] sm:$0xff]
    %v2370 = vld [vmem:[%s677] ss:$8 sm:$0xf]
    %v2372 = vlaneseq
    %v2373 = vshrl.u32 %v2372, 7
    %v2374 = vsub.s32 0, %v2373
    %v2375 = vrot.slane %v2370, %v2374
    %v2376 = vlaneseq
    %v2377 = vshrl.u32 %v2376, 7
    %v2378 = vsub.s32 1, %v2377
    %v2379 = vrot.slane %v2370, %v2378
    %v2380 = vlaneseq
    %v2381 = vshrl.u32 %v2380, 7
    %v2382 = vsub.s32 2, %v2381
    %v2383 = vrot.slane %v2370, %v2382
    %v2384 = vlaneseq
    %v2385 = vshrl.u32 %v2384, 7
    %v2386 = vsub.s32 3, %v2385
    %v2387 = vrot.slane %v2370, %v2386
    %2388 = vrot.lane.b32.xlu0 %v2375, 16
    %v2389 = vpop.permute.xlu0 %2388
    %2390 = vrot.lane.b32.xlu0 %v2379, 16
    %v2391 = vpop.permute.xlu0 %2390
    %2392 = vrot.lane.b32.xlu0 %v2383, 16
    %v2393 = vpop.permute.xlu0 %2392
    %2394 = vrot.lane.b32.xlu0 %v2387, 16
    %v2395 = vpop.permute.xlu0 %2394
    %v2396 = vsel %vm704, %v2389, %v2391
    %v2397 = vsel %vm704, %v2391, %v2393
    %v2398 = vsel %vm704, %v2393, %v2395
    %v2404 = vmul.f32 %v2360, %v2389
    %v2405 = vmul.f32 %v2361, %v2396
    %v2406 = vmul.f32 %v2362, %v2397
    %v2407 = vmul.f32 %v2363, %v2398
    %v2408 = vmul.f32 %v2364, %v2395
    %v2409 = vmul.f32 %v2365, %v2389
    %v2410 = vmul.f32 %v2366, %v2396
    %v2411 = vmul.f32 %v2367, %v2397
    %v2412 = vmul.f32 %v2368, %v2398
    %v2413 = vmul.f32 %v2369, %v2395
    %v2414 = vpack.c.bf16 %v2409, %v2404
    %v2415 = vpack.c.bf16 %v2410, %v2405
    %v2416 = vpack.c.bf16 %v2411, %v2406
    %v2417 = vpack.c.bf16 %v2412, %v2407
    %v2418 = vpack.c.bf16 %v2413, %v2408
    %2424 = vrot.lane.b32.xlu0 %v2414, 112
    %v2425 = vpop.permute.xlu0 %2424
    %2426 = vrot.lane.b32.xlu0 %v2415, 112
    %v2427 = vpop.permute.xlu0 %2426
    %2428 = vrot.lane.b32.xlu0 %v2416, 112
    %v2429 = vpop.permute.xlu0 %2428
    %2430 = vrot.lane.b32.xlu0 %v2417, 112
    %v2431 = vpop.permute.xlu0 %2430
    %2432 = vrot.lane.b32.xlu0 %v2418, 112
    %v2433 = vpop.permute.xlu0 %2432
    %v2434 = vsel %vm738, %v2425, %v2427
    %v2435 = vsel %vm738, %v2427, %v2429
    %v2436 = vsel %vm738, %v2429, %v2431
    %v2437 = vsel %vm738, %v2431, %v2433
    %2442 = vst [vmem:[#allocation3 + $0xe0] sm:$0xff] %v2434
    %2443 = vst [vmem:[#allocation3 + $0xe8] sm:$0xff] %v2435
    %2444 = vst [vmem:[#allocation3 + $0xf0] sm:$0xff] %v2436
    %2445 = vst [vmem:[#allocation3 + $0xf8] sm:$0xff] %v2437
    %v2446 = vld [vmem:[#allocation2 + $0x8] sm:$0xff]
    %v2447 = vld [vmem:[#allocation2 + $0x10] sm:$0xff]
    %v2448 = vld [vmem:[#allocation2 + $0x18] sm:$0xff]
    %v2449 = vld [vmem:[#allocation2 + $0x20] sm:$0xff]
    %v2450 = vld [vmem:[#allocation2 + $0x28] sm:$0xff]
    %v2451 = vld [vmem:[#allocation2 + $0x38] sm:$0xff]
    %v2452 = vld [vmem:[#allocation2 + $0x40] sm:$0xff]
    %v2453 = vld [vmem:[#allocation2 + $0x48] sm:$0xff]
    %v2454 = vld [vmem:[#allocation2 + $0x50] sm:$0xff]
    %v2455 = vld [vmem:[#allocation2 + $0x58] sm:$0xff]
    %v2456 = vld [vmem:[%s764] ss:$8 sm:$0xf]
    %v2458 = vlaneseq
    %v2459 = vshrl.u32 %v2458, 7
    %v2460 = vsub.s32 0, %v2459
    %v2461 = vrot.slane %v2456, %v2460
    %v2462 = vlaneseq
    %v2463 = vshrl.u32 %v2462, 7
    %v2464 = vsub.s32 1, %v2463
    %v2465 = vrot.slane %v2456, %v2464
    %v2466 = vlaneseq
    %v2467 = vshrl.u32 %v2466, 7
    %v2468 = vsub.s32 2, %v2467
    %v2469 = vrot.slane %v2456, %v2468
    %v2470 = vlaneseq
    %v2471 = vshrl.u32 %v2470, 7
    %v2472 = vsub.s32 3, %v2471
    %v2473 = vrot.slane %v2456, %v2472
    %2474 = vrot.lane.b32.xlu0 %v2461, 17
    %v2475 = vpop.permute.xlu0 %2474
    %2476 = vrot.lane.b32.xlu0 %v2465, 17
    %v2477 = vpop.permute.xlu0 %2476
    %2478 = vrot.lane.b32.xlu0 %v2469, 17
    %v2479 = vpop.permute.xlu0 %2478
    %2480 = vrot.lane.b32.xlu0 %v2473, 17
    %v2481 = vpop.permute.xlu0 %2480
    %v2482 = vsel %vm791, %v2475, %v2477
    %v2483 = vsel %vm791, %v2477, %v2479
    %v2484 = vsel %vm791, %v2479, %v2481
    %v2490 = vmul.f32 %v2446, %v2475
    %v2491 = vmul.f32 %v2447, %v2482
    %v2492 = vmul.f32 %v2448, %v2483
    %v2493 = vmul.f32 %v2449, %v2484
    %v2494 = vmul.f32 %v2450, %v2481
    %v2495 = vmul.f32 %v2451, %v2475
    %v2496 = vmul.f32 %v2452, %v2482
    %v2497 = vmul.f32 %v2453, %v2483
    %v2498 = vmul.f32 %v2454, %v2484
    %v2499 = vmul.f32 %v2455, %v2481
    %v2500 = vpack.c.bf16 %v2495, %v2490
    %v2501 = vpack.c.bf16 %v2496, %v2491
    %v2502 = vpack.c.bf16 %v2497, %v2492
    %v2503 = vpack.c.bf16 %v2498, %v2493
    %v2504 = vpack.c.bf16 %v2499, %v2494
    %2510 = vrot.lane.b32.xlu0 %v2500, 111
    %v2511 = vpop.permute.xlu0 %2510
    %2512 = vrot.lane.b32.xlu0 %v2501, 111
    %v2513 = vpop.permute.xlu0 %2512
    %2514 = vrot.lane.b32.xlu0 %v2502, 111
    %v2515 = vpop.permute.xlu0 %2514
    %2516 = vrot.lane.b32.xlu0 %v2503, 111
    %v2517 = vpop.permute.xlu0 %2516
    %2518 = vrot.lane.b32.xlu0 %v2504, 111
    %v2519 = vpop.permute.xlu0 %2518
    %v2520 = vsel %vm825, %v2511, %v2513
    %v2521 = vsel %vm825, %v2513, %v2515
    %v2522 = vsel %vm825, %v2515, %v2517
    %v2523 = vsel %vm825, %v2517, %v2519
    %2528 = vst [vmem:[#allocation3 + $0x100] sm:$0xff] %v2520
    %2529 = vst [vmem:[#allocation3 + $0x108] sm:$0xff] %v2521
    %2530 = vst [vmem:[#allocation3 + $0x110] sm:$0xff] %v2522
    %2531 = vst [vmem:[#allocation3 + $0x118] sm:$0xff] %v2523
    %v2532 = vld [vmem:[%s6] sm:$0xff]
    %v2533 = vld [vmem:[%s6 + $0x8] sm:$0xff]
    %v2534 = vld [vmem:[#allocation3] sm:$0xff]
    %v2535 = vld [vmem:[#allocation3 + $0x8] sm:$0xff]
    %v2536 = vld [vmem:[#allocation3 + $0x10] sm:$0xff]
    %v2537 = vld [vmem:[#allocation3 + $0x18] sm:$0xff]
    %v2538 = vld [vmem:[#allocation3 + $0x20] sm:$0xff]
    %v2539 = vld [vmem:[#allocation3 + $0x28] sm:$0xff]
    %v2540 = vld [vmem:[#allocation3 + $0x30] sm:$0xff]
    %v2541 = vld [vmem:[#allocation3 + $0x38] sm:$0xff]
    %v2542 = vld [vmem:[#allocation3 + $0x40] sm:$0xff]
    %v2543 = vld [vmem:[#allocation3 + $0x48] sm:$0xff]
    %v2544 = vld [vmem:[#allocation3 + $0x50] sm:$0xff]
    %v2545 = vld [vmem:[#allocation3 + $0x58] sm:$0xff]
    %v2546 = vld [vmem:[#allocation3 + $0x60] sm:$0xff]
    %v2547 = vld [vmem:[#allocation3 + $0x68] sm:$0xff]
    %v2548 = vld [vmem:[#allocation3 + $0x70] sm:$0xff]
    %v2549 = vld [vmem:[#allocation3 + $0x78] sm:$0xff]
    %v2550 = vld [vmem:[#allocation3 + $0x80] sm:$0xff]
    %v2551 = vld [vmem:[#allocation3 + $0x88] sm:$0xff]
    %v2552 = vld [vmem:[#allocation3 + $0x90] sm:$0xff]
    %v2553 = vld [vmem:[#allocation3 + $0x98] sm:$0xff]
    %v2554 = vld [vmem:[#allocation3 + $0xa0] sm:$0xff]
    %v2555 = vld [vmem:[#allocation3 + $0xa8] sm:$0xff]
    %v2556 = vld [vmem:[#allocation3 + $0xb0] sm:$0xff]
    %v2557 = vld [vmem:[#allocation3 + $0xb8] sm:$0xff]
    %v2558 = vld [vmem:[#allocation3 + $0xc0] sm:$0xff]
    %v2559 = vld [vmem:[#allocation3 + $0xc8] sm:$0xff]
    %v2560 = vld [vmem:[#allocation3 + $0xd0] sm:$0xff]
    %v2561 = vld [vmem:[#allocation3 + $0xd8] sm:$0xff]
    %v2562 = vld [vmem:[#allocation3 + $0xe0] sm:$0xff]
    %v2563 = vld [vmem:[#allocation3 + $0xe8] sm:$0xff]
    %v2564 = vld [vmem:[#allocation3 + $0xf0] sm:$0xff]
    %v2565 = vld [vmem:[#allocation3 + $0xf8] sm:$0xff]
    %v2566 = vld [vmem:[#allocation3 + $0x100] sm:$0xff]
    %v2567 = vld [vmem:[#allocation3 + $0x108] sm:$0xff]
    %v2568 = vld [vmem:[#allocation3 + $0x110] sm:$0xff]
    %v2569 = vld [vmem:[#allocation3 + $0x118] sm:$0xff]
    %v2570 = vld [vmem:[%s7] sm:$0xff]
    %v2571 = vld [vmem:[%s7 + $0x8] sm:$0xff]
    %2573 = vset.pattern.permute.xlu0 0
    %2574 = vperm.xlu0 %2573, %v2570
    %v2575 = vpop.permute.xlu0 %2574
    %2578 = vset.pattern.permute.xlu0 0
    %2579 = vperm.xlu0 %2578, %v2571
    %v2580 = vpop.permute.xlu0 %2579
    %v2584 = vunpack.c.l.b16 %v2532
    %v2585 = vunpack.c.h.b16 %v2532
    %v2586 = vunpack.c.l.b16 %v2533
    %v2587 = vunpack.c.h.b16 %v2533
    %v2588 = vpack.c.b16 %v2586, %v2584
    %v2589 = vpack.c.b16 %v2587, %v2585
    %v2592 = vsel %vm704, %v2589, 0
    %2594 = vmatprep.subr.bf16.mxu0 %v2535
    %2595 = vmatpush1.bf16.msra.mxu0 %v2534
    %2596 = vmatprep.subr.bf16.mxu0 %v2539
    %2597 = vmatpush1.bf16.msra.mxu0 %v2538
    %2598 = vmatprep.subr.bf16.mxu0 %v2543
    %2599 = vmatpush1.bf16.msra.mxu0 %v2542
    %2600 = vmatprep.subr.bf16.mxu0 %v2547
    %2601 = vmatpush1.bf16.msra.mxu0 %v2546
    %2602 = vmatprep.subr.bf16.mxu0 %v2551
    %2603 = vmatpush1.bf16.msra.mxu0 %v2550
    %2604 = vmatprep.subr.bf16.mxu0 %v2555
    %2605 = vmatpush1.bf16.msra.mxu0 %v2554
    %2606 = vmatprep.subr.bf16.mxu0 %v2559
    %2607 = vmatpush1.bf16.msra.mxu0 %v2558
    %2608 = vmatprep.subr.bf16.mxu0 %v2563
    %2609 = vmatpush1.bf16.msra.mxu0 %v2562
    %2610 = vmatprep.subr.bf16.mxu0 %v2567
    %2611 = vmatpush1.bf16.msra.mxu0 %v2566
    %2612 = vmatprep.subr.bf16.mxu0 0
    %2613 = vmatpush1.bf16.msra.mxu0 0
    %2614 = vmatprep.subr.bf16.mxu0 0
    %2615 = vmatpush1.bf16.msra.mxu0 0
    %2616 = vmatprep.subr.bf16.mxu0 0
    %2617 = vmatpush1.bf16.msra.mxu0 0
    %2618 = vmatprep.subr.bf16.mxu0 0
    %2619 = vmatpush1.bf16.msra.mxu0 0
    %2620 = vmatprep.subr.bf16.mxu0 0
    %2621 = vmatpush1.bf16.msra.mxu0 0
    %2622 = vmatprep.subr.bf16.mxu0 0
    %2623 = vmatpush1.bf16.msra.mxu0 0
    %2624 = vmatprep.subr.bf16.mxu0 0
    %2625 = vmatpush1.bf16.msra.mxu0 0
    %2626 = vmatprep.mubr.bf16.mxu0 %v2592
    %2627 = vmatmul.mubr.bf16.gmra.mrb[0].mxu0 %v2588
    %v2628 = vpop.f32.mrb[0].mxu0
    %v2629 = vadd.f32 %v2575, %v2628
    %v2630 = vpop.f32.mrb[0].mxu0
    %v2631 = vadd.f32 %v2575, %v2630
    %v2632 = vpop.f32.mrb[0].mxu0
    %v2633 = vadd.f32 %v2580, %v2632
    %v2634 = vpop.f32.mrb[0].mxu0
    %v2635 = vadd.f32 %v2580, %v2634
    %2636 = vdwg.mxu0
    %2637 = vmatprep.subr.bf16.mxu0 %v2537
    %2638 = vmatpush1.bf16.msra.mxu0 %v2536
    %2639 = vmatprep.subr.bf16.mxu0 %v2541
    %2640 = vmatpush1.bf16.msra.mxu0 %v2540
    %2641 = vmatprep.subr.bf16.mxu0 %v2545
    %2642 = vmatpush1.bf16.msra.mxu0 %v2544
    %2643 = vmatprep.subr.bf16.mxu0 %v2549
    %2644 = vmatpush1.bf16.msra.mxu0 %v2548
    %2645 = vmatprep.subr.bf16.mxu0 %v2553
    %2646 = vmatpush1.bf16.msra.mxu0 %v2552
    %2647 = vmatprep.subr.bf16.mxu0 %v2557
    %2648 = vmatpush1.bf16.msra.mxu0 %v2556
    %2649 = vmatprep.subr.bf16.mxu0 %v2561
    %2650 = vmatpush1.bf16.msra.mxu0 %v2560
    %2651 = vmatprep.subr.bf16.mxu0 %v2565
    %2652 = vmatpush1.bf16.msra.mxu0 %v2564
    %2653 = vmatprep.subr.bf16.mxu0 %v2569
    %2654 = vmatpush1.bf16.msra.mxu0 %v2568
    %2655 = vmatprep.subr.bf16.mxu0 0
    %2656 = vmatpush1.bf16.msra.mxu0 0
    %2657 = vmatprep.subr.bf16.mxu0 0
    %2658 = vmatpush1.bf16.msra.mxu0 0
    %2659 = vmatprep.subr.bf16.mxu0 0
    %2660 = vmatpush1.bf16.msra.mxu0 0
    %2661 = vmatprep.subr.bf16.mxu0 0
    %2662 = vmatpush1.bf16.msra.mxu0 0
    %2663 = vmatprep.subr.bf16.mxu0 0
    %2664 = vmatpush1.bf16.msra.mxu0 0
    %2665 = vmatprep.subr.bf16.mxu0 0
    %2666 = vmatpush1.bf16.msra.mxu0 0
    %2667 = vmatprep.subr.bf16.mxu0 0
    %2668 = vmatpush1.bf16.msra.mxu0 0
    %2669 = vmatprep.mubr.bf16.mxu0 %v2592
    %2670 = vmatmul.mubr.bf16.gmra.mrb[0].mxu0 %v2588
    %v2671 = vpop.f32.mrb[0].mxu0
    %v2672 = vadd.f32 %v2575, %v2671
    %v2673 = vpop.f32.mrb[0].mxu0
    %v2674 = vadd.f32 %v2575, %v2673
    %v2675 = vpop.f32.mrb[0].mxu0
    %v2676 = vadd.f32 %v2580, %v2675
    %v2677 = vpop.f32.mrb[0].mxu0
    %v2678 = vadd.f32 %v2580, %v2677
    %2679 = vdwg.mxu0
    %v2680 = vmax.f32 %v2629, 0.0
    %v2681 = vmax.f32 %v2631, 0.0
    %v2682 = vmax.f32 %v2672, 0.0
    %v2683 = vmax.f32 %v2674, 0.0
    %v2684 = vmax.f32 %v2633, 0.0
    %v2685 = vmax.f32 %v2635, 0.0
    %v2686 = vmax.f32 %v2676, 0.0
    %v2687 = vmax.f32 %v2678, 0.0
    %v2688 = vpack.c.bf16 %v2684, %v2680
    %v2689 = vpack.c.bf16 %v2685, %v2681
    %v2690 = vpack.c.bf16 %v2686, %v2682
    %v2691 = vpack.c.bf16 %v2687, %v2683
    %v2692 = vld [vmem:[%s8] sm:$0xf]
    %v2693 = vld [vmem:[%s8 + $0x4] sm:$0xf]
    %v2694 = vld [vmem:[%s8 + $0x8] sm:$0xf]
    %v2695 = vld [vmem:[%s8 + $0xc] sm:$0xf]
    %v2696 = vld [vmem:[%s8 + $0x10] sm:$0xf]
    %v2697 = vld [vmem:[%s8 + $0x14] sm:$0xf]
    %v2698 = vld [vmem:[%s8 + $0x18] sm:$0xf]
    %v2699 = vld [vmem:[%s8 + $0x1c] sm:$0xf]
    %v2700 = vld [vmem:[%s8 + $0x20] sm:$0xf]
    %v2701 = vld [vmem:[%s8 + $0x24] sm:$0xf]
    %v2702 = vld [vmem:[%s8 + $0x28] sm:$0xf]
    %v2703 = vld [vmem:[%s8 + $0x2c] sm:$0xf]
    %v2704 = vld [vmem:[%s8 + $0x30] sm:$0xf]
    %v2705 = vld [vmem:[%s8 + $0x34] sm:$0xf]
    %v2706 = vld [vmem:[%s8 + $0x38] sm:$0xf]
    %v2707 = vld [vmem:[%s8 + $0x3c] sm:$0xf]
    %v2708 = vld [vmem:[%s8 + $0x40] sm:$0xf]
    %v2709 = vld [vmem:[%s8 + $0x44] sm:$0xf]
    %v2710 = vld [vmem:[%s8 + $0x48] sm:$0xf]
    %v2711 = vld [vmem:[%s8 + $0x4c] sm:$0xf]
    %v2712 = vld [vmem:[%s8 + $0x50] sm:$0xf]
    %v2713 = vld [vmem:[%s8 + $0x54] sm:$0xf]
    %v2714 = vld [vmem:[%s8 + $0x58] sm:$0xf]
    %v2715 = vld [vmem:[%s8 + $0x5c] sm:$0xf]
    %v2716 = vld [vmem:[%s8 + $0x60] sm:$0xf]
    %v2717 = vld [vmem:[%s8 + $0x64] sm:$0xf]
    %v2718 = vld [vmem:[%s8 + $0x68] sm:$0xf]
    %v2719 = vld [vmem:[%s8 + $0x6c] sm:$0xf]
    %v2720 = vld [vmem:[%s8 + $0x70] sm:$0xf]
    %v2721 = vld [vmem:[%s8 + $0x74] sm:$0xf]
    %v2722 = vld [vmem:[%s8 + $0x78] sm:$0xf]
    %v2723 = vld [vmem:[%s8 + $0x7c] sm:$0xf]
    %v2724 = vld [vmem:[%s8 + $0x80] sm:$0xf]
    %v2725 = vld [vmem:[%s8 + $0x84] sm:$0xf]
    %v2726 = vld [vmem:[%s8 + $0x88] sm:$0xf]
    %v2727 = vld [vmem:[%s8 + $0x8c] sm:$0xf]
    %v2728 = vld [vmem:[%s8 + $0x90] sm:$0xf]
    %v2729 = vld [vmem:[%s8 + $0x94] sm:$0xf]
    %v2730 = vld [vmem:[%s8 + $0x98] sm:$0xf]
    %v2731 = vld [vmem:[%s8 + $0x9c] sm:$0xf]
    %v2732 = vld [vmem:[%s8 + $0xa0] sm:$0xf]
    %v2733 = vld [vmem:[%s8 + $0xa4] sm:$0xf]
    %v2734 = vld [vmem:[%s8 + $0xa8] sm:$0xf]
    %v2735 = vld [vmem:[%s8 + $0xac] sm:$0xf]
    %v2736 = vld [vmem:[%s8 + $0xb0] sm:$0xf]
    %v2737 = vld [vmem:[%s8 + $0xb4] sm:$0xf]
    %v2738 = vld [vmem:[%s8 + $0xb8] sm:$0xf]
    %v2739 = vld [vmem:[%s8 + $0xbc] sm:$0xf]
    %v2740 = vld [vmem:[%s8 + $0xc0] sm:$0xf]
    %v2741 = vld [vmem:[%s8 + $0xc4] sm:$0xf]
    %v2742 = vld [vmem:[%s8 + $0xc8] sm:$0xf]
    %v2743 = vld [vmem:[%s8 + $0xcc] sm:$0xf]
    %v2744 = vld [vmem:[%s8 + $0xd0] sm:$0xf]
    %v2745 = vld [vmem:[%s8 + $0xd4] sm:$0xf]
    %v2746 = vld [vmem:[%s8 + $0xd8] sm:$0xf]
    %v2747 = vld [vmem:[%s8 + $0xdc] sm:$0xf]
    %v2748 = vld [vmem:[%s8 + $0xe0] sm:$0xf]
    %v2749 = vld [vmem:[%s8 + $0xe4] sm:$0xf]
    %v2750 = vld [vmem:[%s8 + $0xe8] sm:$0xf]
    %v2751 = vld [vmem:[%s8 + $0xec] sm:$0xf]
    %v2752 = vld [vmem:[%s8 + $0xf0] sm:$0xf]
    %v2753 = vld [vmem:[%s8 + $0xf4] sm:$0xf]
    %v2754 = vld [vmem:[%s8 + $0xf8] sm:$0xf]
    %v2755 = vld [vmem:[%s8 + $0xfc] sm:$0xf]
    %v2820 = vunpack.c.l.b16 %v2692
    %v2821 = vunpack.c.l.b16 %v2693
    %v2822 = vunpack.c.l.b16 %v2694
    %v2823 = vunpack.c.l.b16 %v2695
    %v2824 = vunpack.c.l.b16 %v2696
    %v2825 = vunpack.c.l.b16 %v2697
    %v2826 = vunpack.c.l.b16 %v2698
    %v2827 = vunpack.c.l.b16 %v2699
    %v2828 = vunpack.c.l.b16 %v2700
    %v2829 = vunpack.c.l.b16 %v2701
    %v2830 = vunpack.c.l.b16 %v2702
    %v2831 = vunpack.c.l.b16 %v2703
    %v2832 = vunpack.c.l.b16 %v2704
    %v2833 = vunpack.c.l.b16 %v2705
    %v2834 = vunpack.c.l.b16 %v2706
    %v2835 = vunpack.c.l.b16 %v2707
    %v2836 = vunpack.c.l.b16 %v2708
    %v2837 = vunpack.c.l.b16 %v2709
    %v2838 = vunpack.c.l.b16 %v2710
    %v2839 = vunpack.c.l.b16 %v2711
    %v2840 = vunpack.c.l.b16 %v2712
    %v2841 = vunpack.c.l.b16 %v2713
    %v2842 = vunpack.c.l.b16 %v2714
    %v2843 = vunpack.c.l.b16 %v2715
    %v2844 = vunpack.c.l.b16 %v2716
    %v2845 = vunpack.c.l.b16 %v2717
    %v2846 = vunpack.c.l.b16 %v2718
    %v2847 = vunpack.c.l.b16 %v2719
    %v2848 = vunpack.c.l.b16 %v2720
    %v2849 = vunpack.c.l.b16 %v2721
    %v2850 = vunpack.c.l.b16 %v2722
    %v2851 = vunpack.c.l.b16 %v2723
    %v2852 = vunpack.c.l.b16 %v2724
    %v2853 = vunpack.c.l.b16 %v2725
    %v2854 = vunpack.c.l.b16 %v2726
    %v2855 = vunpack.c.l.b16 %v2727
    %v2856 = vunpack.c.l.b16 %v2728
    %v2857 = vunpack.c.l.b16 %v2729
    %v2858 = vunpack.c.l.b16 %v2730
    %v2859 = vunpack.c.l.b16 %v2731
    %v2860 = vunpack.c.l.b16 %v2732
    %v2861 = vunpack.c.l.b16 %v2733
    %v2862 = vunpack.c.l.b16 %v2734
    %v2863 = vunpack.c.l.b16 %v2735
    %v2864 = vunpack.c.l.b16 %v2736
    %v2865 = vunpack.c.l.b16 %v2737
    %v2866 = vunpack.c.l.b16 %v2738
    %v2867 = vunpack.c.l.b16 %v2739
    %v2868 = vunpack.c.l.b16 %v2740
    %v2869 = vunpack.c.l.b16 %v2741
    %v2870 = vunpack.c.l.b16 %v2742
    %v2871 = vunpack.c.l.b16 %v2743
    %v2872 = vunpack.c.l.b16 %v2744
    %v2873 = vunpack.c.l.b16 %v2745
    %v2874 = vunpack.c.l.b16 %v2746
    %v2875 = vunpack.c.l.b16 %v2747
    %v2876 = vunpack.c.l.b16 %v2748
    %v2877 = vunpack.c.l.b16 %v2749
    %v2878 = vunpack.c.l.b16 %v2750
    %v2879 = vunpack.c.l.b16 %v2751
    %v2880 = vunpack.c.l.b16 %v2752
    %v2881 = vunpack.c.l.b16 %v2753
    %v2882 = vunpack.c.l.b16 %v2754
    %v2883 = vunpack.c.l.b16 %v2755
    %v2884 = vpack.c.b16 %v2821, %v2820
    %v2885 = vpack.c.b16 %v2823, %v2822
    %v2886 = vpack.c.b16 %v2825, %v2824
    %v2887 = vpack.c.b16 %v2827, %v2826
    %v2888 = vpack.c.b16 %v2829, %v2828
    %v2889 = vpack.c.b16 %v2831, %v2830
    %v2890 = vpack.c.b16 %v2833, %v2832
    %v2891 = vpack.c.b16 %v2835, %v2834
    %v2892 = vpack.c.b16 %v2837, %v2836
    %v2893 = vpack.c.b16 %v2839, %v2838
    %v2894 = vpack.c.b16 %v2841, %v2840
    %v2895 = vpack.c.b16 %v2843, %v2842
    %v2896 = vpack.c.b16 %v2845, %v2844
    %v2897 = vpack.c.b16 %v2847, %v2846
    %v2898 = vpack.c.b16 %v2849, %v2848
    %v2899 = vpack.c.b16 %v2851, %v2850
    %v2900 = vpack.c.b16 %v2853, %v2852
    %v2901 = vpack.c.b16 %v2855, %v2854
    %v2902 = vpack.c.b16 %v2857, %v2856
    %v2903 = vpack.c.b16 %v2859, %v2858
    %v2904 = vpack.c.b16 %v2861, %v2860
    %v2905 = vpack.c.b16 %v2863, %v2862
    %v2906 = vpack.c.b16 %v2865, %v2864
    %v2907 = vpack.c.b16 %v2867, %v2866
    %v2908 = vpack.c.b16 %v2869, %v2868
    %v2909 = vpack.c.b16 %v2871, %v2870
    %v2910 = vpack.c.b16 %v2873, %v2872
    %v2911 = vpack.c.b16 %v2875, %v2874
    %v2912 = vpack.c.b16 %v2877, %v2876
    %v2913 = vpack.c.b16 %v2879, %v2878
    %v2914 = vpack.c.b16 %v2881, %v2880
    %v2915 = vpack.c.b16 %v2883, %v2882
    %2948 = vmatprep.subr.bf16.mxu0 0
    %2949 = vmatpush1.bf16.msra.mxu0 %v2884
    %2950 = vmatprep.subr.bf16.mxu0 0
    %2951 = vmatpush1.bf16.msra.mxu0 %v2885
    %2952 = vmatprep.subr.bf16.mxu0 0
    %2953 = vmatpush1.bf16.msra.mxu0 %v2886
    %2954 = vmatprep.subr.bf16.mxu0 0
    %2955 = vmatpush1.bf16.msra.mxu0 %v2887
    %2956 = vmatprep.subr.bf16.mxu0 0
    %2957 = vmatpush1.bf16.msra.mxu0 %v2888
    %2958 = vmatprep.subr.bf16.mxu0 0
    %2959 = vmatpush1.bf16.msra.mxu0 %v2889
    %2960 = vmatprep.subr.bf16.mxu0 0
    %2961 = vmatpush1.bf16.msra.mxu0 %v2890
    %2962 = vmatprep.subr.bf16.mxu0 0
    %2963 = vmatpush1.bf16.msra.mxu0 %v2891
    %2964 = vmatprep.subr.bf16.mxu0 0
    %2965 = vmatpush1.bf16.msra.mxu0 %v2892
    %2966 = vmatprep.subr.bf16.mxu0 0
    %2967 = vmatpush1.bf16.msra.mxu0 %v2893
    %2968 = vmatprep.subr.bf16.mxu0 0
    %2969 = vmatpush1.bf16.msra.mxu0 %v2894
    %2970 = vmatprep.subr.bf16.mxu0 0
    %2971 = vmatpush1.bf16.msra.mxu0 %v2895
    %2972 = vmatprep.subr.bf16.mxu0 0
    %2973 = vmatpush1.bf16.msra.mxu0 %v2896
    %2974 = vmatprep.subr.bf16.mxu0 0
    %2975 = vmatpush1.bf16.msra.mxu0 %v2897
    %2976 = vmatprep.subr.bf16.mxu0 0
    %2977 = vmatpush1.bf16.msra.mxu0 %v2898
    %2978 = vmatprep.subr.bf16.mxu0 0
    %2979 = vmatpush1.bf16.msra.mxu0 %v2899
    %2980 = vmatprep.mubr.bf16.mxu0 %v2689
    %2981 = vmatmul.mubr.bf16.gmra.mrb[0].mxu0 %v2688
    %v2982 = vpop.f32.mrb[0].mxu0
    %v2983 = vadd.f32 0.0, %v2982
    %v2984 = vpop.f32.mrb[0].mxu0
    %v2985 = vpop.f32.mrb[0].mxu0
    %v2986 = vadd.f32 0.0, %v2985
    %v2987 = vpop.f32.mrb[0].mxu0
    %2988 = vdwg.mxu0
    %2989 = vmatprep.subr.bf16.mxu0 0
    %2990 = vmatpush1.bf16.msra.mxu0 %v2900
    %2991 = vmatprep.subr.bf16.mxu0 0
    %2992 = vmatpush1.bf16.msra.mxu0 %v2901
    %2993 = vmatprep.subr.bf16.mxu0 0
    %2994 = vmatpush1.bf16.msra.mxu0 %v2902
    %2995 = vmatprep.subr.bf16.mxu0 0
    %2996 = vmatpush1.bf16.msra.mxu0 %v2903
    %2997 = vmatprep.subr.bf16.mxu0 0
    %2998 = vmatpush1.bf16.msra.mxu0 %v2904
    %2999 = vmatprep.subr.bf16.mxu0 0
    %3000 = vmatpush1.bf16.msra.mxu0 %v2905
    %3001 = vmatprep.subr.bf16.mxu0 0
    %3002 = vmatpush1.bf16.msra.mxu0 %v2906
    %3003 = vmatprep.subr.bf16.mxu0 0
    %3004 = vmatpush1.bf16.msra.mxu0 %v2907
    %3005 = vmatprep.subr.bf16.mxu0 0
    %3006 = vmatpush1.bf16.msra.mxu0 %v2908
    %3007 = vmatprep.subr.bf16.mxu0 0
    %3008 = vmatpush1.bf16.msra.mxu0 %v2909
    %3009 = vmatprep.subr.bf16.mxu0 0
    %3010 = vmatpush1.bf16.msra.mxu0 %v2910
    %3011 = vmatprep.subr.bf16.mxu0 0
    %3012 = vmatpush1.bf16.msra.mxu0 %v2911
    %3013 = vmatprep.subr.bf16.mxu0 0
    %3014 = vmatpush1.bf16.msra.mxu0 %v2912
    %3015 = vmatprep.subr.bf16.mxu0 0
    %3016 = vmatpush1.bf16.msra.mxu0 %v2913
    %3017 = vmatprep.subr.bf16.mxu0 0
    %3018 = vmatpush1.bf16.msra.mxu0 %v2914
    %3019 = vmatprep.subr.bf16.mxu0 0
    %3020 = vmatpush1.bf16.msra.mxu0 %v2915
    %3021 = vmatprep.mubr.bf16.mxu0 %v2691
    %3022 = vmatmul.mubr.bf16.gmra.mrb[0].mxu0 %v2690
    %v3023 = vpop.f32.mrb[0].mxu0
    %v3024 = vadd.f32 %v2983, %v3023
    %v3025 = vpop.f32.mrb[0].mxu0
    %v3026 = vpop.f32.mrb[0].mxu0
    %v3027 = vadd.f32 %v2986, %v3026
    %v3028 = vpop.f32.mrb[0].mxu0
    %3029 = vdwg.mxu0
    %v3030 = vld [vmem:[%s9] sm:$0x3]
    %3031 = vmatprep.subr.mxu0 0.0
    %3032 = vmatpush1.xpose.msra.mxu0 %v3024
    %3033 = vmatprep.subr.mxu0 0.0
    %3034 = vmatpush1.xpose.msra.mxu0 %v3027
    %3035 = vmatprep.subr.mxu0 0.0
    %3036 = vmatpush1.xpose.msra.mxu0 0.0
    %3037 = vmatprep.subr.mxu0 0.0
    %3038 = vmatpush1.xpose.msra.mxu0 0.0
    %3039 = vmatprep.subr.mxu0 0.0
    %3040 = vmatpush1.xpose.msra.mxu0 0.0
    %3041 = vmatprep.subr.mxu0 0.0
    %3042 = vmatpush1.xpose.msra.mxu0 0.0
    %3043 = vmatprep.subr.mxu0 0.0
    %3044 = vmatpush1.xpose.msra.mxu0 0.0
    %3045 = vmatprep.subr.mxu0 0.0
    %3046 = vmatpush1.xpose.msra.mxu0 0.0
    %3047 = vmatprep.subr.mxu0 0.0
    %3048 = vmatpush1.xpose.msra.mxu0 0.0
    %3049 = vmatprep.subr.mxu0 0.0
    %3050 = vmatpush1.xpose.msra.mxu0 0.0
    %3051 = vmatprep.subr.mxu0 0.0
    %3052 = vmatpush1.xpose.msra.mxu0 0.0
    %3053 = vmatprep.subr.mxu0 0.0
    %3054 = vmatpush1.xpose.msra.mxu0 0.0
    %3055 = vmatprep.subr.mxu0 0.0
    %3056 = vmatpush1.xpose.msra.mxu0 0.0
    %3057 = vmatprep.subr.mxu0 0.0
    %3058 = vmatpush1.xpose.msra.mxu0 0.0
    %3059 = vmatprep.subr.mxu0 0.0
    %3060 = vmatpush1.xpose.msra.mxu0 0.0
    %3061 = vmatprep.subr.mxu0 0.0
    %3062 = vmatpush1.xpose.msra.mxu0 0.0
    %3063 = vmatprep.subr.mxu0 0.0
    %3064 = vmatpush1.xpose.msra.mxu0 0.0
    %3065 = vmatprep.subr.mxu0 0.0
    %3066 = vmatpush1.xpose.msra.mxu0 0.0
    %3067 = vmatprep.subr.mxu0 0.0
    %3068 = vmatpush1.xpose.msra.mxu0 0.0
    %3069 = vmatprep.subr.mxu0 0.0
    %3070 = vmatpush1.xpose.msra.mxu0 0.0
    %3071 = vmatprep.subr.mxu0 0.0
    %3072 = vmatpush1.xpose.msra.mxu0 0.0
    %3073 = vmatprep.subr.mxu0 0.0
    %3074 = vmatpush1.xpose.msra.mxu0 0.0
    %3075 = vmatprep.subr.mxu0 0.0
    %3076 = vmatpush1.xpose.msra.mxu0 0.0
    %3077 = vmatprep.subr.mxu0 0.0
    %3078 = vmatpush1.xpose.msra.mxu0 0.0
    %3079 = vmatprep.subr.mxu0 0.0
    %3080 = vmatpush1.xpose.msra.mxu0 0.0
    %3081 = vmatprep.subr.mxu0 0.0
    %3082 = vmatpush1.xpose.msra.mxu0 0.0
    %3083 = vmatprep.subr.mxu0 0.0
    %3084 = vmatpush1.xpose.msra.mxu0 0.0
    %3085 = vmatprep.subr.mxu0 0.0
    %3086 = vmatpush1.xpose.msra.mxu0 0.0
    %3087 = vmatprep.subr.mxu0 0.0
    %3088 = vmatpush1.xpose.msra.mxu0 0.0
    %3089 = vmatprep.subr.mxu0 0.0
    %3090 = vmatpush1.xpose.msra.mxu0 0.0
    %3091 = vmatprep.subr.mxu0 0.0
    %3092 = vmatpush1.xpose.msra.mxu0 0.0
    %3093 = vmatprep.subr.mxu0 0.0
    %3094 = vmatpush1.xpose.msra.mxu0 0.0
    %3095 = vmatprep.mubr.f32.mxu0 0.0
    %3096 = vmatmul.mubr.f32.gmra.mrb[0].mxu0 %v3030
    %v3097 = vpop.f32.mrb[0].mxu0
    %v3098 = vadd.f32 0.0, %v3097
    %v3099 = vpop.f32.mrb[0].mxu0
    %3100 = vdwg.mxu0
    %v3101 = vld [vmem:[%s10] sm:$0xff]
    %v3102 = vld [vmem:[%s10 + $0x8] sm:$0xff]
    %v3103 = vld [vmem:[%s11] sm:$0x1]
    %v3105 = vlaneseq
    %v3106 = vshrl.u32 %v3105, 7
    %v3107 = vsub.s32 0, %v3106
    %v3108 = vrot.slane %v3103, %v3107
    %v3111 = vsel %vm704, %v3098, 0
    %3113 = vmatprep.subr.mxu0 0.0
    %3114 = vmatpush1.msra.mxu0 %v3101
    %3115 = vmatprep.subr.mxu0 0.0
    %3116 = vmatpush1.msra.mxu0 %v3102
    %3117 = vmatprep.subr.mxu0 0.0
    %3118 = vmatpush1.msra.mxu0 0.0
    %3119 = vmatprep.subr.mxu0 0.0
    %3120 = vmatpush1.msra.mxu0 0.0
    %3121 = vmatprep.subr.mxu0 0.0
    %3122 = vmatpush1.msra.mxu0 0.0
    %3123 = vmatprep.subr.mxu0 0.0
    %3124 = vmatpush1.msra.mxu0 0.0
    %3125 = vmatprep.subr.mxu0 0.0
    %3126 = vmatpush1.msra.mxu0 0.0
    %3127 = vmatprep.subr.mxu0 0.0
    %3128 = vmatpush1.msra.mxu0 0.0
    %3129 = vmatprep.subr.mxu0 0.0
    %3130 = vmatpush1.msra.mxu0 0.0
    %3131 = vmatprep.subr.mxu0 0.0
    %3132 = vmatpush1.msra.mxu0 0.0
    %3133 = vmatprep.subr.mxu0 0.0
    %3134 = vmatpush1.msra.mxu0 0.0
    %3135 = vmatprep.subr.mxu0 0.0
    %3136 = vmatpush1.msra.mxu0 0.0
    %3137 = vmatprep.subr.mxu0 0.0
    %3138 = vmatpush1.msra.mxu0 0.0
    %3139 = vmatprep.subr.mxu0 0.0
    %3140 = vmatpush1.msra.mxu0 0.0
    %3141 = vmatprep.subr.mxu0 0.0
    %3142 = vmatpush1.msra.mxu0 0.0
    %3143 = vmatprep.subr.mxu0 0.0
    %3144 = vmatpush1.msra.mxu0 0.0
    %3145 = vmatprep.subr.mxu0 0.0
    %3146 = vmatpush1.msra.mxu0 0.0
    %3147 = vmatprep.subr.mxu0 0.0
    %3148 = vmatpush1.msra.mxu0 0.0
    %3149 = vmatprep.subr.mxu0 0.0
    %3150 = vmatpush1.msra.mxu0 0.0
    %3151 = vmatprep.subr.mxu0 0.0
    %3152 = vmatpush1.msra.mxu0 0.0
    %3153 = vmatprep.subr.mxu0 0.0
    %3154 = vmatpush1.msra.mxu0 0.0
    %3155 = vmatprep.subr.mxu0 0.0
    %3156 = vmatpush1.msra.mxu0 0.0
    %3157 = vmatprep.subr.mxu0 0.0
    %3158 = vmatpush1.msra.mxu0 0.0
    %3159 = vmatprep.subr.mxu0 0.0
    %3160 = vmatpush1.msra.mxu0 0.0
    %3161 = vmatprep.subr.mxu0 0.0
    %3162 = vmatpush1.msra.mxu0 0.0
    %3163 = vmatprep.subr.mxu0 0.0
    %3164 = vmatpush1.msra.mxu0 0.0
    %3165 = vmatprep.subr.mxu0 0.0
    %3166 = vmatpush1.msra.mxu0 0.0
    %3167 = vmatprep.subr.mxu0 0.0
    %3168 = vmatpush1.msra.mxu0 0.0
    %3169 = vmatprep.subr.mxu0 0.0
    %3170 = vmatpush1.msra.mxu0 0.0
    %3171 = vmatprep.subr.mxu0 0.0
    %3172 = vmatpush1.msra.mxu0 0.0
    %3173 = vmatprep.subr.mxu0 0.0
    %3174 = vmatpush1.msra.mxu0 0.0
    %3175 = vmatprep.subr.mxu0 0.0
    %3176 = vmatpush1.msra.mxu0 0.0
    %3177 = vmatprep.mubr.f32.mxu0 0.0
    %3178 = vmatmul.mubr.f32.gmra.mrb[0].mxu0 %v3111
    %v3179 = vpop.f32.mrb[0].mxu0
    %v3180 = vadd.f32 %v3108, %v3179
    %v3181 = vpop.f32.mrb[0].mxu0
    %3182 = vdwg.mxu0
    %v3183 = vmax.f32 %v3180, 0.0
    %v3184 = vld [vmem:[%s12] sm:$0xff]
    %v3185 = vld [vmem:[%s12 + $0x8] sm:$0xff]
    %v3186 = vld [vmem:[%s12 + $0x10] sm:$0xff]
    %v3187 = vld [vmem:[%s13] sm:$0x1]
    %v3189 = vlaneseq
    %v3190 = vshrl.u32 %v3189, 7
    %v3191 = vsub.s32 0, %v3190
    %v3192 = vrot.slane %v3187, %v3191
    %vm3194 = vcmask 195584
    %v3196 = vsel %vm3194, %v3183, 0
    %3198 = vmatprep.subr.mxu0 0.0
    %3199 = vmatpush1.msra.mxu0 %v3184
    %3200 = vmatprep.subr.mxu0 0.0
    %3201 = vmatpush1.msra.mxu0 %v3185
    %3202 = vmatprep.subr.mxu0 0.0
    %3203 = vmatpush1.msra.mxu0 %v3186
    %3204 = vmatprep.subr.mxu0 0.0
    %3205 = vmatpush1.msra.mxu0 0.0
    %3206 = vmatprep.subr.mxu0 0.0
    %3207 = vmatpush1.msra.mxu0 0.0
    %3208 = vmatprep.subr.mxu0 0.0
    %3209 = vmatpush1.msra.mxu0 0.0
    %3210 = vmatprep.subr.mxu0 0.0
    %3211 = vmatpush1.msra.mxu0 0.0
    %3212 = vmatprep.subr.mxu0 0.0
    %3213 = vmatpush1.msra.mxu0 0.0
    %3214 = vmatprep.subr.mxu0 0.0
    %3215 = vmatpush1.msra.mxu0 0.0
    %3216 = vmatprep.subr.mxu0 0.0
    %3217 = vmatpush1.msra.mxu0 0.0
    %3218 = vmatprep.subr.mxu0 0.0
    %3219 = vmatpush1.msra.mxu0 0.0
    %3220 = vmatprep.subr.mxu0 0.0
    %3221 = vmatpush1.msra.mxu0 0.0
    %3222 = vmatprep.subr.mxu0 0.0
    %3223 = vmatpush1.msra.mxu0 0.0
    %3224 = vmatprep.subr.mxu0 0.0
    %3225 = vmatpush1.msra.mxu0 0.0
    %3226 = vmatprep.subr.mxu0 0.0
    %3227 = vmatpush1.msra.mxu0 0.0
    %3228 = vmatprep.subr.mxu0 0.0
    %3229 = vmatpush1.msra.mxu0 0.0
    %3230 = vmatprep.subr.mxu0 0.0
    %3231 = vmatpush1.msra.mxu0 0.0
    %3232 = vmatprep.subr.mxu0 0.0
    %3233 = vmatpush1.msra.mxu0 0.0
    %3234 = vmatprep.subr.mxu0 0.0
    %3235 = vmatpush1.msra.mxu0 0.0
    %3236 = vmatprep.subr.mxu0 0.0
    %3237 = vmatpush1.msra.mxu0 0.0
    %3238 = vmatprep.subr.mxu0 0.0
    %3239 = vmatpush1.msra.mxu0 0.0
    %3240 = vmatprep.subr.mxu0 0.0
    %3241 = vmatpush1.msra.mxu0 0.0
    %3242 = vmatprep.subr.mxu0 0.0
    %3243 = vmatpush1.msra.mxu0 0.0
    %3244 = vmatprep.subr.mxu0 0.0
    %3245 = vmatpush1.msra.mxu0 0.0
    %3246 = vmatprep.subr.mxu0 0.0
    %3247 = vmatpush1.msra.mxu0 0.0
    %3248 = vmatprep.subr.mxu0 0.0
    %3249 = vmatpush1.msra.mxu0 0.0
    %3250 = vmatprep.subr.mxu0 0.0
    %3251 = vmatpush1.msra.mxu0 0.0
    %3252 = vmatprep.subr.mxu0 0.0
    %3253 = vmatpush1.msra.mxu0 0.0
    %3254 = vmatprep.subr.mxu0 0.0
    %3255 = vmatpush1.msra.mxu0 0.0
    %3256 = vmatprep.subr.mxu0 0.0
    %3257 = vmatpush1.msra.mxu0 0.0
    %3258 = vmatprep.subr.mxu0 0.0
    %3259 = vmatpush1.msra.mxu0 0.0
    %3260 = vmatprep.subr.mxu0 0.0
    %3261 = vmatpush1.msra.mxu0 0.0
    %3262 = vmatprep.mubr.f32.mxu0 0.0
    %3263 = vmatmul.mubr.f32.gmra.mrb[0].mxu0 %v3196
    %v3264 = vpop.f32.mrb[0].mxu0
    %v3265 = vadd.f32 %v3192, %v3264
    %v3266 = vpop.f32.mrb[0].mxu0
    %3267 = vdwg.mxu0
    %3268 = vst [vmem:[#allocation4] sm:$0x3] %v3265
    // Predicated region
    $region58: #{_lambda_.1} parent=1 // pred_check
      _
    $region59: #{_lambda_.1} parent=1 // pred_check_branch
      %3270 = sbr.rel (0) target = $region61
    $region60: #{_lambda_.1} parent=1 // pred_region
      %s3272 = ssub.s32 32, 32
      %3273 = vsyncadd [#allocation5], %s3272
      %s3275 = sshll.u32 [#allocation4], 4
      %s3276 = int_to_ptr.vmem [resolvable:$true] %s3275
      %3278 = dma.vmem_to_hbm [thread:$0]  %s3276, 32, %s14, [#allocation5]
    $region61: #{_lambda_.1} parent=1 // pred_fallthru
      _
    // Predicated region
    $region62: #{_lambda_.1} parent=1 // pred_check
      _
    $region63: #{_lambda_.1} parent=1 // pred_check_branch
      %3280 = sbr.rel (0) target = $region65
    $region64: #{_lambda_.1} parent=1 // pred_region
      %3281 = dma.done [#allocation5], 32
    $region65: #{_lambda_.1} parent=1 // pred_fallthru
      _
    %3282 = vsyncpa [#allocation5], 1

</llo_original>
